<compile_context>
chip_gen: v6e
topology: v6e:2x2x1
jax: 0.10.0
libtpu: 0.0.40
codegen_flags: <defaults>
</compile_context>

<pallas_src>
import functools
import math

import jax
import jax.numpy as jnp
from jax.experimental import pallas as pl
from jax.experimental.pallas import tpu as pltpu


# ------------------------------ fused Pallas kernel ------------------------------ #

def _mario_fused_kernel(xmat_ref, w1_ref, b1_ref, w2_ref, b2_ref, w3_ref, b3_ref,
                        wsh_ref, bsh_ref, whd_ref, bhd_ref, sup_ref, q_ref,
                        lhs2_ref, *,
                        B, OH1, OW1, k2, s2, OH2, OW2, out_dim, atom_size):
    f32 = jnp.float32
    bf16 = jnp.bfloat16

    # ---- conv1: single GEMM over the host-built space-to-depth im2col matrix ----
    # xmat: (OH1*OW1*B, K1) rows ordered (oh1, ow1, b); w1: (K1, 32).
    y1 = jnp.dot(xmat_ref[...], w1_ref[...], preferred_element_type=f32) + b1_ref[...]
    y1 = jnp.maximum(y1, 0.0)                                 # (OH1*OW1*B, 32) f32, VMEM

    # ---- conv2: assemble all (k2 x k2) patches into scratch, then ONE GEMM ----
    # lhs2 rows ordered (oh2, ow2, b); lanes ordered (dh, dw, c) to match w2's rows.
    for oh2 in range(OH2):
        for ow2 in range(OW2):
            pieces = []
            for dh in range(k2):
                for dw in range(k2):
                    r0 = ((oh2 * s2 + dh) * OW1 + (ow2 * s2 + dw)) * B
                    pieces.append(y1[r0:r0 + B, :])           # (B, 32) static row slice
            p = oh2 * OW2 + ow2
            lhs2_ref[p * B:(p + 1) * B, :] = jnp.concatenate(pieces, axis=1)
    y2 = jnp.dot(lhs2_ref[...].astype(bf16), w2_ref[...],
                 preferred_element_type=f32) + b2_ref[...]
    y2 = jnp.maximum(y2, 0.0)                                 # (OH2*OW2*B, 64) f32

    # ---- conv3 (output is 1x1 spatially): ONE GEMM over all kernel positions ----
    npos = OH2 * OW2
    lhs3 = jnp.concatenate([y2[p * B:(p + 1) * B, :] for p in range(npos)], axis=1)
    feat = jnp.dot(lhs3.astype(bf16), w3_ref[...], preferred_element_type=f32) + b3_ref[...]
    feat = jnp.maximum(feat, 0.0).astype(bf16)                # (B, 64) == nn.Flatten()

    # ---- shared NoisyLinear + fused advantage|value head GEMM ----
    shared = jnp.dot(feat, wsh_ref[...], preferred_element_type=f32) + bsh_ref[...]
    shared = jnp.maximum(shared, 0.0).astype(bf16)            # (B, 512)
    head = jnp.dot(shared, whd_ref[...], preferred_element_type=f32) + bhd_ref[...]
    # head columns: [out_dim*atom_size advantage | atom_size value]

    # ---- dueling combine + softmax over atoms + clamp(min=0.001) + E[support] ----
    n_adv = out_dim * atom_size
    val = head[:, n_adv:n_adv + atom_size]                    # (B, atoms)
    advs = [head[:, a * atom_size:(a + 1) * atom_size] for a in range(out_dim)]
    adv_mean = advs[0]
    for a in range(1, out_dim):
        adv_mean = adv_mean + advs[a]
    adv_mean = adv_mean * (1.0 / out_dim)
    sup = sup_ref[...]                                        # (1, atoms)
    qcols = []
    for a in range(out_dim):
        qa = val + advs[a] - adv_mean
        m = jnp.max(qa, axis=-1, keepdims=True)
        e = jnp.exp(qa - m)
        dist = e / jnp.sum(e, axis=-1, keepdims=True)
        dist = jnp.maximum(dist, 0.001)                       # .clamp(min=0.001)
        qcols.append(jnp.sum(dist * sup, axis=-1, keepdims=True))  # (B, 1)
    q_ref[...] = jnp.concatenate(qcols, axis=1)               # (B, out_dim)


# ---------------------- host-side input prep (conv1 GEMM LHS) --------------------- #

def _conv1_im2col(x, k, s):
    """Raw NCHW input -> conv1 GEMM LHS (k % s == 0, space-to-depth block decomposition).

    Returns (OH*OW*B, n*n*s*s*C) with rows ordered (oh, ow, b), lanes (bh, bw, r, t, c).
    """
    B, C, H, W = x.shape
    assert k % s == 0 and H % s == 0 and W % s == 0
    n = k // s
    Hb, Wb = H // s, W // s
    OH = (H - k) // s + 1
    OW = (W - k) // s + 1
    x_nhwc = jnp.transpose(x, (0, 2, 3, 1))                       # (B, H, W, C)
    xb = x_nhwc.reshape(B, Hb, s, Wb, s, C)
    xb = jnp.transpose(xb, (0, 1, 3, 2, 4, 5)).reshape(B, Hb, Wb, s * s * C)
    blocks = []
    for bh in range(n):
        for bw in range(n):
            blk = xb[:, bh:bh + OH, bw:bw + OW, :]                # (B, OH, OW, s*s*C)
            blk = jnp.transpose(blk, (1, 2, 0, 3)).reshape(OH * OW * B, s * s * C)
            blocks.append(blk)
    return jnp.concatenate(blocks, axis=1)                        # (OH*OW*B, n*n*s*s*C)


def _prep_conv1_weight(w, k, s):
    """(O, C, k, k) conv weight -> (n*n*s*s*C, O) GEMM matrix matching _conv1_im2col order."""
    O, C, kh, kw = w.shape
    n = k // s
    wt = jnp.transpose(w, (2, 3, 1, 0))                           # (kh, kw, C, O)
    wt = wt.reshape(n, s, n, s, C, O)
    wt = jnp.transpose(wt, (0, 2, 1, 3, 4, 5))                    # (bh, bw, r, t, C, O)
    return wt.reshape(n * n * s * s * C, O)


# ----------------------------- parameter construction ----------------------------- #

def _scale_noise(key, size):
    x = jax.random.normal(key, (size,), jnp.float32)
    return jnp.sign(x) * jnp.sqrt(jnp.abs(x))


def noisy_linear_effective(key, in_f, out_f, std_init=0.5):
    """Effective (weight, bias) of a NoisyLinear after reset_parameters()+reset_noise()."""
    k1, k2, k3, k4 = jax.random.split(key, 4)
    mu_range = 1.0 / math.sqrt(in_f)
    weight_mu = jax.random.uniform(k1, (out_f, in_f), jnp.float32, -mu_range, mu_range)
    weight_sigma = jnp.full((out_f, in_f), std_init / math.sqrt(in_f), jnp.float32)
    bias_mu = jax.random.uniform(k2, (out_f,), jnp.float32, -mu_range, mu_range)
    bias_sigma = jnp.full((out_f,), std_init / math.sqrt(out_f), jnp.float32)
    eps_in = _scale_noise(k3, in_f)
    eps_out = _scale_noise(k4, out_f)
    w = weight_mu + weight_sigma * jnp.outer(eps_out, eps_in)
    b = bias_mu + bias_sigma * eps_out
    return w, b


def conv_params(key, out_c, in_c, k):
    k1, k2 = jax.random.split(key)
    bound = 1.0 / math.sqrt(in_c * k * k)
    w = jax.random.uniform(k1, (out_c, in_c, k, k), jnp.float32, -bound, bound)
    b = jax.random.uniform(k2, (out_c,), jnp.float32, -bound, bound)
    return w, b


def make_params(key, input_shape, out_dim, atom_size):
    in_c, H, W = input_shape
    k1c, s1c, k2c, s2c, k3c = 8, 4, 4, 2, 3
    keys = jax.random.split(key, 6)
    c1_w, c1_b = conv_params(keys[0], 32, in_c, k1c)
    c2_w, c2_b = conv_params(keys[1], 64, 32, k2c)
    c3_w, c3_b = conv_params(keys[2], 64, 64, k3c)

    ho1 = (H - k1c) // s1c + 1
    wo1 = (W - k1c) // s1c + 1
    ho2 = (ho1 - k2c) // s2c + 1
    wo2 = (wo1 - k2c) // s2c + 1
    ho3 = ho2 - k3c + 1
    wo3 = wo2 - k3c + 1
    flat = 64 * ho3 * wo3
    print("flattened size = " + str(flat))

    sh_w, sh_b = noisy_linear_effective(keys[3], flat, 512)
    adv_w, adv_b = noisy_linear_effective(keys[4], 512, out_dim * atom_size)
    val_w, val_b = noisy_linear_effective(keys[5], 512, atom_size)

    bf16 = jnp.bfloat16
    # conv1: fold the 1/255 input scaling into the weight; single GEMM matrix
    w1 = _prep_conv1_weight(c1_w / 255.0, k1c, s1c).astype(bf16)           # (256, 32)
    # conv2: lane-dense GEMM weight with row order (dh, dw, c_in)
    w2 = jnp.transpose(c2_w, (2, 3, 1, 0)).reshape(k2c * k2c * 32, 64).astype(bf16)
    # conv3: single GEMM weight with row order (kh, kw, c_in) == (oh2, ow2, c)
    w3 = jnp.transpose(c3_w, (2, 3, 1, 0)).reshape(k3c * k3c * 64, 64).astype(bf16)
    # shared FC: permute NCHW-flatten -> channel-last order (identity for 1x1 spatial)
    sh_w_p = sh_w.reshape(512, 64, ho3, wo3).transpose(0, 2, 3, 1).reshape(512, flat)
    wsh = sh_w_p.T.astype(bf16)                                            # (flat, 512)
    # fused advantage|value head
    whd = jnp.concatenate([adv_w.T, val_w.T], axis=1).astype(bf16)         # (512, A*atoms+atoms)
    bhd = jnp.concatenate([adv_b, val_b]).reshape(1, -1)

    params = dict(
        w1=w1, b1=c1_b.reshape(1, -1),
        w2=w2, b2=c2_b.reshape(1, -1),
        w3=w3, b3=c3_b.reshape(1, -1),
        wsh=wsh, bsh=sh_b.reshape(1, -1),
        whd=whd, bhd=bhd,
    )
    raw = dict(c1_w=c1_w, c1_b=c1_b, c2_w=c2_w, c2_b=c2_b, c3_w=c3_w, c3_b=c3_b,
               sh_w=sh_w, sh_b=sh_b, adv_w=adv_w, adv_b=adv_b, val_w=val_w, val_b=val_b)
    return params, raw


# ------------------------------------- forward ------------------------------------ #

def mario_net_forward(params, x, support, out_dim, atom_size):
    """x: (B, C, H, W) raw pixels (0..255); returns q: (B, out_dim)."""
    B, C, H, W = x.shape
    k1c, s1c, k2c, s2c, k3c = 8, 4, 4, 2, 3
    assert H % s1c == 0 and W % s1c == 0
    OH1, OW1 = (H - k1c) // s1c + 1, (W - k1c) // s1c + 1
    OH2, OW2 = (OH1 - k2c) // s2c + 1, (OW1 - k2c) // s2c + 1
    OH3, OW3 = OH2 - k3c + 1, OW2 - k3c + 1
    # TODO(synk): the fused kernel assumes conv3's output is 1x1 spatially (true for the
    # 36x36 Mario frames used here); larger frames (e.g. 84x84) would need an in-kernel
    # spatial flatten stage that is not implemented.
    assert OH3 == 1 and OW3 == 1, "fused kernel requires conv3 output spatial size 1x1"

    # conv1 GEMM LHS (only XLA glue left; a few reshapes/transposes on the 41 KiB input)
    xmat = _conv1_im2col(x.astype(jnp.float32), k1c, s1c).astype(jnp.bfloat16)
    sup = support.reshape(1, atom_size).astype(jnp.float32)

    kernel = functools.partial(
        _mario_fused_kernel,
        B=B, OH1=OH1, OW1=OW1, k2=k2c, s2=s2c, OH2=OH2, OW2=OW2,
        out_dim=out_dim, atom_size=atom_size)

    vmem = pl.BlockSpec(memory_space=pltpu.MemorySpace.VMEM)
    q = pl.pallas_call(
        kernel,
        out_shape=jax.ShapeDtypeStruct((B, out_dim), jnp.float32),
        in_specs=[vmem] * 12,
        out_specs=vmem,
        scratch_shapes=[pltpu.VMEM((OH2 * OW2 * B, k2c * k2c * 32), jnp.float32)],
    )(xmat,
      params["w1"], params["b1"],
      params["w2"], params["b2"],
      params["w3"], params["b3"],
      params["wsh"], params["bsh"],
      params["whd"], params["bhd"],
      sup)
    return q


# ------------------------- plain-JAX reference (validation) ------------------------ #

def mario_net_reference(raw, x, support, out_dim, atom_size):
    """Pure-JAX reference with the same bf16-operand / f32-accumulate policy as the kernel."""
    bf16, f32 = jnp.bfloat16, jnp.float32
    dn = ("NCHW", "OIHW", "NCHW")

    def conv_relu(inp, w, b, stride):
        out = jax.lax.conv_general_dilated(
            inp.astype(bf16), w.astype(bf16), (stride, stride), "VALID",
            dimension_numbers=dn, preferred_element_type=f32)
        return jnp.maximum(out + b.reshape(1, -1, 1, 1), 0.0)

    y = conv_relu(x, raw["c1_w"] / 255.0, raw["c1_b"], 4)   # 1/255 folded into conv1 weight
    y = conv_relu(y, raw["c2_w"], raw["c2_b"], 2)
    y = conv_relu(y, raw["c3_w"], raw["c3_b"], 1)
    feat = y.reshape(y.shape[0], -1)
    shared = jnp.maximum(
        jnp.dot(feat.astype(bf16), raw["sh_w"].T.astype(bf16),
                preferred_element_type=f32) + raw["sh_b"], 0.0)
    adv = jnp.dot(shared.astype(bf16), raw["adv_w"].T.astype(bf16),
                  preferred_element_type=f32) + raw["adv_b"]
    val = jnp.dot(shared.astype(bf16), raw["val_w"].T.astype(bf16),
                  preferred_element_type=f32) + raw["val_b"]
    adv = adv.reshape(-1, out_dim, atom_size)
    val = val.reshape(-1, 1, atom_size)
    q_atoms = val + adv - adv.mean(axis=1, keepdims=True)
    dist = jax.nn.softmax(q_atoms, axis=-1)
    dist = jnp.maximum(dist, 0.001)
    return jnp.sum(dist * support.reshape(1, 1, -1), axis=2)


# -------------------------------------- main --------------------------------------- #

if __name__ == "__main__":
    key = jax.random.PRNGKey(0)
    k_param, k_x = jax.random.split(key)

    # 4 stacked 36x36 frames, 5 actions, 51 atoms (C51). Conv stack: 36 -> 8 -> 3 -> 1.
    input_shape = (4, 36, 36)
    batch = 2
    out_dim = 5
    atom_size = 51
    support = jnp.linspace(-10.0, 10.0, atom_size, dtype=jnp.float32)

    params, raw = make_params(k_param, input_shape, out_dim, atom_size)
    x = jax.random.uniform(k_x, (batch,) + input_shape, jnp.float32, 0.0, 255.0)

    fwd = jax.jit(functools.partial(mario_net_forward, out_dim=out_dim, atom_size=atom_size))
    q = jax.block_until_ready(fwd(params, x, support))

    ref_fn = jax.jit(functools.partial(mario_net_reference, out_dim=out_dim, atom_size=atom_size))
    q_ref = jax.block_until_ready(ref_fn(raw, x, support))

    assert q.shape == (batch, out_dim)
    assert bool(jnp.all(jnp.isfinite(q)))
    max_err = float(jnp.max(jnp.abs(q - q_ref)))
    assert max_err < 0.05, f"kernel disagrees with JAX reference: max abs err = {max_err}"
    print("KERNEL_OK")
</pallas_src>

<mosaic_0001>
module attributes {stable_mosaic.version = 11 : i64} {
  func.func @_mario_fused_kernel(%arg0: memref<128x256xbf16, #tpu.memory_space<vmem>>, %arg1: memref<256x32xbf16, #tpu.memory_space<vmem>>, %arg2: memref<1x32xf32, #tpu.memory_space<vmem>>, %arg3: memref<512x64xbf16, #tpu.memory_space<vmem>>, %arg4: memref<1x64xf32, #tpu.memory_space<vmem>>, %arg5: memref<576x64xbf16, #tpu.memory_space<vmem>>, %arg6: memref<1x64xf32, #tpu.memory_space<vmem>>, %arg7: memref<64x512xbf16, #tpu.memory_space<vmem>>, %arg8: memref<1x512xf32, #tpu.memory_space<vmem>>, %arg9: memref<512x306xbf16, #tpu.memory_space<vmem>>, %arg10: memref<1x306xf32, #tpu.memory_space<vmem>>, %arg11: memref<1x51xf32, #tpu.memory_space<vmem>>, %arg12: memref<2x5xf32, #tpu.memory_space<vmem>>, %arg13: memref<18x512xf32, #tpu.memory_space<vmem>>) attributes {dimension_semantics = [], scalar_prefetch = 0 : i64, scratch_operands = 1 : i64, tpu.core_type = #tpu.core_type<tc>} {
    %c0 = arith.constant 0 : index
    %c0_0 = arith.constant 0 : index
    %0 = vector.load %arg0[%c0, %c0_0] : memref<128x256xbf16, #tpu.memory_space<vmem>>, vector<128x256xbf16>
    %c0_1 = arith.constant 0 : index
    %c0_2 = arith.constant 0 : index
    %1 = vector.load %arg1[%c0_1, %c0_2] : memref<256x32xbf16, #tpu.memory_space<vmem>>, vector<256x32xbf16>
    %cst = arith.constant dense<0.000000e+00> : vector<128x32xf32>
    %2 = tpu.matmul %0, %1, %cst {dimension_numbers = #tpu.dot_dimension_numbers<[1], [0], [0], [1], [0, 0, 1, 1], [], []>} : vector<128x256xbf16>, vector<256x32xbf16>, vector<128x32xf32> -> vector<128x32xf32>
    %c0_3 = arith.constant 0 : index
    %c0_4 = arith.constant 0 : index
    %3 = vector.load %arg2[%c0_3, %c0_4] : memref<1x32xf32, #tpu.memory_space<vmem>>, vector<1x32xf32>
    %4 = vector.broadcast %3 : vector<1x32xf32> to vector<128x32xf32>
    %5 = arith.addf %2, %4 : vector<128x32xf32>
    %cst_5 = arith.constant 0.000000e+00 : f32
    %6 = vector.broadcast %cst_5 : f32 to vector<128x32xf32>
    %7 = arith.maximumf %5, %6 : vector<128x32xf32>
    %8 = vector.extract_strided_slice %7 {offsets = [0, 0], sizes = [2, 32], strides = [1, 1]} : vector<128x32xf32> to vector<2x32xf32>
    %9 = vector.extract_strided_slice %7 {offsets = [2, 0], sizes = [2, 32], strides = [1, 1]} : vector<128x32xf32> to vector<2x32xf32>
    %10 = vector.extract_strided_slice %7 {offsets = [4, 0], sizes = [2, 32], strides = [1, 1]} : vector<128x32xf32> to vector<2x32xf32>
    %11 = vector.extract_strided_slice %7 {offsets = [6, 0], sizes = [2, 32], strides = [1, 1]} : vector<128x32xf32> to vector<2x32xf32>
    %12 = vector.extract_strided_slice %7 {offsets = [16, 0], sizes = [2, 32], strides = [1, 1]} : vector<128x32xf32> to vector<2x32xf32>
    %13 = vector.extract_strided_slice %7 {offsets = [18, 0], sizes = [2, 32], strides = [1, 1]} : vector<128x32xf32> to vector<2x32xf32>
    %14 = vector.extract_strided_slice %7 {offsets = [20, 0], sizes = [2, 32], strides = [1, 1]} : vector<128x32xf32> to vector<2x32xf32>
    %15 = vector.extract_strided_slice %7 {offsets = [22, 0], sizes = [2, 32], strides = [1, 1]} : vector<128x32xf32> to vector<2x32xf32>
    %16 = vector.extract_strided_slice %7 {offsets = [32, 0], sizes = [2, 32], strides = [1, 1]} : vector<128x32xf32> to vector<2x32xf32>
    %17 = vector.extract_strided_slice %7 {offsets = [34, 0], sizes = [2, 32], strides = [1, 1]} : vector<128x32xf32> to vector<2x32xf32>
    %18 = vector.extract_strided_slice %7 {offsets = [36, 0], sizes = [2, 32], strides = [1, 1]} : vector<128x32xf32> to vector<2x32xf32>
    %19 = vector.extract_strided_slice %7 {offsets = [38, 0], sizes = [2, 32], strides = [1, 1]} : vector<128x32xf32> to vector<2x32xf32>
    %20 = vector.extract_strided_slice %7 {offsets = [48, 0], sizes = [2, 32], strides = [1, 1]} : vector<128x32xf32> to vector<2x32xf32>
    %21 = vector.extract_strided_slice %7 {offsets = [50, 0], sizes = [2, 32], strides = [1, 1]} : vector<128x32xf32> to vector<2x32xf32>
    %22 = vector.extract_strided_slice %7 {offsets = [52, 0], sizes = [2, 32], strides = [1, 1]} : vector<128x32xf32> to vector<2x32xf32>
    %23 = vector.extract_strided_slice %7 {offsets = [54, 0], sizes = [2, 32], strides = [1, 1]} : vector<128x32xf32> to vector<2x32xf32>
    %24 = tpu.concatenate %8, %9, %10, %11, %12, %13, %14, %15, %16, %17, %18, %19, %20, %21, %22, %23 in 1 : vector<2x32xf32>, vector<2x32xf32>, vector<2x32xf32>, vector<2x32xf32>, vector<2x32xf32>, vector<2x32xf32>, vector<2x32xf32>, vector<2x32xf32>, vector<2x32xf32>, vector<2x32xf32>, vector<2x32xf32>, vector<2x32xf32>, vector<2x32xf32>, vector<2x32xf32>, vector<2x32xf32>, vector<2x32xf32> -> vector<2x512xf32>
    %c0_6 = arith.constant 0 : index
    %c0_7 = arith.constant 0 : index
    %25 = vector.load %arg13[%c0_6, %c0_7] : memref<18x512xf32, #tpu.memory_space<vmem>>, vector<2x512xf32>
    tpu.vector_store %arg13[%c0_6, %c0_7], %24 {strides = array<i32>} : memref<18x512xf32, #tpu.memory_space<vmem>>, vector<2x512xf32>,
    %26 = vector.extract_strided_slice %7 {offsets = [4, 0], sizes = [2, 32], strides = [1, 1]} : vector<128x32xf32> to vector<2x32xf32>
    %27 = vector.extract_strided_slice %7 {offsets = [6, 0], sizes = [2, 32], strides = [1, 1]} : vector<128x32xf32> to vector<2x32xf32>
    %28 = vector.extract_strided_slice %7 {offsets = [8, 0], sizes = [2, 32], strides = [1, 1]} : vector<128x32xf32> to vector<2x32xf32>
    %29 = vector.extract_strided_slice %7 {offsets = [10, 0], sizes = [2, 32], strides = [1, 1]} : vector<128x32xf32> to vector<2x32xf32>
    %30 = vector.extract_strided_slice %7 {offsets = [20, 0], sizes = [2, 32], strides = [1, 1]} : vector<128x32xf32> to vector<2x32xf32>
    %31 = vector.extract_strided_slice %7 {offsets = [22, 0], sizes = [2, 32], strides = [1, 1]} : vector<128x32xf32> to vector<2x32xf32>
    %32 = vector.extract_strided_slice %7 {offsets = [24, 0], sizes = [2, 32], strides = [1, 1]} : vector<128x32xf32> to vector<2x32xf32>
    %33 = vector.extract_strided_slice %7 {offsets = [26, 0], sizes = [2, 32], strides = [1, 1]} : vector<128x32xf32> to vector<2x32xf32>
    %34 = vector.extract_strided_slice %7 {offsets = [36, 0], sizes = [2, 32], strides = [1, 1]} : vector<128x32xf32> to vector<2x32xf32>
    %35 = vector.extract_strided_slice %7 {offsets = [38, 0], sizes = [2, 32], strides = [1, 1]} : vector<128x32xf32> to vector<2x32xf32>
    %36 = vector.extract_strided_slice %7 {offsets = [40, 0], sizes = [2, 32], strides = [1, 1]} : vector<128x32xf32> to vector<2x32xf32>
    %37 = vector.extract_strided_slice %7 {offsets = [42, 0], sizes = [2, 32], strides = [1, 1]} : vector<128x32xf32> to vector<2x32xf32>
    %38 = vector.extract_strided_slice %7 {offsets = [52, 0], sizes = [2, 32], strides = [1, 1]} : vector<128x32xf32> to vector<2x32xf32>
    %39 = vector.extract_strided_slice %7 {offsets = [54, 0], sizes = [2, 32], strides = [1, 1]} : vector<128x32xf32> to vector<2x32xf32>
    %40 = vector.extract_strided_slice %7 {offsets = [56, 0], sizes = [2, 32], strides = [1, 1]} : vector<128x32xf32> to vector<2x32xf32>
    %41 = vector.extract_strided_slice %7 {offsets = [58, 0], sizes = [2, 32], strides = [1, 1]} : vector<128x32xf32> to vector<2x32xf32>
    %42 = tpu.concatenate %26, %27, %28, %29, %30, %31, %32, %33, %34, %35, %36, %37, %38, %39, %40, %41 in 1 : vector<2x32xf32>, vector<2x32xf32>, vector<2x32xf32>, vector<2x32xf32>, vector<2x32xf32>, vector<2x32xf32>, vector<2x32xf32>, vector<2x32xf32>, vector<2x32xf32>, vector<2x32xf32>, vector<2x32xf32>, vector<2x32xf32>, vector<2x32xf32>, vector<2x32xf32>, vector<2x32xf32>, vector<2x32xf32> -> vector<2x512xf32>
    %c2 = arith.constant 2 : index
    %c0_8 = arith.constant 0 : index
    %43 = vector.load %arg13[%c2, %c0_8] : memref<18x512xf32, #tpu.memory_space<vmem>>, vector<2x512xf32>
    tpu.vector_store %arg13[%c2, %c0_8], %42 {strides = array<i32>} : memref<18x512xf32, #tpu.memory_space<vmem>>, vector<2x512xf32>,
    %44 = vector.extract_strided_slice %7 {offsets = [8, 0], sizes = [2, 32], strides = [1, 1]} : vector<128x32xf32> to vector<2x32xf32>
    %45 = vector.extract_strided_slice %7 {offsets = [10, 0], sizes = [2, 32], strides = [1, 1]} : vector<128x32xf32> to vector<2x32xf32>
    %46 = vector.extract_strided_slice %7 {offsets = [12, 0], sizes = [2, 32], strides = [1, 1]} : vector<128x32xf32> to vector<2x32xf32>
    %47 = vector.extract_strided_slice %7 {offsets = [14, 0], sizes = [2, 32], strides = [1, 1]} : vector<128x32xf32> to vector<2x32xf32>
    %48 = vector.extract_strided_slice %7 {offsets = [24, 0], sizes = [2, 32], strides = [1, 1]} : vector<128x32xf32> to vector<2x32xf32>
    %49 = vector.extract_strided_slice %7 {offsets = [26, 0], sizes = [2, 32], strides = [1, 1]} : vector<128x32xf32> to vector<2x32xf32>
    %50 = vector.extract_strided_slice %7 {offsets = [28, 0], sizes = [2, 32], strides = [1, 1]} : vector<128x32xf32> to vector<2x32xf32>
    %51 = vector.extract_strided_slice %7 {offsets = [30, 0], sizes = [2, 32], strides = [1, 1]} : vector<128x32xf32> to vector<2x32xf32>
    %52 = vector.extract_strided_slice %7 {offsets = [40, 0], sizes = [2, 32], strides = [1, 1]} : vector<128x32xf32> to vector<2x32xf32>
    %53 = vector.extract_strided_slice %7 {offsets = [42, 0], sizes = [2, 32], strides = [1, 1]} : vector<128x32xf32> to vector<2x32xf32>
    %54 = vector.extract_strided_slice %7 {offsets = [44, 0], sizes = [2, 32], strides = [1, 1]} : vector<128x32xf32> to vector<2x32xf32>
    %55 = vector.extract_strided_slice %7 {offsets = [46, 0], sizes = [2, 32], strides = [1, 1]} : vector<128x32xf32> to vector<2x32xf32>
    %56 = vector.extract_strided_slice %7 {offsets = [56, 0], sizes = [2, 32], strides = [1, 1]} : vector<128x32xf32> to vector<2x32xf32>
    %57 = vector.extract_strided_slice %7 {offsets = [58, 0], sizes = [2, 32], strides = [1, 1]} : vector<128x32xf32> to vector<2x32xf32>
    %58 = vector.extract_strided_slice %7 {offsets = [60, 0], sizes = [2, 32], strides = [1, 1]} : vector<128x32xf32> to vector<2x32xf32>
    %59 = vector.extract_strided_slice %7 {offsets = [62, 0], sizes = [2, 32], strides = [1, 1]} : vector<128x32xf32> to vector<2x32xf32>
    %60 = tpu.concatenate %44, %45, %46, %47, %48, %49, %50, %51, %52, %53, %54, %55, %56, %57, %58, %59 in 1 : vector<2x32xf32>, vector<2x32xf32>, vector<2x32xf32>, vector<2x32xf32>, vector<2x32xf32>, vector<2x32xf32>, vector<2x32xf32>, vector<2x32xf32>, vector<2x32xf32>, vector<2x32xf32>, vector<2x32xf32>, vector<2x32xf32>, vector<2x32xf32>, vector<2x32xf32>, vector<2x32xf32>, vector<2x32xf32> -> vector<2x512xf32>
    %c4 = arith.constant 4 : index
    %c0_9 = arith.constant 0 : index
    %61 = vector.load %arg13[%c4, %c0_9] : memref<18x512xf32, #tpu.memory_space<vmem>>, vector<2x512xf32>
    tpu.vector_store %arg13[%c4, %c0_9], %60 {strides = array<i32>} : memref<18x512xf32, #tpu.memory_space<vmem>>, vector<2x512xf32>,
    %62 = vector.extract_strided_slice %7 {offsets = [32, 0], sizes = [2, 32], strides = [1, 1]} : vector<128x32xf32> to vector<2x32xf32>
    %63 = vector.extract_strided_slice %7 {offsets = [34, 0], sizes = [2, 32], strides = [1, 1]} : vector<128x32xf32> to vector<2x32xf32>
    %64 = vector.extract_strided_slice %7 {offsets = [36, 0], sizes = [2, 32], strides = [1, 1]} : vector<128x32xf32> to vector<2x32xf32>
    %65 = vector.extract_strided_slice %7 {offsets = [38, 0], sizes = [2, 32], strides = [1, 1]} : vector<128x32xf32> to vector<2x32xf32>
    %66 = vector.extract_strided_slice %7 {offsets = [48, 0], sizes = [2, 32], strides = [1, 1]} : vector<128x32xf32> to vector<2x32xf32>
    %67 = vector.extract_strided_slice %7 {offsets = [50, 0], sizes = [2, 32], strides = [1, 1]} : vector<128x32xf32> to vector<2x32xf32>
    %68 = vector.extract_strided_slice %7 {offsets = [52, 0], sizes = [2, 32], strides = [1, 1]} : vector<128x32xf32> to vector<2x32xf32>
    %69 = vector.extract_strided_slice %7 {offsets = [54, 0], sizes = [2, 32], strides = [1, 1]} : vector<128x32xf32> to vector<2x32xf32>
    %70 = vector.extract_strided_slice %7 {offsets = [64, 0], sizes = [2, 32], strides = [1, 1]} : vector<128x32xf32> to vector<2x32xf32>
    %71 = vector.extract_strided_slice %7 {offsets = [66, 0], sizes = [2, 32], strides = [1, 1]} : vector<128x32xf32> to vector<2x32xf32>
    %72 = vector.extract_strided_slice %7 {offsets = [68, 0], sizes = [2, 32], strides = [1, 1]} : vector<128x32xf32> to vector<2x32xf32>
    %73 = vector.extract_strided_slice %7 {offsets = [70, 0], sizes = [2, 32], strides = [1, 1]} : vector<128x32xf32> to vector<2x32xf32>
    %74 = vector.extract_strided_slice %7 {offsets = [80, 0], sizes = [2, 32], strides = [1, 1]} : vector<128x32xf32> to vector<2x32xf32>
    %75 = vector.extract_strided_slice %7 {offsets = [82, 0], sizes = [2, 32], strides = [1, 1]} : vector<128x32xf32> to vector<2x32xf32>
    %76 = vector.extract_strided_slice %7 {offsets = [84, 0], sizes = [2, 32], strides = [1, 1]} : vector<128x32xf32> to vector<2x32xf32>
    %77 = vector.extract_strided_slice %7 {offsets = [86, 0], sizes = [2, 32], strides = [1, 1]} : vector<128x32xf32> to vector<2x32xf32>
    %78 = tpu.concatenate %62, %63, %64, %65, %66, %67, %68, %69, %70, %71, %72, %73, %74, %75, %76, %77 in 1 : vector<2x32xf32>, vector<2x32xf32>, vector<2x32xf32>, vector<2x32xf32>, vector<2x32xf32>, vector<2x32xf32>, vector<2x32xf32>, vector<2x32xf32>, vector<2x32xf32>, vector<2x32xf32>, vector<2x32xf32>, vector<2x32xf32>, vector<2x32xf32>, vector<2x32xf32>, vector<2x32xf32>, vector<2x32xf32> -> vector<2x512xf32>
    %c6 = arith.constant 6 : index
    %c0_10 = arith.constant 0 : index
    %79 = vector.load %arg13[%c6, %c0_10] : memref<18x512xf32, #tpu.memory_space<vmem>>, vector<2x512xf32>
    tpu.vector_store %arg13[%c6, %c0_10], %78 {strides = array<i32>} : memref<18x512xf32, #tpu.memory_space<vmem>>, vector<2x512xf32>,
    %80 = vector.extract_strided_slice %7 {offsets = [36, 0], sizes = [2, 32], strides = [1, 1]} : vector<128x32xf32> to vector<2x32xf32>
    %81 = vector.extract_strided_slice %7 {offsets = [38, 0], sizes = [2, 32], strides = [1, 1]} : vector<128x32xf32> to vector<2x32xf32>
    %82 = vector.extract_strided_slice %7 {offsets = [40, 0], sizes = [2, 32], strides = [1, 1]} : vector<128x32xf32> to vector<2x32xf32>
    %83 = vector.extract_strided_slice %7 {offsets = [42, 0], sizes = [2, 32], strides = [1, 1]} : vector<128x32xf32> to vector<2x32xf32>
    %84 = vector.extract_strided_slice %7 {offsets = [52, 0], sizes = [2, 32], strides = [1, 1]} : vector<128x32xf32> to vector<2x32xf32>
    %85 = vector.extract_strided_slice %7 {offsets = [54, 0], sizes = [2, 32], strides = [1, 1]} : vector<128x32xf32> to vector<2x32xf32>
    %86 = vector.extract_strided_slice %7 {offsets = [56, 0], sizes = [2, 32], strides = [1, 1]} : vector<128x32xf32> to vector<2x32xf32>
    %87 = vector.extract_strided_slice %7 {offsets = [58, 0], sizes = [2, 32], strides = [1, 1]} : vector<128x32xf32> to vector<2x32xf32>
    %88 = vector.extract_strided_slice %7 {offsets = [68, 0], sizes = [2, 32], strides = [1, 1]} : vector<128x32xf32> to vector<2x32xf32>
    %89 = vector.extract_strided_slice %7 {offsets = [70, 0], sizes = [2, 32], strides = [1, 1]} : vector<128x32xf32> to vector<2x32xf32>
    %90 = vector.extract_strided_slice %7 {offsets = [72, 0], sizes = [2, 32], strides = [1, 1]} : vector<128x32xf32> to vector<2x32xf32>
    %91 = vector.extract_strided_slice %7 {offsets = [74, 0], sizes = [2, 32], strides = [1, 1]} : vector<128x32xf32> to vector<2x32xf32>
    %92 = vector.extract_strided_slice %7 {offsets = [84, 0], sizes = [2, 32], strides = [1, 1]} : vector<128x32xf32> to vector<2x32xf32>
    %93 = vector.extract_strided_slice %7 {offsets = [86, 0], sizes = [2, 32], strides = [1, 1]} : vector<128x32xf32> to vector<2x32xf32>
    %94 = vector.extract_strided_slice %7 {offsets = [88, 0], sizes = [2, 32], strides = [1, 1]} : vector<128x32xf32> to vector<2x32xf32>
    %95 = vector.extract_strided_slice %7 {offsets = [90, 0], sizes = [2, 32], strides = [1, 1]} : vector<128x32xf32> to vector<2x32xf32>
    %96 = tpu.concatenate %80, %81, %82, %83, %84, %85, %86, %87, %88, %89, %90, %91, %92, %93, %94, %95 in 1 : vector<2x32xf32>, vector<2x32xf32>, vector<2x32xf32>, vector<2x32xf32>, vector<2x32xf32>, vector<2x32xf32>, vector<2x32xf32>, vector<2x32xf32>, vector<2x32xf32>, vector<2x32xf32>, vector<2x32xf32>, vector<2x32xf32>, vector<2x32xf32>, vector<2x32xf32>, vector<2x32xf32>, vector<2x32xf32> -> vector<2x512xf32>
    %c8 = arith.constant 8 : index
    %c0_11 = arith.constant 0 : index
    %97 = vector.load %arg13[%c8, %c0_11] : memref<18x512xf32, #tpu.memory_space<vmem>>, vector<2x512xf32>
    tpu.vector_store %arg13[%c8, %c0_11], %96 {strides = array<i32>} : memref<18x512xf32, #tpu.memory_space<vmem>>, vector<2x512xf32>,
    %98 = vector.extract_strided_slice %7 {offsets = [40, 0], sizes = [2, 32], strides = [1, 1]} : vector<128x32xf32> to vector<2x32xf32>
    %99 = vector.extract_strided_slice %7 {offsets = [42, 0], sizes = [2, 32], strides = [1, 1]} : vector<128x32xf32> to vector<2x32xf32>
    %100 = vector.extract_strided_slice %7 {offsets = [44, 0], sizes = [2, 32], strides = [1, 1]} : vector<128x32xf32> to vector<2x32xf32>
    %101 = vector.extract_strided_slice %7 {offsets = [46, 0], sizes = [2, 32], strides = [1, 1]} : vector<128x32xf32> to vector<2x32xf32>
    %102 = vector.extract_strided_slice %7 {offsets = [56, 0], sizes = [2, 32], strides = [1, 1]} : vector<128x32xf32> to vector<2x32xf32>
    %103 = vector.extract_strided_slice %7 {offsets = [58, 0], sizes = [2, 32], strides = [1, 1]} : vector<128x32xf32> to vector<2x32xf32>
    %104 = vector.extract_strided_slice %7 {offsets = [60, 0], sizes = [2, 32], strides = [1, 1]} : vector<128x32xf32> to vector<2x32xf32>
    %105 = vector.extract_strided_slice %7 {offsets = [62, 0], sizes = [2, 32], strides = [1, 1]} : vector<128x32xf32> to vector<2x32xf32>
    %106 = vector.extract_strided_slice %7 {offsets = [72, 0], sizes = [2, 32], strides = [1, 1]} : vector<128x32xf32> to vector<2x32xf32>
    %107 = vector.extract_strided_slice %7 {offsets = [74, 0], sizes = [2, 32], strides = [1, 1]} : vector<128x32xf32> to vector<2x32xf32>
    %108 = vector.extract_strided_slice %7 {offsets = [76, 0], sizes = [2, 32], strides = [1, 1]} : vector<128x32xf32> to vector<2x32xf32>
    %109 = vector.extract_strided_slice %7 {offsets = [78, 0], sizes = [2, 32], strides = [1, 1]} : vector<128x32xf32> to vector<2x32xf32>
    %110 = vector.extract_strided_slice %7 {offsets = [88, 0], sizes = [2, 32], strides = [1, 1]} : vector<128x32xf32> to vector<2x32xf32>
    %111 = vector.extract_strided_slice %7 {offsets = [90, 0], sizes = [2, 32], strides = [1, 1]} : vector<128x32xf32> to vector<2x32xf32>
    %112 = vector.extract_strided_slice %7 {offsets = [92, 0], sizes = [2, 32], strides = [1, 1]} : vector<128x32xf32> to vector<2x32xf32>
    %113 = vector.extract_strided_slice %7 {offsets = [94, 0], sizes = [2, 32], strides = [1, 1]} : vector<128x32xf32> to vector<2x32xf32>
    %114 = tpu.concatenate %98, %99, %100, %101, %102, %103, %104, %105, %106, %107, %108, %109, %110, %111, %112, %113 in 1 : vector<2x32xf32>, vector<2x32xf32>, vector<2x32xf32>, vector<2x32xf32>, vector<2x32xf32>, vector<2x32xf32>, vector<2x32xf32>, vector<2x32xf32>, vector<2x32xf32>, vector<2x32xf32>, vector<2x32xf32>, vector<2x32xf32>, vector<2x32xf32>, vector<2x32xf32>, vector<2x32xf32>, vector<2x32xf32> -> vector<2x512xf32>
    %c10 = arith.constant 10 : index
    %c0_12 = arith.constant 0 : index
    %115 = vector.load %arg13[%c10, %c0_12] : memref<18x512xf32, #tpu.memory_space<vmem>>, vector<2x512xf32>
    tpu.vector_store %arg13[%c10, %c0_12], %114 {strides = array<i32>} : memref<18x512xf32, #tpu.memory_space<vmem>>, vector<2x512xf32>,
    %116 = vector.extract_strided_slice %7 {offsets = [64, 0], sizes = [2, 32], strides = [1, 1]} : vector<128x32xf32> to vector<2x32xf32>
    %117 = vector.extract_strided_slice %7 {offsets = [66, 0], sizes = [2, 32], strides = [1, 1]} : vector<128x32xf32> to vector<2x32xf32>
    %118 = vector.extract_strided_slice %7 {offsets = [68, 0], sizes = [2, 32], strides = [1, 1]} : vector<128x32xf32> to vector<2x32xf32>
    %119 = vector.extract_strided_slice %7 {offsets = [70, 0], sizes = [2, 32], strides = [1, 1]} : vector<128x32xf32> to vector<2x32xf32>
    %120 = vector.extract_strided_slice %7 {offsets = [80, 0], sizes = [2, 32], strides = [1, 1]} : vector<128x32xf32> to vector<2x32xf32>
    %121 = vector.extract_strided_slice %7 {offsets = [82, 0], sizes = [2, 32], strides = [1, 1]} : vector<128x32xf32> to vector<2x32xf32>
    %122 = vector.extract_strided_slice %7 {offsets = [84, 0], sizes = [2, 32], strides = [1, 1]} : vector<128x32xf32> to vector<2x32xf32>
    %123 = vector.extract_strided_slice %7 {offsets = [86, 0], sizes = [2, 32], strides = [1, 1]} : vector<128x32xf32> to vector<2x32xf32>
    %124 = vector.extract_strided_slice %7 {offsets = [96, 0], sizes = [2, 32], strides = [1, 1]} : vector<128x32xf32> to vector<2x32xf32>
    %125 = vector.extract_strided_slice %7 {offsets = [98, 0], sizes = [2, 32], strides = [1, 1]} : vector<128x32xf32> to vector<2x32xf32>
    %126 = vector.extract_strided_slice %7 {offsets = [100, 0], sizes = [2, 32], strides = [1, 1]} : vector<128x32xf32> to vector<2x32xf32>
    %127 = vector.extract_strided_slice %7 {offsets = [102, 0], sizes = [2, 32], strides = [1, 1]} : vector<128x32xf32> to vector<2x32xf32>
    %128 = vector.extract_strided_slice %7 {offsets = [112, 0], sizes = [2, 32], strides = [1, 1]} : vector<128x32xf32> to vector<2x32xf32>
    %129 = vector.extract_strided_slice %7 {offsets = [114, 0], sizes = [2, 32], strides = [1, 1]} : vector<128x32xf32> to vector<2x32xf32>
    %130 = vector.extract_strided_slice %7 {offsets = [116, 0], sizes = [2, 32], strides = [1, 1]} : vector<128x32xf32> to vector<2x32xf32>
    %131 = vector.extract_strided_slice %7 {offsets = [118, 0], sizes = [2, 32], strides = [1, 1]} : vector<128x32xf32> to vector<2x32xf32>
    %132 = tpu.concatenate %116, %117, %118, %119, %120, %121, %122, %123, %124, %125, %126, %127, %128, %129, %130, %131 in 1 : vector<2x32xf32>, vector<2x32xf32>, vector<2x32xf32>, vector<2x32xf32>, vector<2x32xf32>, vector<2x32xf32>, vector<2x32xf32>, vector<2x32xf32>, vector<2x32xf32>, vector<2x32xf32>, vector<2x32xf32>, vector<2x32xf32>, vector<2x32xf32>, vector<2x32xf32>, vector<2x32xf32>, vector<2x32xf32> -> vector<2x512xf32>
    %c12 = arith.constant 12 : index
    %c0_13 = arith.constant 0 : index
    %133 = vector.load %arg13[%c12, %c0_13] : memref<18x512xf32, #tpu.memory_space<vmem>>, vector<2x512xf32>
    tpu.vector_store %arg13[%c12, %c0_13], %132 {strides = array<i32>} : memref<18x512xf32, #tpu.memory_space<vmem>>, vector<2x512xf32>,
    %134 = vector.extract_strided_slice %7 {offsets = [68, 0], sizes = [2, 32], strides = [1, 1]} : vector<128x32xf32> to vector<2x32xf32>
    %135 = vector.extract_strided_slice %7 {offsets = [70, 0], sizes = [2, 32], strides = [1, 1]} : vector<128x32xf32> to vector<2x32xf32>
    %136 = vector.extract_strided_slice %7 {offsets = [72, 0], sizes = [2, 32], strides = [1, 1]} : vector<128x32xf32> to vector<2x32xf32>
    %137 = vector.extract_strided_slice %7 {offsets = [74, 0], sizes = [2, 32], strides = [1, 1]} : vector<128x32xf32> to vector<2x32xf32>
    %138 = vector.extract_strided_slice %7 {offsets = [84, 0], sizes = [2, 32], strides = [1, 1]} : vector<128x32xf32> to vector<2x32xf32>
    %139 = vector.extract_strided_slice %7 {offsets = [86, 0], sizes = [2, 32], strides = [1, 1]} : vector<128x32xf32> to vector<2x32xf32>
    %140 = vector.extract_strided_slice %7 {offsets = [88, 0], sizes = [2, 32], strides = [1, 1]} : vector<128x32xf32> to vector<2x32xf32>
    %141 = vector.extract_strided_slice %7 {offsets = [90, 0], sizes = [2, 32], strides = [1, 1]} : vector<128x32xf32> to vector<2x32xf32>
    %142 = vector.extract_strided_slice %7 {offsets = [100, 0], sizes = [2, 32], strides = [1, 1]} : vector<128x32xf32> to vector<2x32xf32>
    %143 = vector.extract_strided_slice %7 {offsets = [102, 0], sizes = [2, 32], strides = [1, 1]} : vector<128x32xf32> to vector<2x32xf32>
    %144 = vector.extract_strided_slice %7 {offsets = [104, 0], sizes = [2, 32], strides = [1, 1]} : vector<128x32xf32> to vector<2x32xf32>
    %145 = vector.extract_strided_slice %7 {offsets = [106, 0], sizes = [2, 32], strides = [1, 1]} : vector<128x32xf32> to vector<2x32xf32>
    %146 = vector.extract_strided_slice %7 {offsets = [116, 0], sizes = [2, 32], strides = [1, 1]} : vector<128x32xf32> to vector<2x32xf32>
    %147 = vector.extract_strided_slice %7 {offsets = [118, 0], sizes = [2, 32], strides = [1, 1]} : vector<128x32xf32> to vector<2x32xf32>
    %148 = vector.extract_strided_slice %7 {offsets = [120, 0], sizes = [2, 32], strides = [1, 1]} : vector<128x32xf32> to vector<2x32xf32>
    %149 = vector.extract_strided_slice %7 {offsets = [122, 0], sizes = [2, 32], strides = [1, 1]} : vector<128x32xf32> to vector<2x32xf32>
    %150 = tpu.concatenate %134, %135, %136, %137, %138, %139, %140, %141, %142, %143, %144, %145, %146, %147, %148, %149 in 1 : vector<2x32xf32>, vector<2x32xf32>, vector<2x32xf32>, vector<2x32xf32>, vector<2x32xf32>, vector<2x32xf32>, vector<2x32xf32>, vector<2x32xf32>, vector<2x32xf32>, vector<2x32xf32>, vector<2x32xf32>, vector<2x32xf32>, vector<2x32xf32>, vector<2x32xf32>, vector<2x32xf32>, vector<2x32xf32> -> vector<2x512xf32>
    %c14 = arith.constant 14 : index
    %c0_14 = arith.constant 0 : index
    %151 = vector.load %arg13[%c14, %c0_14] : memref<18x512xf32, #tpu.memory_space<vmem>>, vector<2x512xf32>
    tpu.vector_store %arg13[%c14, %c0_14], %150 {strides = array<i32>} : memref<18x512xf32, #tpu.memory_space<vmem>>, vector<2x512xf32>,
    %152 = vector.extract_strided_slice %7 {offsets = [72, 0], sizes = [2, 32], strides = [1, 1]} : vector<128x32xf32> to vector<2x32xf32>
    %153 = vector.extract_strided_slice %7 {offsets = [74, 0], sizes = [2, 32], strides = [1, 1]} : vector<128x32xf32> to vector<2x32xf32>
    %154 = vector.extract_strided_slice %7 {offsets = [76, 0], sizes = [2, 32], strides = [1, 1]} : vector<128x32xf32> to vector<2x32xf32>
    %155 = vector.extract_strided_slice %7 {offsets = [78, 0], sizes = [2, 32], strides = [1, 1]} : vector<128x32xf32> to vector<2x32xf32>
    %156 = vector.extract_strided_slice %7 {offsets = [88, 0], sizes = [2, 32], strides = [1, 1]} : vector<128x32xf32> to vector<2x32xf32>
    %157 = vector.extract_strided_slice %7 {offsets = [90, 0], sizes = [2, 32], strides = [1, 1]} : vector<128x32xf32> to vector<2x32xf32>
    %158 = vector.extract_strided_slice %7 {offsets = [92, 0], sizes = [2, 32], strides = [1, 1]} : vector<128x32xf32> to vector<2x32xf32>
    %159 = vector.extract_strided_slice %7 {offsets = [94, 0], sizes = [2, 32], strides = [1, 1]} : vector<128x32xf32> to vector<2x32xf32>
    %160 = vector.extract_strided_slice %7 {offsets = [104, 0], sizes = [2, 32], strides = [1, 1]} : vector<128x32xf32> to vector<2x32xf32>
    %161 = vector.extract_strided_slice %7 {offsets = [106, 0], sizes = [2, 32], strides = [1, 1]} : vector<128x32xf32> to vector<2x32xf32>
    %162 = vector.extract_strided_slice %7 {offsets = [108, 0], sizes = [2, 32], strides = [1, 1]} : vector<128x32xf32> to vector<2x32xf32>
    %163 = vector.extract_strided_slice %7 {offsets = [110, 0], sizes = [2, 32], strides = [1, 1]} : vector<128x32xf32> to vector<2x32xf32>
    %164 = vector.extract_strided_slice %7 {offsets = [120, 0], sizes = [2, 32], strides = [1, 1]} : vector<128x32xf32> to vector<2x32xf32>
    %165 = vector.extract_strided_slice %7 {offsets = [122, 0], sizes = [2, 32], strides = [1, 1]} : vector<128x32xf32> to vector<2x32xf32>
    %166 = vector.extract_strided_slice %7 {offsets = [124, 0], sizes = [2, 32], strides = [1, 1]} : vector<128x32xf32> to vector<2x32xf32>
    %167 = vector.extract_strided_slice %7 {offsets = [126, 0], sizes = [2, 32], strides = [1, 1]} : vector<128x32xf32> to vector<2x32xf32>
    %168 = tpu.concatenate %152, %153, %154, %155, %156, %157, %158, %159, %160, %161, %162, %163, %164, %165, %166, %167 in 1 : vector<2x32xf32>, vector<2x32xf32>, vector<2x32xf32>, vector<2x32xf32>, vector<2x32xf32>, vector<2x32xf32>, vector<2x32xf32>, vector<2x32xf32>, vector<2x32xf32>, vector<2x32xf32>, vector<2x32xf32>, vector<2x32xf32>, vector<2x32xf32>, vector<2x32xf32>, vector<2x32xf32>, vector<2x32xf32> -> vector<2x512xf32>
    %c16 = arith.constant 16 : index
    %c0_15 = arith.constant 0 : index
    %169 = vector.load %arg13[%c16, %c0_15] : memref<18x512xf32, #tpu.memory_space<vmem>>, vector<2x512xf32>
    tpu.vector_store %arg13[%c16, %c0_15], %168 {strides = array<i32>} : memref<18x512xf32, #tpu.memory_space<vmem>>, vector<2x512xf32>,
    %c0_16 = arith.constant 0 : index
    %c0_17 = arith.constant 0 : index
    %170 = vector.load %arg13[%c0_16, %c0_17] : memref<18x512xf32, #tpu.memory_space<vmem>>, vector<18x512xf32>
    %171 = arith.truncf %170 : vector<18x512xf32> to vector<18x512xbf16>
    %c0_18 = arith.constant 0 : index
    %c0_19 = arith.constant 0 : index
    %172 = vector.load %arg3[%c0_18, %c0_19] : memref<512x64xbf16, #tpu.memory_space<vmem>>, vector<512x64xbf16>
    %cst_20 = arith.constant dense<0.000000e+00> : vector<18x64xf32>
    %173 = tpu.matmul %171, %172, %cst_20 {dimension_numbers = #tpu.dot_dimension_numbers<[1], [0], [0], [1], [0, 0, 1, 1], [], []>} : vector<18x512xbf16>, vector<512x64xbf16>, vector<18x64xf32> -> vector<18x64xf32>
    %c0_21 = arith.constant 0 : index
    %c0_22 = arith.constant 0 : index
    %174 = vector.load %arg4[%c0_21, %c0_22] : memref<1x64xf32, #tpu.memory_space<vmem>>, vector<1x64xf32>
    %175 = vector.broadcast %174 : vector<1x64xf32> to vector<18x64xf32>
    %176 = arith.addf %173, %175 : vector<18x64xf32>
    %cst_23 = arith.constant 0.000000e+00 : f32
    %177 = vector.broadcast %cst_23 : f32 to vector<18x64xf32>
    %178 = arith.maximumf %176, %177 : vector<18x64xf32>
    %179 = vector.extract_strided_slice %178 {offsets = [0, 0], sizes = [2, 64], strides = [1, 1]} : vector<18x64xf32> to vector<2x64xf32>
    %180 = vector.extract_strided_slice %178 {offsets = [2, 0], sizes = [2, 64], strides = [1, 1]} : vector<18x64xf32> to vector<2x64xf32>
    %181 = vector.extract_strided_slice %178 {offsets = [4, 0], sizes = [2, 64], strides = [1, 1]} : vector<18x64xf32> to vector<2x64xf32>
    %182 = vector.extract_strided_slice %178 {offsets = [6, 0], sizes = [2, 64], strides = [1, 1]} : vector<18x64xf32> to vector<2x64xf32>
    %183 = vector.extract_strided_slice %178 {offsets = [8, 0], sizes = [2, 64], strides = [1, 1]} : vector<18x64xf32> to vector<2x64xf32>
    %184 = vector.extract_strided_slice %178 {offsets = [10, 0], sizes = [2, 64], strides = [1, 1]} : vector<18x64xf32> to vector<2x64xf32>
    %185 = vector.extract_strided_slice %178 {offsets = [12, 0], sizes = [2, 64], strides = [1, 1]} : vector<18x64xf32> to vector<2x64xf32>
    %186 = vector.extract_strided_slice %178 {offsets = [14, 0], sizes = [2, 64], strides = [1, 1]} : vector<18x64xf32> to vector<2x64xf32>
    %187 = vector.extract_strided_slice %178 {offsets = [16, 0], sizes = [2, 64], strides = [1, 1]} : vector<18x64xf32> to vector<2x64xf32>
    %188 = tpu.concatenate %179, %180, %181, %182, %183, %184, %185, %186, %187 in 1 : vector<2x64xf32>, vector<2x64xf32>, vector<2x64xf32>, vector<2x64xf32>, vector<2x64xf32>, vector<2x64xf32>, vector<2x64xf32>, vector<2x64xf32>, vector<2x64xf32> -> vector<2x576xf32>
    %189 = arith.truncf %188 : vector<2x576xf32> to vector<2x576xbf16>
    %c0_24 = arith.constant 0 : index
    %c0_25 = arith.constant 0 : index
    %190 = vector.load %arg5[%c0_24, %c0_25] : memref<576x64xbf16, #tpu.memory_space<vmem>>, vector<576x64xbf16>
    %cst_26 = arith.constant dense<0.000000e+00> : vector<2x64xf32>
    %191 = tpu.matmul %189, %190, %cst_26 {dimension_numbers = #tpu.dot_dimension_numbers<[1], [0], [0], [1], [0, 0, 1, 1], [], []>} : vector<2x576xbf16>, vector<576x64xbf16>, vector<2x64xf32> -> vector<2x64xf32>
    %c0_27 = arith.constant 0 : index
    %c0_28 = arith.constant 0 : index
    %192 = vector.load %arg6[%c0_27, %c0_28] : memref<1x64xf32, #tpu.memory_space<vmem>>, vector<1x64xf32>
    %193 = vector.broadcast %192 : vector<1x64xf32> to vector<2x64xf32>
    %194 = arith.addf %191, %193 : vector<2x64xf32>
    %cst_29 = arith.constant 0.000000e+00 : f32
    %195 = vector.broadcast %cst_29 : f32 to vector<2x64xf32>
    %196 = arith.maximumf %194, %195 : vector<2x64xf32>
    %197 = arith.truncf %196 : vector<2x64xf32> to vector<2x64xbf16>
    %c0_30 = arith.constant 0 : index
    %c0_31 = arith.constant 0 : index
    %198 = vector.load %arg7[%c0_30, %c0_31] : memref<64x512xbf16, #tpu.memory_space<vmem>>, vector<64x512xbf16>
    %cst_32 = arith.constant dense<0.000000e+00> : vector<2x512xf32>
    %199 = tpu.matmul %197, %198, %cst_32 {dimension_numbers = #tpu.dot_dimension_numbers<[1], [0], [0], [1], [0, 0, 1, 1], [], []>} : vector<2x64xbf16>, vector<64x512xbf16>, vector<2x512xf32> -> vector<2x512xf32>
    %c0_33 = arith.constant 0 : index
    %c0_34 = arith.constant 0 : index
    %200 = vector.load %arg8[%c0_33, %c0_34] : memref<1x512xf32, #tpu.memory_space<vmem>>, vector<1x512xf32>
    %201 = vector.broadcast %200 : vector<1x512xf32> to vector<2x512xf32>
    %202 = arith.addf %199, %201 : vector<2x512xf32>
    %cst_35 = arith.constant 0.000000e+00 : f32
    %203 = vector.broadcast %cst_35 : f32 to vector<2x512xf32>
    %204 = arith.maximumf %202, %203 : vector<2x512xf32>
    %205 = arith.truncf %204 : vector<2x512xf32> to vector<2x512xbf16>
    %c0_36 = arith.constant 0 : index
    %c0_37 = arith.constant 0 : index
    %206 = vector.load %arg9[%c0_36, %c0_37] : memref<512x306xbf16, #tpu.memory_space<vmem>>, vector<512x306xbf16>
    %cst_38 = arith.constant dense<0.000000e+00> : vector<2x306xf32>
    %207 = tpu.matmul %205, %206, %cst_38 {dimension_numbers = #tpu.dot_dimension_numbers<[1], [0], [0], [1], [0, 0, 1, 1], [], []>} : vector<2x512xbf16>, vector<512x306xbf16>, vector<2x306xf32> -> vector<2x306xf32>
    %c0_39 = arith.constant 0 : index
    %c0_40 = arith.constant 0 : index
    %208 = vector.load %arg10[%c0_39, %c0_40] : memref<1x306xf32, #tpu.memory_space<vmem>>, vector<1x306xf32>
    %209 = vector.broadcast %208 : vector<1x306xf32> to vector<2x306xf32>
    %210 = arith.addf %207, %209 : vector<2x306xf32>
    %211 = vector.extract_strided_slice %210 {offsets = [0, 255], sizes = [2, 51], strides = [1, 1]} : vector<2x306xf32> to vector<2x51xf32>
    %212 = vector.extract_strided_slice %210 {offsets = [0, 0], sizes = [2, 51], strides = [1, 1]} : vector<2x306xf32> to vector<2x51xf32>
    %213 = vector.extract_strided_slice %210 {offsets = [0, 51], sizes = [2, 51], strides = [1, 1]} : vector<2x306xf32> to vector<2x51xf32>
    %214 = vector.extract_strided_slice %210 {offsets = [0, 102], sizes = [2, 51], strides = [1, 1]} : vector<2x306xf32> to vector<2x51xf32>
    %215 = vector.extract_strided_slice %210 {offsets = [0, 153], sizes = [2, 51], strides = [1, 1]} : vector<2x306xf32> to vector<2x51xf32>
    %216 = vector.extract_strided_slice %210 {offsets = [0, 204], sizes = [2, 51], strides = [1, 1]} : vector<2x306xf32> to vector<2x51xf32>
    %217 = arith.addf %212, %213 : vector<2x51xf32>
    %218 = arith.addf %217, %214 : vector<2x51xf32>
    %219 = arith.addf %218, %215 : vector<2x51xf32>
    %220 = arith.addf %219, %216 : vector<2x51xf32>
    %cst_41 = arith.constant 2.000000e-01 : f32
    %221 = vector.broadcast %cst_41 : f32 to vector<2x51xf32>
    %222 = arith.mulf %220, %221 : vector<2x51xf32>
    %c0_42 = arith.constant 0 : index
    %c0_43 = arith.constant 0 : index
    %223 = vector.load %arg11[%c0_42, %c0_43] : memref<1x51xf32, #tpu.memory_space<vmem>>, vector<1x51xf32>
    %224 = arith.addf %211, %212 : vector<2x51xf32>
    %225 = arith.subf %224, %222 : vector<2x51xf32>
    %cst_44 = arith.constant dense<0xFF800000> : vector<2xf32>
    %226 = vector.multi_reduction <maximumf>, %225, %cst_44 [1] : vector<2x51xf32> to vector<2xf32>
    %227 = vector.shape_cast %226 : vector<2xf32> to vector<2x1xf32>
    %228 = vector.broadcast %227 : vector<2x1xf32> to vector<2x51xf32>
    %229 = arith.subf %225, %228 : vector<2x51xf32>
    %230 = math.exp %229 : vector<2x51xf32>
    %cst_45 = arith.constant dense<0.000000e+00> : vector<2xf32>
    %231 = vector.multi_reduction <add>, %230, %cst_45 [1] : vector<2x51xf32> to vector<2xf32>
    %232 = vector.shape_cast %231 : vector<2xf32> to vector<2x1xf32>
    %233 = vector.broadcast %232 : vector<2x1xf32> to vector<2x51xf32>
    %234 = arith.divf %230, %233 : vector<2x51xf32>
    %cst_46 = arith.constant 1.000000e-03 : f32
    %235 = vector.broadcast %cst_46 : f32 to vector<2x51xf32>
    %236 = arith.maximumf %234, %235 : vector<2x51xf32>
    %237 = vector.broadcast %223 : vector<1x51xf32> to vector<2x51xf32>
    %238 = arith.mulf %236, %237 : vector<2x51xf32>
    %cst_47 = arith.constant dense<0.000000e+00> : vector<2xf32>
    %239 = vector.multi_reduction <add>, %238, %cst_47 [1] : vector<2x51xf32> to vector<2xf32>
    %240 = vector.shape_cast %239 : vector<2xf32> to vector<2x1xf32>
    %241 = arith.addf %211, %213 : vector<2x51xf32>
    %242 = arith.subf %241, %222 : vector<2x51xf32>
    %cst_48 = arith.constant dense<0xFF800000> : vector<2xf32>
    %243 = vector.multi_reduction <maximumf>, %242, %cst_48 [1] : vector<2x51xf32> to vector<2xf32>
    %244 = vector.shape_cast %243 : vector<2xf32> to vector<2x1xf32>
    %245 = vector.broadcast %244 : vector<2x1xf32> to vector<2x51xf32>
    %246 = arith.subf %242, %245 : vector<2x51xf32>
    %247 = math.exp %246 : vector<2x51xf32>
    %cst_49 = arith.constant dense<0.000000e+00> : vector<2xf32>
    %248 = vector.multi_reduction <add>, %247, %cst_49 [1] : vector<2x51xf32> to vector<2xf32>
    %249 = vector.shape_cast %248 : vector<2xf32> to vector<2x1xf32>
    %250 = vector.broadcast %249 : vector<2x1xf32> to vector<2x51xf32>
    %251 = arith.divf %247, %250 : vector<2x51xf32>
    %cst_50 = arith.constant 1.000000e-03 : f32
    %252 = vector.broadcast %cst_50 : f32 to vector<2x51xf32>
    %253 = arith.maximumf %251, %252 : vector<2x51xf32>
    %254 = vector.broadcast %223 : vector<1x51xf32> to vector<2x51xf32>
    %255 = arith.mulf %253, %254 : vector<2x51xf32>
    %cst_51 = arith.constant dense<0.000000e+00> : vector<2xf32>
    %256 = vector.multi_reduction <add>, %255, %cst_51 [1] : vector<2x51xf32> to vector<2xf32>
    %257 = vector.shape_cast %256 : vector<2xf32> to vector<2x1xf32>
    %258 = arith.addf %211, %214 : vector<2x51xf32>
    %259 = arith.subf %258, %222 : vector<2x51xf32>
    %cst_52 = arith.constant dense<0xFF800000> : vector<2xf32>
    %260 = vector.multi_reduction <maximumf>, %259, %cst_52 [1] : vector<2x51xf32> to vector<2xf32>
    %261 = vector.shape_cast %260 : vector<2xf32> to vector<2x1xf32>
    %262 = vector.broadcast %261 : vector<2x1xf32> to vector<2x51xf32>
    %263 = arith.subf %259, %262 : vector<2x51xf32>
    %264 = math.exp %263 : vector<2x51xf32>
    %cst_53 = arith.constant dense<0.000000e+00> : vector<2xf32>
    %265 = vector.multi_reduction <add>, %264, %cst_53 [1] : vector<2x51xf32> to vector<2xf32>
    %266 = vector.shape_cast %265 : vector<2xf32> to vector<2x1xf32>
    %267 = vector.broadcast %266 : vector<2x1xf32> to vector<2x51xf32>
    %268 = arith.divf %264, %267 : vector<2x51xf32>
    %cst_54 = arith.constant 1.000000e-03 : f32
    %269 = vector.broadcast %cst_54 : f32 to vector<2x51xf32>
    %270 = arith.maximumf %268, %269 : vector<2x51xf32>
    %271 = vector.broadcast %223 : vector<1x51xf32> to vector<2x51xf32>
    %272 = arith.mulf %270, %271 : vector<2x51xf32>
    %cst_55 = arith.constant dense<0.000000e+00> : vector<2xf32>
    %273 = vector.multi_reduction <add>, %272, %cst_55 [1] : vector<2x51xf32> to vector<2xf32>
    %274 = vector.shape_cast %273 : vector<2xf32> to vector<2x1xf32>
    %275 = arith.addf %211, %215 : vector<2x51xf32>
    %276 = arith.subf %275, %222 : vector<2x51xf32>
    %cst_56 = arith.constant dense<0xFF800000> : vector<2xf32>
    %277 = vector.multi_reduction <maximumf>, %276, %cst_56 [1] : vector<2x51xf32> to vector<2xf32>
    %278 = vector.shape_cast %277 : vector<2xf32> to vector<2x1xf32>
    %279 = vector.broadcast %278 : vector<2x1xf32> to vector<2x51xf32>
    %280 = arith.subf %276, %279 : vector<2x51xf32>
    %281 = math.exp %280 : vector<2x51xf32>
    %cst_57 = arith.constant dense<0.000000e+00> : vector<2xf32>
    %282 = vector.multi_reduction <add>, %281, %cst_57 [1] : vector<2x51xf32> to vector<2xf32>
    %283 = vector.shape_cast %282 : vector<2xf32> to vector<2x1xf32>
    %284 = vector.broadcast %283 : vector<2x1xf32> to vector<2x51xf32>
    %285 = arith.divf %281, %284 : vector<2x51xf32>
    %cst_58 = arith.constant 1.000000e-03 : f32
    %286 = vector.broadcast %cst_58 : f32 to vector<2x51xf32>
    %287 = arith.maximumf %285, %286 : vector<2x51xf32>
    %288 = vector.broadcast %223 : vector<1x51xf32> to vector<2x51xf32>
    %289 = arith.mulf %287, %288 : vector<2x51xf32>
    %cst_59 = arith.constant dense<0.000000e+00> : vector<2xf32>
    %290 = vector.multi_reduction <add>, %289, %cst_59 [1] : vector<2x51xf32> to vector<2xf32>
    %291 = vector.shape_cast %290 : vector<2xf32> to vector<2x1xf32>
    %292 = arith.addf %211, %216 : vector<2x51xf32>
    %293 = arith.subf %292, %222 : vector<2x51xf32>
    %cst_60 = arith.constant dense<0xFF800000> : vector<2xf32>
    %294 = vector.multi_reduction <maximumf>, %293, %cst_60 [1] : vector<2x51xf32> to vector<2xf32>
    %295 = vector.shape_cast %294 : vector<2xf32> to vector<2x1xf32>
    %296 = vector.broadcast %295 : vector<2x1xf32> to vector<2x51xf32>
    %297 = arith.subf %293, %296 : vector<2x51xf32>
    %298 = math.exp %297 : vector<2x51xf32>
    %cst_61 = arith.constant dense<0.000000e+00> : vector<2xf32>
    %299 = vector.multi_reduction <add>, %298, %cst_61 [1] : vector<2x51xf32> to vector<2xf32>
    %300 = vector.shape_cast %299 : vector<2xf32> to vector<2x1xf32>
    %301 = vector.broadcast %300 : vector<2x1xf32> to vector<2x51xf32>
    %302 = arith.divf %298, %301 : vector<2x51xf32>
    %cst_62 = arith.constant 1.000000e-03 : f32
    %303 = vector.broadcast %cst_62 : f32 to vector<2x51xf32>
    %304 = arith.maximumf %302, %303 : vector<2x51xf32>
    %305 = vector.broadcast %223 : vector<1x51xf32> to vector<2x51xf32>
    %306 = arith.mulf %304, %305 : vector<2x51xf32>
    %cst_63 = arith.constant dense<0.000000e+00> : vector<2xf32>
    %307 = vector.multi_reduction <add>, %306, %cst_63 [1] : vector<2x51xf32> to vector<2xf32>
    %308 = vector.shape_cast %307 : vector<2xf32> to vector<2x1xf32>
    %309 = tpu.concatenate %240, %257, %274, %291, %308 in 1 : vector<2x1xf32>, vector<2x1xf32>, vector<2x1xf32>, vector<2x1xf32>, vector<2x1xf32> -> vector<2x5xf32>
    %c0_64 = arith.constant 0 : index
    %c0_65 = arith.constant 0 : index
    %310 = vector.load %arg12[%c0_64, %c0_65] : memref<2x5xf32, #tpu.memory_space<vmem>>, vector<2x5xf32>
    tpu.vector_store %arg12[%c0_64, %c0_65], %309 {strides = array<i32>} : memref<2x5xf32, #tpu.memory_space<vmem>>, vector<2x5xf32>,
    return
  }
}

</mosaic_0001>

<llo_original>
// kernel: mario_net_forward.1
$region0: #{mario_net_forward.1}
  #allocation0 [shape = 'u32[]', space=smem, size = 0x4, offset = 0x4, fixed_abs, tag = 'smem constant byte address 0x4 - core index']
  #allocation1 [shape = 'u32[144,128]{1,0:T(1,128)}', space=vmem, size = 0x12000, scoped, tag = 'internal scratch']
  #allocation2 [shape = 'f32[18,512]{1,0:T(8,128)}', space=vmem, size = 0xc000, scoped, tag = 'scratch operand']
  %s0 = inlined_call_operand.vmem [shape: bf16[128,256], index: 0, kind: input, shape index: {}]
  %s1 = inlined_call_operand.vmem [shape: bf16[256,32], index: 1, kind: input, shape index: {}]
  %s2 = inlined_call_operand.vmem [shape: f32[1,32], index: 2, kind: input, shape index: {}]
  %s3 = inlined_call_operand.vmem [shape: bf16[512,64], index: 3, kind: input, shape index: {}]
  %s4 = inlined_call_operand.vmem [shape: f32[1,64], index: 4, kind: input, shape index: {}]
  %s5 = inlined_call_operand.vmem [shape: bf16[576,64], index: 5, kind: input, shape index: {}]
  %s6 = inlined_call_operand.vmem [shape: f32[1,64], index: 6, kind: input, shape index: {}]
  %s7 = inlined_call_operand.vmem [shape: bf16[64,512], index: 7, kind: input, shape index: {}]
  %s8 = inlined_call_operand.vmem [shape: f32[1,512], index: 8, kind: input, shape index: {}]
  %s9 = inlined_call_operand.vmem [shape: bf16[512,306], index: 9, kind: input, shape index: {}]
  %s10 = inlined_call_operand.vmem [shape: f32[1,306], index: 10, kind: input, shape index: {}]
  %s11 = inlined_call_operand.vmem [shape: f32[1,51], index: 11, kind: input, shape index: {}]
  %s12 = inlined_call_operand.hbm [shape: f32[2,5], index: 12, kind: output, shape index: {}]
  %s13 = sld [smem:[#allocation0]]
  $region58: #{mario_net_forward.1} parent=0
    _
  %s15 = ssub.s32 1, %s13
  %s16 = scalar_select 0, %s15, %s13
  $region1: #{mario_net_forward.1} parent=0
    #allocation3 [shape = 'u8[1024]{0}', space=vmem, size = 0x400, scoped, tag = 'output window, operand 0, single buffered']
    #allocation4 [shape = 's32[1]{0}', space=sflag, size = 0x4, scoped, tag = 'scoped memory for mario_net_forward.1']
    %17 = vsyncpa [#allocation4], 0
    // Predicated region
    $region2: #{mario_net_forward.1} parent=1 // pred_check
      _
    $region3: #{mario_net_forward.1} parent=1 // pred_check_branch
      %19 = sbr.rel (0) target = $region5
    $region4: #{mario_net_forward.1} parent=1 // pred_region
      _
    $region5: #{mario_net_forward.1} parent=1 // pred_fallthru
      _
    // Predicated region
    $region6: #{mario_net_forward.1} parent=1 // pred_check
      _
    $region7: #{mario_net_forward.1} parent=1 // pred_check_branch
      %21 = sbr.rel (0) target = $region9
    $region8: #{mario_net_forward.1} parent=1 // pred_region
      _
    $region9: #{mario_net_forward.1} parent=1 // pred_fallthru
      _
    // Predicated region
    $region10: #{mario_net_forward.1} parent=1 // pred_check
      _
    $region11: #{mario_net_forward.1} parent=1 // pred_check_branch
      %23 = sbr.rel (0) target = $region13
    $region12: #{mario_net_forward.1} parent=1 // pred_region
      _
    $region13: #{mario_net_forward.1} parent=1 // pred_fallthru
      _
    // Predicated region
    $region14: #{mario_net_forward.1} parent=1 // pred_check
      _
    $region15: #{mario_net_forward.1} parent=1 // pred_check_branch
      %25 = sbr.rel (0) target = $region17
    $region16: #{mario_net_forward.1} parent=1 // pred_region
      _
    $region17: #{mario_net_forward.1} parent=1 // pred_fallthru
      _
    // Predicated region
    $region18: #{mario_net_forward.1} parent=1 // pred_check
      _
    $region19: #{mario_net_forward.1} parent=1 // pred_check_branch
      %27 = sbr.rel (0) target = $region21
    $region20: #{mario_net_forward.1} parent=1 // pred_region
      _
    $region21: #{mario_net_forward.1} parent=1 // pred_fallthru
      _
    // Predicated region
    $region22: #{mario_net_forward.1} parent=1 // pred_check
      _
    $region23: #{mario_net_forward.1} parent=1 // pred_check_branch
      %29 = sbr.rel (0) target = $region25
    $region24: #{mario_net_forward.1} parent=1 // pred_region
      _
    $region25: #{mario_net_forward.1} parent=1 // pred_fallthru
      _
    // Predicated region
    $region26: #{mario_net_forward.1} parent=1 // pred_check
      _
    $region27: #{mario_net_forward.1} parent=1 // pred_check_branch
      %31 = sbr.rel (0) target = $region29
    $region28: #{mario_net_forward.1} parent=1 // pred_region
      _
    $region29: #{mario_net_forward.1} parent=1 // pred_fallthru
      _
    // Predicated region
    $region30: #{mario_net_forward.1} parent=1 // pred_check
      _
    $region31: #{mario_net_forward.1} parent=1 // pred_check_branch
      %33 = sbr.rel (0) target = $region33
    $region32: #{mario_net_forward.1} parent=1 // pred_region
      _
    $region33: #{mario_net_forward.1} parent=1 // pred_fallthru
      _
    // Predicated region
    $region34: #{mario_net_forward.1} parent=1 // pred_check
      _
    $region35: #{mario_net_forward.1} parent=1 // pred_check_branch
      %35 = sbr.rel (0) target = $region37
    $region36: #{mario_net_forward.1} parent=1 // pred_region
      _
    $region37: #{mario_net_forward.1} parent=1 // pred_fallthru
      _
    // Predicated region
    $region38: #{mario_net_forward.1} parent=1 // pred_check
      _
    $region39: #{mario_net_forward.1} parent=1 // pred_check_branch
      %37 = sbr.rel (0) target = $region41
    $region40: #{mario_net_forward.1} parent=1 // pred_region
      _
    $region41: #{mario_net_forward.1} parent=1 // pred_fallthru
      _
    // Predicated region
    $region42: #{mario_net_forward.1} parent=1 // pred_check
      _
    $region43: #{mario_net_forward.1} parent=1 // pred_check_branch
      %39 = sbr.rel (0) target = $region45
    $region44: #{mario_net_forward.1} parent=1 // pred_region
      _
    $region45: #{mario_net_forward.1} parent=1 // pred_fallthru
      _
    // Predicated region
    $region46: #{mario_net_forward.1} parent=1 // pred_check
      _
    $region47: #{mario_net_forward.1} parent=1 // pred_check_branch
      %41 = sbr.rel (0) target = $region49
    $region48: #{mario_net_forward.1} parent=1 // pred_region
      _
    $region49: #{mario_net_forward.1} parent=1 // pred_fallthru
      _
    %v43 = vld [vmem:[%s0] sm:$0xff]
    %v44 = vld [vmem:[%s0 + $0x8] sm:$0xff]
    %v45 = vld [vmem:[%s0 + $0x10] sm:$0xff]
    %v46 = vld [vmem:[%s0 + $0x18] sm:$0xff]
    %v47 = vld [vmem:[%s0 + $0x20] sm:$0xff]
    %v48 = vld [vmem:[%s0 + $0x28] sm:$0xff]
    %v49 = vld [vmem:[%s0 + $0x30] sm:$0xff]
    %v50 = vld [vmem:[%s0 + $0x38] sm:$0xff]
    %v51 = vld [vmem:[%s0 + $0x40] sm:$0xff]
    %v52 = vld [vmem:[%s0 + $0x48] sm:$0xff]
    %v53 = vld [vmem:[%s0 + $0x50] sm:$0xff]
    %v54 = vld [vmem:[%s0 + $0x58] sm:$0xff]
    %v55 = vld [vmem:[%s0 + $0x60] sm:$0xff]
    %v56 = vld [vmem:[%s0 + $0x68] sm:$0xff]
    %v57 = vld [vmem:[%s0 + $0x70] sm:$0xff]
    %v58 = vld [vmem:[%s0 + $0x78] sm:$0xff]
    %v59 = vld [vmem:[%s1] sm:$0xf]
    %v60 = vld [vmem:[%s1 + $0x4] sm:$0xf]
    %v61 = vld [vmem:[%s1 + $0x8] sm:$0xf]
    %v62 = vld [vmem:[%s1 + $0xc] sm:$0xf]
    %v63 = vld [vmem:[%s1 + $0x10] sm:$0xf]
    %v64 = vld [vmem:[%s1 + $0x14] sm:$0xf]
    %v65 = vld [vmem:[%s1 + $0x18] sm:$0xf]
    %v66 = vld [vmem:[%s1 + $0x1c] sm:$0xf]
    %v67 = vld [vmem:[%s1 + $0x20] sm:$0xf]
    %v68 = vld [vmem:[%s1 + $0x24] sm:$0xf]
    %v69 = vld [vmem:[%s1 + $0x28] sm:$0xf]
    %v70 = vld [vmem:[%s1 + $0x2c] sm:$0xf]
    %v71 = vld [vmem:[%s1 + $0x30] sm:$0xf]
    %v72 = vld [vmem:[%s1 + $0x34] sm:$0xf]
    %v73 = vld [vmem:[%s1 + $0x38] sm:$0xf]
    %v74 = vld [vmem:[%s1 + $0x3c] sm:$0xf]
    %v75 = vld [vmem:[%s1 + $0x40] sm:$0xf]
    %v76 = vld [vmem:[%s1 + $0x44] sm:$0xf]
    %v77 = vld [vmem:[%s1 + $0x48] sm:$0xf]
    %v78 = vld [vmem:[%s1 + $0x4c] sm:$0xf]
    %v79 = vld [vmem:[%s1 + $0x50] sm:$0xf]
    %v80 = vld [vmem:[%s1 + $0x54] sm:$0xf]
    %v81 = vld [vmem:[%s1 + $0x58] sm:$0xf]
    %v82 = vld [vmem:[%s1 + $0x5c] sm:$0xf]
    %v83 = vld [vmem:[%s1 + $0x60] sm:$0xf]
    %v84 = vld [vmem:[%s1 + $0x64] sm:$0xf]
    %v85 = vld [vmem:[%s1 + $0x68] sm:$0xf]
    %v86 = vld [vmem:[%s1 + $0x6c] sm:$0xf]
    %v87 = vld [vmem:[%s1 + $0x70] sm:$0xf]
    %v88 = vld [vmem:[%s1 + $0x74] sm:$0xf]
    %v89 = vld [vmem:[%s1 + $0x78] sm:$0xf]
    %v90 = vld [vmem:[%s1 + $0x7c] sm:$0xf]
    %v91 = vld [vmem:[%s2] sm:$0x1]
    %v93 = vlaneseq
    %v94 = vshrl.u32 %v93, 7
    %v95 = vsub.s32 0, %v94
    %v96 = vrot.slane %v91, %v95
    %v114 = vunpack.c.l.b16 %v43
    %v115 = vunpack.c.h.b16 %v43
    %v116 = vunpack.c.l.b16 %v44
    %v117 = vunpack.c.h.b16 %v44
    %v118 = vunpack.c.l.b16 %v45
    %v119 = vunpack.c.h.b16 %v45
    %v120 = vunpack.c.l.b16 %v46
    %v121 = vunpack.c.h.b16 %v46
    %v122 = vunpack.c.l.b16 %v47
    %v123 = vunpack.c.h.b16 %v47
    %v124 = vunpack.c.l.b16 %v48
    %v125 = vunpack.c.h.b16 %v48
    %v126 = vunpack.c.l.b16 %v49
    %v127 = vunpack.c.h.b16 %v49
    %v128 = vunpack.c.l.b16 %v50
    %v129 = vunpack.c.h.b16 %v50
    %v130 = vunpack.c.l.b16 %v51
    %v131 = vunpack.c.h.b16 %v51
    %v132 = vunpack.c.l.b16 %v52
    %v133 = vunpack.c.h.b16 %v52
    %v134 = vunpack.c.l.b16 %v53
    %v135 = vunpack.c.h.b16 %v53
    %v136 = vunpack.c.l.b16 %v54
    %v137 = vunpack.c.h.b16 %v54
    %v138 = vunpack.c.l.b16 %v55
    %v139 = vunpack.c.h.b16 %v55
    %v140 = vunpack.c.l.b16 %v56
    %v141 = vunpack.c.h.b16 %v56
    %v142 = vunpack.c.l.b16 %v57
    %v143 = vunpack.c.h.b16 %v57
    %v144 = vunpack.c.l.b16 %v58
    %v145 = vunpack.c.h.b16 %v58
    %v146 = vpack.c.b16 %v116, %v114
    %v147 = vpack.c.b16 %v117, %v115
    %v148 = vpack.c.b16 %v120, %v118
    %v149 = vpack.c.b16 %v121, %v119
    %v150 = vpack.c.b16 %v124, %v122
    %v151 = vpack.c.b16 %v125, %v123
    %v152 = vpack.c.b16 %v128, %v126
    %v153 = vpack.c.b16 %v129, %v127
    %v154 = vpack.c.b16 %v132, %v130
    %v155 = vpack.c.b16 %v133, %v131
    %v156 = vpack.c.b16 %v136, %v134
    %v157 = vpack.c.b16 %v137, %v135
    %v158 = vpack.c.b16 %v140, %v138
    %v159 = vpack.c.b16 %v141, %v139
    %v160 = vpack.c.b16 %v144, %v142
    %v161 = vpack.c.b16 %v145, %v143
    %v210 = vunpack.c.l.b16 %v59
    %v211 = vunpack.c.l.b16 %v60
    %v212 = vunpack.c.l.b16 %v61
    %v213 = vunpack.c.l.b16 %v62
    %v214 = vunpack.c.l.b16 %v63
    %v215 = vunpack.c.l.b16 %v64
    %v216 = vunpack.c.l.b16 %v65
    %v217 = vunpack.c.l.b16 %v66
    %v218 = vunpack.c.l.b16 %v67
    %v219 = vunpack.c.l.b16 %v68
    %v220 = vunpack.c.l.b16 %v69
    %v221 = vunpack.c.l.b16 %v70
    %v222 = vunpack.c.l.b16 %v71
    %v223 = vunpack.c.l.b16 %v72
    %v224 = vunpack.c.l.b16 %v73
    %v225 = vunpack.c.l.b16 %v74
    %v226 = vunpack.c.l.b16 %v75
    %v227 = vunpack.c.l.b16 %v76
    %v228 = vunpack.c.l.b16 %v77
    %v229 = vunpack.c.l.b16 %v78
    %v230 = vunpack.c.l.b16 %v79
    %v231 = vunpack.c.l.b16 %v80
    %v232 = vunpack.c.l.b16 %v81
    %v233 = vunpack.c.l.b16 %v82
    %v234 = vunpack.c.l.b16 %v83
    %v235 = vunpack.c.l.b16 %v84
    %v236 = vunpack.c.l.b16 %v85
    %v237 = vunpack.c.l.b16 %v86
    %v238 = vunpack.c.l.b16 %v87
    %v239 = vunpack.c.l.b16 %v88
    %v240 = vunpack.c.l.b16 %v89
    %v241 = vunpack.c.l.b16 %v90
    %v242 = vpack.c.b16 %v211, %v210
    %v243 = vpack.c.b16 %v213, %v212
    %v244 = vpack.c.b16 %v215, %v214
    %v245 = vpack.c.b16 %v217, %v216
    %v246 = vpack.c.b16 %v219, %v218
    %v247 = vpack.c.b16 %v221, %v220
    %v248 = vpack.c.b16 %v223, %v222
    %v249 = vpack.c.b16 %v225, %v224
    %v250 = vpack.c.b16 %v227, %v226
    %v251 = vpack.c.b16 %v229, %v228
    %v252 = vpack.c.b16 %v231, %v230
    %v253 = vpack.c.b16 %v233, %v232
    %v254 = vpack.c.b16 %v235, %v234
    %v255 = vpack.c.b16 %v237, %v236
    %v256 = vpack.c.b16 %v239, %v238
    %v257 = vpack.c.b16 %v241, %v240
    %274 = vmatprep.subr.bf16.mxu0 0
    %275 = vmatpush1.bf16.msra.mxu0 %v249
    %276 = vmatprep.subr.bf16.mxu0 0
    %277 = vmatpush1.bf16.msra.mxu0 %v248
    %278 = vmatprep.subr.bf16.mxu0 0
    %279 = vmatpush1.bf16.msra.mxu0 %v247
    %280 = vmatprep.subr.bf16.mxu0 0
    %281 = vmatpush1.bf16.msra.mxu0 %v246
    %282 = vmatprep.subr.bf16.mxu0 0
    %283 = vmatpush1.bf16.msra.mxu0 %v245
    %284 = vmatprep.subr.bf16.mxu0 0
    %285 = vmatpush1.bf16.msra.mxu0 %v244
    %286 = vmatprep.subr.bf16.mxu0 0
    %287 = vmatpush1.bf16.msra.mxu0 %v243
    %288 = vmatprep.subr.bf16.mxu0 0
    %289 = vmatpush1.bf16.msra.mxu0 %v242
    %290 = vmatprep.subr.bf16.mxu0 0
    %291 = vmatpush2.bf16.msra.mxu0 %v257
    %292 = vmatprep.subr.bf16.mxu0 0
    %293 = vmatpush2.bf16.msra.mxu0 %v256
    %294 = vmatprep.subr.bf16.mxu0 0
    %295 = vmatpush2.bf16.msra.mxu0 %v255
    %296 = vmatprep.subr.bf16.mxu0 0
    %297 = vmatpush2.bf16.msra.mxu0 %v254
    %298 = vmatprep.subr.bf16.mxu0 0
    %299 = vmatpush2.bf16.msra.mxu0 %v253
    %300 = vmatprep.subr.bf16.mxu0 0
    %301 = vmatpush2.bf16.msra.mxu0 %v252
    %302 = vmatprep.subr.bf16.mxu0 0
    %303 = vmatpush2.bf16.msra.mxu0 %v251
    %304 = vmatprep.subr.bf16.mxu0 0
    %305 = vmatpush2.bf16.msra.mxu0 %v250
    %306 = vmatprep.mubr.bf16.mxu0 %v147
    %307 = vmatmul.mubr.bf16.gmra.mxu0 %v146
    %v308 = vpop.f32.mrf.mxu0
    %v309 = vadd.f32 %v96, %v308
    %v310 = vpop.f32.mrf.mxu0
    %v311 = vpop.f32.mrf.mxu0
    %v312 = vadd.f32 %v96, %v311
    %v313 = vpop.f32.mrf.mxu0
    %314 = vmatprep.mubr.bf16.mxu0 %v149
    %315 = vmatmul.mubr.bf16.gmra.mxu0 %v148
    %v316 = vpop.f32.mrf.mxu0
    %v317 = vadd.f32 %v96, %v316
    %v318 = vpop.f32.mrf.mxu0
    %v319 = vpop.f32.mrf.mxu0
    %v320 = vadd.f32 %v96, %v319
    %v321 = vpop.f32.mrf.mxu0
    %322 = vmatprep.mubr.bf16.mxu0 %v151
    %323 = vmatmul.mubr.bf16.gmra.mxu0 %v150
    %v324 = vpop.f32.mrf.mxu0
    %v325 = vadd.f32 %v96, %v324
    %v326 = vpop.f32.mrf.mxu0
    %v327 = vpop.f32.mrf.mxu0
    %v328 = vadd.f32 %v96, %v327
    %v329 = vpop.f32.mrf.mxu0
    %330 = vmatprep.mubr.bf16.mxu0 %v153
    %331 = vmatmul.mubr.bf16.gmra.mxu0 %v152
    %v332 = vpop.f32.mrf.mxu0
    %v333 = vadd.f32 %v96, %v332
    %v334 = vpop.f32.mrf.mxu0
    %v335 = vpop.f32.mrf.mxu0
    %v336 = vadd.f32 %v96, %v335
    %v337 = vpop.f32.mrf.mxu0
    %338 = vmatprep.mubr.bf16.mxu0 %v155
    %339 = vmatmul.mubr.bf16.gmra.mxu0 %v154
    %v340 = vpop.f32.mrf.mxu0
    %v341 = vadd.f32 %v96, %v340
    %v342 = vpop.f32.mrf.mxu0
    %v343 = vpop.f32.mrf.mxu0
    %v344 = vadd.f32 %v96, %v343
    %v345 = vpop.f32.mrf.mxu0
    %346 = vmatprep.mubr.bf16.mxu0 %v157
    %347 = vmatmul.mubr.bf16.gmra.mxu0 %v156
    %v348 = vpop.f32.mrf.mxu0
    %v349 = vadd.f32 %v96, %v348
    %v350 = vpop.f32.mrf.mxu0
    %v351 = vpop.f32.mrf.mxu0
    %v352 = vadd.f32 %v96, %v351
    %v353 = vpop.f32.mrf.mxu0
    %354 = vmatprep.mubr.bf16.mxu0 %v159
    %355 = vmatmul.mubr.bf16.gmra.mxu0 %v158
    %v356 = vpop.f32.mrf.mxu0
    %v357 = vadd.f32 %v96, %v356
    %v358 = vpop.f32.mrf.mxu0
    %v359 = vpop.f32.mrf.mxu0
    %v360 = vadd.f32 %v96, %v359
    %v361 = vpop.f32.mrf.mxu0
    %362 = vmatprep.mubr.bf16.mxu0 %v161
    %363 = vmatmul.mubr.bf16.gmra.mxu0 %v160
    %v364 = vpop.f32.mrf.mxu0
    %v365 = vadd.f32 %v96, %v364
    %v366 = vpop.f32.mrf.mxu0
    %v367 = vpop.f32.mrf.mxu0
    %v368 = vadd.f32 %v96, %v367
    %v369 = vpop.f32.mrf.mxu0
    %370 = vdwg.mxu0
    %v371 = vmax.f32 %v309, 0.0
    %v372 = vmax.f32 %v312, 0.0
    %v373 = vmax.f32 %v317, 0.0
    %v374 = vmax.f32 %v320, 0.0
    %v375 = vmax.f32 %v325, 0.0
    %v376 = vmax.f32 %v328, 0.0
    %v377 = vmax.f32 %v333, 0.0
    %v378 = vmax.f32 %v336, 0.0
    %v379 = vmax.f32 %v341, 0.0
    %v380 = vmax.f32 %v344, 0.0
    %v381 = vmax.f32 %v349, 0.0
    %v382 = vmax.f32 %v352, 0.0
    %v383 = vmax.f32 %v357, 0.0
    %v384 = vmax.f32 %v360, 0.0
    %v385 = vmax.f32 %v365, 0.0
    %v386 = vmax.f32 %v368, 0.0
    %v388 = vrot.slane %v371, 2
    %389 = vrot.lane.b32.xlu0 %v388, 32
    %v390 = vpop.permute.xlu0 %389
    %v392 = vrot.slane %v371, 4
    %393 = vrot.lane.b32.xlu0 %v392, 64
    %v394 = vpop.permute.xlu0 %393
    %v396 = vrot.slane %v371, 6
    %397 = vrot.lane.b32.xlu0 %v396, 96
    %v398 = vpop.permute.xlu0 %397
    %v401 = vrot.slane %v373, 2
    %402 = vrot.lane.b32.xlu0 %v401, 32
    %v403 = vpop.permute.xlu0 %402
    %v405 = vrot.slane %v373, 4
    %406 = vrot.lane.b32.xlu0 %v405, 64
    %v407 = vpop.permute.xlu0 %406
    %v409 = vrot.slane %v373, 6
    %410 = vrot.lane.b32.xlu0 %v409, 96
    %v411 = vpop.permute.xlu0 %410
    %v414 = vrot.slane %v375, 2
    %415 = vrot.lane.b32.xlu0 %v414, 32
    %v416 = vpop.permute.xlu0 %415
    %v418 = vrot.slane %v375, 4
    %419 = vrot.lane.b32.xlu0 %v418, 64
    %v420 = vpop.permute.xlu0 %419
    %v422 = vrot.slane %v375, 6
    %423 = vrot.lane.b32.xlu0 %v422, 96
    %v424 = vpop.permute.xlu0 %423
    %v427 = vrot.slane %v377, 2
    %428 = vrot.lane.b32.xlu0 %v427, 32
    %v429 = vpop.permute.xlu0 %428
    %v431 = vrot.slane %v377, 4
    %432 = vrot.lane.b32.xlu0 %v431, 64
    %v433 = vpop.permute.xlu0 %432
    %v435 = vrot.slane %v377, 6
    %436 = vrot.lane.b32.xlu0 %v435, 96
    %v437 = vpop.permute.xlu0 %436
    %vm439 = vcmask 261120
    %v440 = vsel %vm439, %v371, %v390
    %vm441 = vcmask 523264
    %v442 = vsel %vm441, %v440, %v394
    %vm443 = vcmask 785408
    %v444 = vsel %vm443, %v442, %v398
    %v445 = vsel %vm439, %v373, %v403
    %v446 = vsel %vm441, %v445, %v407
    %v447 = vsel %vm443, %v446, %v411
    %v448 = vsel %vm439, %v375, %v416
    %v449 = vsel %vm441, %v448, %v420
    %v450 = vsel %vm443, %v449, %v424
    %v451 = vsel %vm439, %v377, %v429
    %v452 = vsel %vm441, %v451, %v433
    %v453 = vsel %vm443, %v452, %v437
    %454 = vst [vmem:[#allocation2] sm:$0x3] %v444
    %455 = vst [vmem:[#allocation2 + $0x8] sm:$0x3] %v447
    %456 = vst [vmem:[#allocation2 + $0x10] sm:$0x3] %v450
    %457 = vst [vmem:[#allocation2 + $0x18] sm:$0x3] %v453
    %v459 = vrot.slane %v372, 4
    %460 = vrot.lane.b32.xlu0 %v459, 64
    %v461 = vpop.permute.xlu0 %460
    %v463 = vrot.slane %v372, 6
    %464 = vrot.lane.b32.xlu0 %v463, 96
    %v465 = vpop.permute.xlu0 %464
    %v468 = vrot.slane %v374, 4
    %469 = vrot.lane.b32.xlu0 %v468, 64
    %v470 = vpop.permute.xlu0 %469
    %v472 = vrot.slane %v374, 6
    %473 = vrot.lane.b32.xlu0 %v472, 96
    %v474 = vpop.permute.xlu0 %473
    %v477 = vrot.slane %v376, 4
    %478 = vrot.lane.b32.xlu0 %v477, 64
    %v479 = vpop.permute.xlu0 %478
    %v481 = vrot.slane %v376, 6
    %482 = vrot.lane.b32.xlu0 %v481, 96
    %v483 = vpop.permute.xlu0 %482
    %v486 = vrot.slane %v378, 4
    %487 = vrot.lane.b32.xlu0 %v486, 64
    %v488 = vpop.permute.xlu0 %487
    %v490 = vrot.slane %v378, 6
    %491 = vrot.lane.b32.xlu0 %v490, 96
    %v492 = vpop.permute.xlu0 %491
    %v494 = vsel %vm441, %v440, %v461
    %v495 = vsel %vm443, %v494, %v465
    %v496 = vsel %vm441, %v445, %v470
    %v497 = vsel %vm443, %v496, %v474
    %v498 = vsel %vm441, %v448, %v479
    %v499 = vsel %vm443, %v498, %v483
    %v500 = vsel %vm441, %v451, %v488
    %v501 = vsel %vm443, %v500, %v492
    %v506 = vrot.slane %v495, 2
    %v507 = vrot.slane %v497, 2
    %v508 = vrot.slane %v499, 2
    %v509 = vrot.slane %v501, 2
    %514 = vst [vmem:[#allocation2] sm:$0xc] %v506
    %515 = vst [vmem:[#allocation2 + $0x8] sm:$0xc] %v507
    %516 = vst [vmem:[#allocation2 + $0x10] sm:$0xc] %v508
    %517 = vst [vmem:[#allocation2 + $0x18] sm:$0xc] %v509
    %v518 = vrot.slane %v372, 2
    %519 = vrot.lane.b32.xlu0 %v518, 32
    %v520 = vpop.permute.xlu0 %519
    %v522 = vrot.slane %v374, 2
    %523 = vrot.lane.b32.xlu0 %v522, 32
    %v524 = vpop.permute.xlu0 %523
    %v526 = vrot.slane %v376, 2
    %527 = vrot.lane.b32.xlu0 %v526, 32
    %v528 = vpop.permute.xlu0 %527
    %v530 = vrot.slane %v378, 2
    %531 = vrot.lane.b32.xlu0 %v530, 32
    %v532 = vpop.permute.xlu0 %531
    %v534 = vsel %vm439, %v372, %v520
    %v535 = vsel %vm441, %v534, %v461
    %v536 = vsel %vm443, %v535, %v465
    %v537 = vsel %vm439, %v374, %v524
    %v538 = vsel %vm441, %v537, %v470
    %v539 = vsel %vm443, %v538, %v474
    %v540 = vsel %vm439, %v376, %v528
    %v541 = vsel %vm441, %v540, %v479
    %v542 = vsel %vm443, %v541, %v483
    %v543 = vsel %vm439, %v378, %v532
    %v544 = vsel %vm441, %v543, %v488
    %v545 = vsel %vm443, %v544, %v492
    %v550 = vrot.slane %v536, 4
    %v551 = vrot.slane %v539, 4
    %v552 = vrot.slane %v542, 4
    %v553 = vrot.slane %v545, 4
    %558 = vst [vmem:[#allocation2] sm:$0x30] %v550
    %559 = vst [vmem:[#allocation2 + $0x8] sm:$0x30] %v551
    %560 = vst [vmem:[#allocation2 + $0x10] sm:$0x30] %v552
    %561 = vst [vmem:[#allocation2 + $0x18] sm:$0x30] %v553
    %v563 = vrot.slane %v379, 2
    %564 = vrot.lane.b32.xlu0 %v563, 32
    %v565 = vpop.permute.xlu0 %564
    %v567 = vrot.slane %v379, 4
    %568 = vrot.lane.b32.xlu0 %v567, 64
    %v569 = vpop.permute.xlu0 %568
    %v571 = vrot.slane %v379, 6
    %572 = vrot.lane.b32.xlu0 %v571, 96
    %v573 = vpop.permute.xlu0 %572
    %v576 = vrot.slane %v381, 2
    %577 = vrot.lane.b32.xlu0 %v576, 32
    %v578 = vpop.permute.xlu0 %577
    %v580 = vrot.slane %v381, 4
    %581 = vrot.lane.b32.xlu0 %v580, 64
    %v582 = vpop.permute.xlu0 %581
    %v584 = vrot.slane %v381, 6
    %585 = vrot.lane.b32.xlu0 %v584, 96
    %v586 = vpop.permute.xlu0 %585
    %v588 = vsel %vm439, %v379, %v565
    %v589 = vsel %vm441, %v588, %v569
    %v590 = vsel %vm443, %v589, %v573
    %v591 = vsel %vm439, %v381, %v578
    %v592 = vsel %vm441, %v591, %v582
    %v593 = vsel %vm443, %v592, %v586
    %v598 = vrot.slane %v450, 2
    %v599 = vrot.slane %v453, 2
    %v600 = vrot.slane %v590, 2
    %v601 = vrot.slane %v593, 2
    %606 = vst [vmem:[#allocation2] sm:$0xc0] %v598
    %607 = vst [vmem:[#allocation2 + $0x8] sm:$0xc0] %v599
    %608 = vst [vmem:[#allocation2 + $0x10] sm:$0xc0] %v600
    %609 = vst [vmem:[#allocation2 + $0x18] sm:$0xc0] %v601
    %v611 = vrot.slane %v380, 4
    %612 = vrot.lane.b32.xlu0 %v611, 64
    %v613 = vpop.permute.xlu0 %612
    %v615 = vrot.slane %v380, 6
    %616 = vrot.lane.b32.xlu0 %v615, 96
    %v617 = vpop.permute.xlu0 %616
    %v620 = vrot.slane %v382, 4
    %621 = vrot.lane.b32.xlu0 %v620, 64
    %v622 = vpop.permute.xlu0 %621
    %v624 = vrot.slane %v382, 6
    %625 = vrot.lane.b32.xlu0 %v624, 96
    %v626 = vpop.permute.xlu0 %625
    %v628 = vsel %vm441, %v588, %v613
    %v629 = vsel %vm443, %v628, %v617
    %v630 = vsel %vm441, %v591, %v622
    %v631 = vsel %vm443, %v630, %v626
    %v634 = vrot.slane %v499, 4
    %v635 = vrot.slane %v501, 4
    %v636 = vrot.slane %v629, 4
    %v637 = vrot.slane %v631, 4
    %642 = vst [vmem:[#allocation2 + $0x20] sm:$0x3] %v634
    %643 = vst [vmem:[#allocation2 + $0x28] sm:$0x3] %v635
    %644 = vst [vmem:[#allocation2 + $0x30] sm:$0x3] %v636
    %645 = vst [vmem:[#allocation2 + $0x38] sm:$0x3] %v637
    %v646 = vrot.slane %v380, 2
    %647 = vrot.lane.b32.xlu0 %v646, 32
    %v648 = vpop.permute.xlu0 %647
    %v650 = vrot.slane %v382, 2
    %651 = vrot.lane.b32.xlu0 %v650, 32
    %v652 = vpop.permute.xlu0 %651
    %v654 = vsel %vm439, %v380, %v648
    %v655 = vsel %vm441, %v654, %v613
    %v656 = vsel %vm443, %v655, %v617
    %v657 = vsel %vm439, %v382, %v652
    %v658 = vsel %vm441, %v657, %v622
    %v659 = vsel %vm443, %v658, %v626
    %v662 = vrot.slane %v542, 6
    %v663 = vrot.slane %v545, 6
    %v664 = vrot.slane %v656, 6
    %v665 = vrot.slane %v659, 6
    %670 = vst [vmem:[#allocation2 + $0x20] sm:$0xc] %v662
    %671 = vst [vmem:[#allocation2 + $0x28] sm:$0xc] %v663
    %672 = vst [vmem:[#allocation2 + $0x30] sm:$0xc] %v664
    %673 = vst [vmem:[#allocation2 + $0x38] sm:$0xc] %v665
    %v675 = vrot.slane %v383, 2
    %676 = vrot.lane.b32.xlu0 %v675, 32
    %v677 = vpop.permute.xlu0 %676
    %v679 = vrot.slane %v383, 4
    %680 = vrot.lane.b32.xlu0 %v679, 64
    %v681 = vpop.permute.xlu0 %680
    %v683 = vrot.slane %v383, 6
    %684 = vrot.lane.b32.xlu0 %v683, 96
    %v685 = vpop.permute.xlu0 %684
    %v688 = vrot.slane %v385, 2
    %689 = vrot.lane.b32.xlu0 %v688, 32
    %v690 = vpop.permute.xlu0 %689
    %v692 = vrot.slane %v385, 4
    %693 = vrot.lane.b32.xlu0 %v692, 64
    %v694 = vpop.permute.xlu0 %693
    %v696 = vrot.slane %v385, 6
    %697 = vrot.lane.b32.xlu0 %v696, 96
    %v698 = vpop.permute.xlu0 %697
    %v700 = vsel %vm439, %v383, %v677
    %v701 = vsel %vm441, %v700, %v681
    %v702 = vsel %vm443, %v701, %v685
    %v703 = vsel %vm439, %v385, %v690
    %v704 = vsel %vm441, %v703, %v694
    %v705 = vsel %vm443, %v704, %v698
    %v708 = vrot.slane %v590, 4
    %v709 = vrot.slane %v593, 4
    %v710 = vrot.slane %v702, 4
    %v711 = vrot.slane %v705, 4
    %716 = vst [vmem:[#allocation2 + $0x20] sm:$0x30] %v708
    %717 = vst [vmem:[#allocation2 + $0x28] sm:$0x30] %v709
    %718 = vst [vmem:[#allocation2 + $0x30] sm:$0x30] %v710
    %719 = vst [vmem:[#allocation2 + $0x38] sm:$0x30] %v711
    %v721 = vrot.slane %v384, 4
    %722 = vrot.lane.b32.xlu0 %v721, 64
    %v723 = vpop.permute.xlu0 %722
    %v725 = vrot.slane %v384, 6
    %726 = vrot.lane.b32.xlu0 %v725, 96
    %v727 = vpop.permute.xlu0 %726
    %v730 = vrot.slane %v386, 4
    %731 = vrot.lane.b32.xlu0 %v730, 64
    %v732 = vpop.permute.xlu0 %731
    %v734 = vrot.slane %v386, 6
    %735 = vrot.lane.b32.xlu0 %v734, 96
    %v736 = vpop.permute.xlu0 %735
    %v738 = vsel %vm441, %v700, %v723
    %v739 = vsel %vm443, %v738, %v727
    %v740 = vsel %vm441, %v703, %v732
    %v741 = vsel %vm443, %v740, %v736
    %v744 = vrot.slane %v629, 6
    %v745 = vrot.slane %v631, 6
    %v746 = vrot.slane %v739, 6
    %v747 = vrot.slane %v741, 6
    %752 = vst [vmem:[#allocation2 + $0x20] sm:$0xc0] %v744
    %753 = vst [vmem:[#allocation2 + $0x28] sm:$0xc0] %v745
    %754 = vst [vmem:[#allocation2 + $0x30] sm:$0xc0] %v746
    %755 = vst [vmem:[#allocation2 + $0x38] sm:$0xc0] %v747
    %v756 = vrot.slane %v384, 2
    %757 = vrot.lane.b32.xlu0 %v756, 32
    %v758 = vpop.permute.xlu0 %757
    %v760 = vrot.slane %v386, 2
    %761 = vrot.lane.b32.xlu0 %v760, 32
    %v762 = vpop.permute.xlu0 %761
    %v764 = vsel %vm439, %v384, %v758
    %v765 = vsel %vm441, %v764, %v723
    %v766 = vsel %vm443, %v765, %v727
    %v767 = vsel %vm439, %v386, %v762
    %v768 = vsel %vm441, %v767, %v732
    %v769 = vsel %vm443, %v768, %v736
    %770 = vst [vmem:[#allocation2 + $0x40] sm:$0x3] %v656
    %771 = vst [vmem:[#allocation2 + $0x48] sm:$0x3] %v659
    %772 = vst [vmem:[#allocation2 + $0x50] sm:$0x3] %v766
    %773 = vst [vmem:[#allocation2 + $0x58] sm:$0x3] %v769
    %v774 = vld [vmem:[#allocation2] sm:$0xff]
    %v775 = vld [vmem:[#allocation2 + $0x8] sm:$0xff]
    %v776 = vld [vmem:[#allocation2 + $0x10] sm:$0xff]
    %v777 = vld [vmem:[#allocation2 + $0x18] sm:$0xff]
    %v778 = vld [vmem:[#allocation2 + $0x20] sm:$0xff]
    %v779 = vld [vmem:[#allocation2 + $0x28] sm:$0xff]
    %v780 = vld [vmem:[#allocation2 + $0x30] sm:$0xff]
    %v781 = vld [vmem:[#allocation2 + $0x38] sm:$0xff]
    %v782 = vld [vmem:[#allocation2 + $0x40] sm:$0x3]
    %v783 = vld [vmem:[#allocation2 + $0x48] sm:$0x3]
    %v784 = vld [vmem:[#allocation2 + $0x50] sm:$0x3]
    %v785 = vld [vmem:[#allocation2 + $0x58] sm:$0x3]
    %v786 = vpack.c.bf16 %v778, %v774
    %v787 = vpack.c.bf16 %v779, %v775
    %v788 = vpack.c.bf16 %v780, %v776
    %v789 = vpack.c.bf16 %v781, %v777
    %v790 = vpack.c.bf16 %v782, %v782
    %v791 = vpack.c.bf16 %v783, %v783
    %v792 = vpack.c.bf16 %v784, %v784
    %v793 = vpack.c.bf16 %v785, %v785
    %v794 = vld [vmem:[%s3] sm:$0xf]
    %v795 = vld [vmem:[%s3 + $0x4] sm:$0xf]
    %v796 = vld [vmem:[%s3 + $0x8] sm:$0xf]
    %v797 = vld [vmem:[%s3 + $0xc] sm:$0xf]
    %v798 = vld [vmem:[%s3 + $0x10] sm:$0xf]
    %v799 = vld [vmem:[%s3 + $0x14] sm:$0xf]
    %v800 = vld [vmem:[%s3 + $0x18] sm:$0xf]
    %v801 = vld [vmem:[%s3 + $0x1c] sm:$0xf]
    %v802 = vld [vmem:[%s3 + $0x20] sm:$0xf]
    %v803 = vld [vmem:[%s3 + $0x24] sm:$0xf]
    %v804 = vld [vmem:[%s3 + $0x28] sm:$0xf]
    %v805 = vld [vmem:[%s3 + $0x2c] sm:$0xf]
    %v806 = vld [vmem:[%s3 + $0x30] sm:$0xf]
    %v807 = vld [vmem:[%s3 + $0x34] sm:$0xf]
    %v808 = vld [vmem:[%s3 + $0x38] sm:$0xf]
    %v809 = vld [vmem:[%s3 + $0x3c] sm:$0xf]
    %v810 = vld [vmem:[%s3 + $0x40] sm:$0xf]
    %v811 = vld [vmem:[%s3 + $0x44] sm:$0xf]
    %v812 = vld [vmem:[%s3 + $0x48] sm:$0xf]
    %v813 = vld [vmem:[%s3 + $0x4c] sm:$0xf]
    %v814 = vld [vmem:[%s3 + $0x50] sm:$0xf]
    %v815 = vld [vmem:[%s3 + $0x54] sm:$0xf]
    %v816 = vld [vmem:[%s3 + $0x58] sm:$0xf]
    %v817 = vld [vmem:[%s3 + $0x5c] sm:$0xf]
    %v818 = vld [vmem:[%s3 + $0x60] sm:$0xf]
    %v819 = vld [vmem:[%s3 + $0x64] sm:$0xf]
    %v820 = vld [vmem:[%s3 + $0x68] sm:$0xf]
    %v821 = vld [vmem:[%s3 + $0x6c] sm:$0xf]
    %v822 = vld [vmem:[%s3 + $0x70] sm:$0xf]
    %v823 = vld [vmem:[%s3 + $0x74] sm:$0xf]
    %v824 = vld [vmem:[%s3 + $0x78] sm:$0xf]
    %v825 = vld [vmem:[%s3 + $0x7c] sm:$0xf]
    %v826 = vld [vmem:[%s3 + $0x80] sm:$0xf]
    %v827 = vld [vmem:[%s3 + $0x84] sm:$0xf]
    %v828 = vld [vmem:[%s3 + $0x88] sm:$0xf]
    %v829 = vld [vmem:[%s3 + $0x8c] sm:$0xf]
    %v830 = vld [vmem:[%s3 + $0x90] sm:$0xf]
    %v831 = vld [vmem:[%s3 + $0x94] sm:$0xf]
    %v832 = vld [vmem:[%s3 + $0x98] sm:$0xf]
    %v833 = vld [vmem:[%s3 + $0x9c] sm:$0xf]
    %v834 = vld [vmem:[%s3 + $0xa0] sm:$0xf]
    %v835 = vld [vmem:[%s3 + $0xa4] sm:$0xf]
    %v836 = vld [vmem:[%s3 + $0xa8] sm:$0xf]
    %v837 = vld [vmem:[%s3 + $0xac] sm:$0xf]
    %v838 = vld [vmem:[%s3 + $0xb0] sm:$0xf]
    %v839 = vld [vmem:[%s3 + $0xb4] sm:$0xf]
    %v840 = vld [vmem:[%s3 + $0xb8] sm:$0xf]
    %v841 = vld [vmem:[%s3 + $0xbc] sm:$0xf]
    %v842 = vld [vmem:[%s3 + $0xc0] sm:$0xf]
    %v843 = vld [vmem:[%s3 + $0xc4] sm:$0xf]
    %v844 = vld [vmem:[%s3 + $0xc8] sm:$0xf]
    %v845 = vld [vmem:[%s3 + $0xcc] sm:$0xf]
    %v846 = vld [vmem:[%s3 + $0xd0] sm:$0xf]
    %v847 = vld [vmem:[%s3 + $0xd4] sm:$0xf]
    %v848 = vld [vmem:[%s3 + $0xd8] sm:$0xf]
    %v849 = vld [vmem:[%s3 + $0xdc] sm:$0xf]
    %v850 = vld [vmem:[%s3 + $0xe0] sm:$0xf]
    %v851 = vld [vmem:[%s3 + $0xe4] sm:$0xf]
    %v852 = vld [vmem:[%s3 + $0xe8] sm:$0xf]
    %v853 = vld [vmem:[%s3 + $0xec] sm:$0xf]
    %v854 = vld [vmem:[%s3 + $0xf0] sm:$0xf]
    %v855 = vld [vmem:[%s3 + $0xf4] sm:$0xf]
    %v856 = vld [vmem:[%s3 + $0xf8] sm:$0xf]
    %v857 = vld [vmem:[%s3 + $0xfc] sm:$0xf]
    %v858 = vld [vmem:[%s4] sm:$0x1]
    %v860 = vlaneseq
    %v861 = vshrl.u32 %v860, 7
    %v862 = vsub.s32 0, %v861
    %v863 = vrot.slane %v858, %v862
    %v929 = vunpack.c.l.b16 %v794
    %v930 = vunpack.c.l.b16 %v795
    %v931 = vunpack.c.l.b16 %v796
    %v932 = vunpack.c.l.b16 %v797
    %v933 = vunpack.c.l.b16 %v798
    %v934 = vunpack.c.l.b16 %v799
    %v935 = vunpack.c.l.b16 %v800
    %v936 = vunpack.c.l.b16 %v801
    %v937 = vunpack.c.l.b16 %v802
    %v938 = vunpack.c.l.b16 %v803
    %v939 = vunpack.c.l.b16 %v804
    %v940 = vunpack.c.l.b16 %v805
    %v941 = vunpack.c.l.b16 %v806
    %v942 = vunpack.c.l.b16 %v807
    %v943 = vunpack.c.l.b16 %v808
    %v944 = vunpack.c.l.b16 %v809
    %v945 = vunpack.c.l.b16 %v810
    %v946 = vunpack.c.l.b16 %v811
    %v947 = vunpack.c.l.b16 %v812
    %v948 = vunpack.c.l.b16 %v813
    %v949 = vunpack.c.l.b16 %v814
    %v950 = vunpack.c.l.b16 %v815
    %v951 = vunpack.c.l.b16 %v816
    %v952 = vunpack.c.l.b16 %v817
    %v953 = vunpack.c.l.b16 %v818
    %v954 = vunpack.c.l.b16 %v819
    %v955 = vunpack.c.l.b16 %v820
    %v956 = vunpack.c.l.b16 %v821
    %v957 = vunpack.c.l.b16 %v822
    %v958 = vunpack.c.l.b16 %v823
    %v959 = vunpack.c.l.b16 %v824
    %v960 = vunpack.c.l.b16 %v825
    %v961 = vunpack.c.l.b16 %v826
    %v962 = vunpack.c.l.b16 %v827
    %v963 = vunpack.c.l.b16 %v828
    %v964 = vunpack.c.l.b16 %v829
    %v965 = vunpack.c.l.b16 %v830
    %v966 = vunpack.c.l.b16 %v831
    %v967 = vunpack.c.l.b16 %v832
    %v968 = vunpack.c.l.b16 %v833
    %v969 = vunpack.c.l.b16 %v834
    %v970 = vunpack.c.l.b16 %v835
    %v971 = vunpack.c.l.b16 %v836
    %v972 = vunpack.c.l.b16 %v837
    %v973 = vunpack.c.l.b16 %v838
    %v974 = vunpack.c.l.b16 %v839
    %v975 = vunpack.c.l.b16 %v840
    %v976 = vunpack.c.l.b16 %v841
    %v977 = vunpack.c.l.b16 %v842
    %v978 = vunpack.c.l.b16 %v843
    %v979 = vunpack.c.l.b16 %v844
    %v980 = vunpack.c.l.b16 %v845
    %v981 = vunpack.c.l.b16 %v846
    %v982 = vunpack.c.l.b16 %v847
    %v983 = vunpack.c.l.b16 %v848
    %v984 = vunpack.c.l.b16 %v849
    %v985 = vunpack.c.l.b16 %v850
    %v986 = vunpack.c.l.b16 %v851
    %v987 = vunpack.c.l.b16 %v852
    %v988 = vunpack.c.l.b16 %v853
    %v989 = vunpack.c.l.b16 %v854
    %v990 = vunpack.c.l.b16 %v855
    %v991 = vunpack.c.l.b16 %v856
    %v992 = vunpack.c.l.b16 %v857
    %v993 = vpack.c.b16 %v930, %v929
    %v994 = vpack.c.b16 %v932, %v931
    %v995 = vpack.c.b16 %v934, %v933
    %v996 = vpack.c.b16 %v936, %v935
    %v997 = vpack.c.b16 %v938, %v937
    %v998 = vpack.c.b16 %v940, %v939
    %v999 = vpack.c.b16 %v942, %v941
    %v1000 = vpack.c.b16 %v944, %v943
    %v1001 = vpack.c.b16 %v946, %v945
    %v1002 = vpack.c.b16 %v948, %v947
    %v1003 = vpack.c.b16 %v950, %v949
    %v1004 = vpack.c.b16 %v952, %v951
    %v1005 = vpack.c.b16 %v954, %v953
    %v1006 = vpack.c.b16 %v956, %v955
    %v1007 = vpack.c.b16 %v958, %v957
    %v1008 = vpack.c.b16 %v960, %v959
    %v1009 = vpack.c.b16 %v962, %v961
    %v1010 = vpack.c.b16 %v964, %v963
    %v1011 = vpack.c.b16 %v966, %v965
    %v1012 = vpack.c.b16 %v968, %v967
    %v1013 = vpack.c.b16 %v970, %v969
    %v1014 = vpack.c.b16 %v972, %v971
    %v1015 = vpack.c.b16 %v974, %v973
    %v1016 = vpack.c.b16 %v976, %v975
    %v1017 = vpack.c.b16 %v978, %v977
    %v1018 = vpack.c.b16 %v980, %v979
    %v1019 = vpack.c.b16 %v982, %v981
    %v1020 = vpack.c.b16 %v984, %v983
    %v1021 = vpack.c.b16 %v986, %v985
    %v1022 = vpack.c.b16 %v988, %v987
    %v1023 = vpack.c.b16 %v990, %v989
    %v1024 = vpack.c.b16 %v992, %v991
    %1057 = vmatprep.subr.bf16.mxu0 0
    %1058 = vmatpush1.bf16.msra.mxu0 %v1000
    %1059 = vmatprep.subr.bf16.mxu0 0
    %1060 = vmatpush1.bf16.msra.mxu0 %v999
    %1061 = vmatprep.subr.bf16.mxu0 0
    %1062 = vmatpush1.bf16.msra.mxu0 %v998
    %1063 = vmatprep.subr.bf16.mxu0 0
    %1064 = vmatpush1.bf16.msra.mxu0 %v997
    %1065 = vmatprep.subr.bf16.mxu0 0
    %1066 = vmatpush1.bf16.msra.mxu0 %v996
    %1067 = vmatprep.subr.bf16.mxu0 0
    %1068 = vmatpush1.bf16.msra.mxu0 %v995
    %1069 = vmatprep.subr.bf16.mxu0 0
    %1070 = vmatpush1.bf16.msra.mxu0 %v994
    %1071 = vmatprep.subr.bf16.mxu0 0
    %1072 = vmatpush1.bf16.msra.mxu0 %v993
    %1073 = vmatprep.subr.bf16.mxu0 0
    %1074 = vmatpush2.bf16.msra.mxu0 %v1008
    %1075 = vmatprep.subr.bf16.mxu0 0
    %1076 = vmatpush2.bf16.msra.mxu0 %v1007
    %1077 = vmatprep.subr.bf16.mxu0 0
    %1078 = vmatpush2.bf16.msra.mxu0 %v1006
    %1079 = vmatprep.subr.bf16.mxu0 0
    %1080 = vmatpush2.bf16.msra.mxu0 %v1005
    %1081 = vmatprep.subr.bf16.mxu0 0
    %1082 = vmatpush2.bf16.msra.mxu0 %v1004
    %1083 = vmatprep.subr.bf16.mxu0 0
    %1084 = vmatpush2.bf16.msra.mxu0 %v1003
    %1085 = vmatprep.subr.bf16.mxu0 0
    %1086 = vmatpush2.bf16.msra.mxu0 %v1002
    %1087 = vmatprep.subr.bf16.mxu0 0
    %1088 = vmatpush2.bf16.msra.mxu0 %v1001
    %1089 = vmatprep.mubr.bf16.mxu0 %v787
    %1090 = vmatmul.mubr.bf16.gmra.mxu0 %v786
    %v1091 = vpop.f32.mrf.mxu0
    %v1092 = vadd.f32 %v863, %v1091
    %v1093 = vpop.f32.mrf.mxu0
    %v1094 = vpop.f32.mrf.mxu0
    %v1095 = vadd.f32 %v863, %v1094
    %v1096 = vpop.f32.mrf.mxu0
    %1097 = vmatprep.mubr.bf16.mxu0 %v791
    %1098 = vmatmul.mubr.bf16.gmra.mxu0 %v790
    %v1099 = vpop.f32.mrf.mxu0
    %v1100 = vadd.f32 %v863, %v1099
    %v1101 = vpop.f32.mrf.mxu0
    %v1102 = vpop.f32.mrf.mxu0
    %v1103 = vpop.f32.mrf.mxu0
    %1104 = vdwg.mxu0
    %1105 = vmatprep.subr.bf16.mxu0 0
    %1106 = vmatpush1.bf16.msra.mxu0 %v1016
    %1107 = vmatprep.subr.bf16.mxu0 0
    %1108 = vmatpush1.bf16.msra.mxu0 %v1015
    %1109 = vmatprep.subr.bf16.mxu0 0
    %1110 = vmatpush1.bf16.msra.mxu0 %v1014
    %1111 = vmatprep.subr.bf16.mxu0 0
    %1112 = vmatpush1.bf16.msra.mxu0 %v1013
    %1113 = vmatprep.subr.bf16.mxu0 0
    %1114 = vmatpush1.bf16.msra.mxu0 %v1012
    %1115 = vmatprep.subr.bf16.mxu0 0
    %1116 = vmatpush1.bf16.msra.mxu0 %v1011
    %1117 = vmatprep.subr.bf16.mxu0 0
    %1118 = vmatpush1.bf16.msra.mxu0 %v1010
    %1119 = vmatprep.subr.bf16.mxu0 0
    %1120 = vmatpush1.bf16.msra.mxu0 %v1009
    %1121 = vmatprep.subr.bf16.mxu0 0
    %1122 = vmatpush2.bf16.msra.mxu0 %v1024
    %1123 = vmatprep.subr.bf16.mxu0 0
    %1124 = vmatpush2.bf16.msra.mxu0 %v1023
    %1125 = vmatprep.subr.bf16.mxu0 0
    %1126 = vmatpush2.bf16.msra.mxu0 %v1022
    %1127 = vmatprep.subr.bf16.mxu0 0
    %1128 = vmatpush2.bf16.msra.mxu0 %v1021
    %1129 = vmatprep.subr.bf16.mxu0 0
    %1130 = vmatpush2.bf16.msra.mxu0 %v1020
    %1131 = vmatprep.subr.bf16.mxu0 0
    %1132 = vmatpush2.bf16.msra.mxu0 %v1019
    %1133 = vmatprep.subr.bf16.mxu0 0
    %1134 = vmatpush2.bf16.msra.mxu0 %v1018
    %1135 = vmatprep.subr.bf16.mxu0 0
    %1136 = vmatpush2.bf16.msra.mxu0 %v1017
    %1137 = vmatprep.mubr.bf16.mxu0 %v789
    %1138 = vmatmul.mubr.bf16.gmra.mxu0 %v788
    %v1139 = vpop.f32.mrf.mxu0
    %v1140 = vadd.f32 %v1092, %v1139
    %v1141 = vpop.f32.mrf.mxu0
    %v1142 = vpop.f32.mrf.mxu0
    %v1143 = vadd.f32 %v1095, %v1142
    %v1144 = vpop.f32.mrf.mxu0
    %1145 = vmatprep.mubr.bf16.mxu0 %v793
    %1146 = vmatmul.mubr.bf16.gmra.mxu0 %v792
    %v1147 = vpop.f32.mrf.mxu0
    %v1148 = vadd.f32 %v1100, %v1147
    %v1149 = vpop.f32.mrf.mxu0
    %v1150 = vpop.f32.mrf.mxu0
    %v1151 = vpop.f32.mrf.mxu0
    %1152 = vdwg.mxu0
    %v1153 = vmax.f32 %v1140, 0.0
    %v1154 = vmax.f32 %v1143, 0.0
    %v1155 = vmax.f32 %v1148, 0.0
    %v1157 = vrot.slane %v1153, 2
    %1158 = vrot.lane.b32.xlu0 %v1157, 64
    %v1159 = vpop.permute.xlu0 %1158
    %v1161 = vrot.slane %v1153, 4
    %v1163 = vrot.slane %v1153, 6
    %1164 = vrot.lane.b32.xlu0 %v1163, 64
    %v1165 = vpop.permute.xlu0 %1164
    %v1168 = vrot.slane %v1154, 2
    %1169 = vrot.lane.b32.xlu0 %v1168, 64
    %v1170 = vpop.permute.xlu0 %1169
    %v1172 = vrot.slane %v1154, 4
    %v1174 = vrot.slane %v1154, 6
    %1175 = vrot.lane.b32.xlu0 %v1174, 64
    %v1176 = vpop.permute.xlu0 %1175
    %v1178 = vsel %vm441, %v1153, %v1159
    %v1179 = vsel %vm441, %v1161, %v1165
    %v1180 = vsel %vm441, %v1154, %v1170
    %v1181 = vsel %vm441, %v1172, %v1176
    %v1182 = vpack.c.bf16 %v1178, %v1178
    %v1183 = vpack.c.bf16 %v1179, %v1179
    %v1184 = vpack.c.bf16 %v1180, %v1180
    %v1185 = vpack.c.bf16 %v1181, %v1181
    %v1186 = vpack.c.bf16 %v1155, %v1155
    %v1187 = vld [vmem:[%s5] sm:$0xf]
    %v1188 = vld [vmem:[%s5 + $0x4] sm:$0xf]
    %v1189 = vld [vmem:[%s5 + $0x8] sm:$0xf]
    %v1190 = vld [vmem:[%s5 + $0xc] sm:$0xf]
    %v1191 = vld [vmem:[%s5 + $0x10] sm:$0xf]
    %v1192 = vld [vmem:[%s5 + $0x14] sm:$0xf]
    %v1193 = vld [vmem:[%s5 + $0x18] sm:$0xf]
    %v1194 = vld [vmem:[%s5 + $0x1c] sm:$0xf]
    %v1195 = vld [vmem:[%s5 + $0x20] sm:$0xf]
    %v1196 = vld [vmem:[%s5 + $0x24] sm:$0xf]
    %v1197 = vld [vmem:[%s5 + $0x28] sm:$0xf]
    %v1198 = vld [vmem:[%s5 + $0x2c] sm:$0xf]
    %v1199 = vld [vmem:[%s5 + $0x30] sm:$0xf]
    %v1200 = vld [vmem:[%s5 + $0x34] sm:$0xf]
    %v1201 = vld [vmem:[%s5 + $0x38] sm:$0xf]
    %v1202 = vld [vmem:[%s5 + $0x3c] sm:$0xf]
    %v1203 = vld [vmem:[%s5 + $0x40] sm:$0xf]
    %v1204 = vld [vmem:[%s5 + $0x44] sm:$0xf]
    %v1205 = vld [vmem:[%s5 + $0x48] sm:$0xf]
    %v1206 = vld [vmem:[%s5 + $0x4c] sm:$0xf]
    %v1207 = vld [vmem:[%s5 + $0x50] sm:$0xf]
    %v1208 = vld [vmem:[%s5 + $0x54] sm:$0xf]
    %v1209 = vld [vmem:[%s5 + $0x58] sm:$0xf]
    %v1210 = vld [vmem:[%s5 + $0x5c] sm:$0xf]
    %v1211 = vld [vmem:[%s5 + $0x60] sm:$0xf]
    %v1212 = vld [vmem:[%s5 + $0x64] sm:$0xf]
    %v1213 = vld [vmem:[%s5 + $0x68] sm:$0xf]
    %v1214 = vld [vmem:[%s5 + $0x6c] sm:$0xf]
    %v1215 = vld [vmem:[%s5 + $0x70] sm:$0xf]
    %v1216 = vld [vmem:[%s5 + $0x74] sm:$0xf]
    %v1217 = vld [vmem:[%s5 + $0x78] sm:$0xf]
    %v1218 = vld [vmem:[%s5 + $0x7c] sm:$0xf]
    %v1219 = vld [vmem:[%s5 + $0x80] sm:$0xf]
    %v1220 = vld [vmem:[%s5 + $0x84] sm:$0xf]
    %v1221 = vld [vmem:[%s5 + $0x88] sm:$0xf]
    %v1222 = vld [vmem:[%s5 + $0x8c] sm:$0xf]
    %v1223 = vld [vmem:[%s5 + $0x90] sm:$0xf]
    %v1224 = vld [vmem:[%s5 + $0x94] sm:$0xf]
    %v1225 = vld [vmem:[%s5 + $0x98] sm:$0xf]
    %v1226 = vld [vmem:[%s5 + $0x9c] sm:$0xf]
    %v1227 = vld [vmem:[%s5 + $0xa0] sm:$0xf]
    %v1228 = vld [vmem:[%s5 + $0xa4] sm:$0xf]
    %v1229 = vld [vmem:[%s5 + $0xa8] sm:$0xf]
    %v1230 = vld [vmem:[%s5 + $0xac] sm:$0xf]
    %v1231 = vld [vmem:[%s5 + $0xb0] sm:$0xf]
    %v1232 = vld [vmem:[%s5 + $0xb4] sm:$0xf]
    %v1233 = vld [vmem:[%s5 + $0xb8] sm:$0xf]
    %v1234 = vld [vmem:[%s5 + $0xbc] sm:$0xf]
    %v1235 = vld [vmem:[%s5 + $0xc0] sm:$0xf]
    %v1236 = vld [vmem:[%s5 + $0xc4] sm:$0xf]
    %v1237 = vld [vmem:[%s5 + $0xc8] sm:$0xf]
    %v1238 = vld [vmem:[%s5 + $0xcc] sm:$0xf]
    %v1239 = vld [vmem:[%s5 + $0xd0] sm:$0xf]
    %v1240 = vld [vmem:[%s5 + $0xd4] sm:$0xf]
    %v1241 = vld [vmem:[%s5 + $0xd8] sm:$0xf]
    %v1242 = vld [vmem:[%s5 + $0xdc] sm:$0xf]
    %v1243 = vld [vmem:[%s5 + $0xe0] sm:$0xf]
    %v1244 = vld [vmem:[%s5 + $0xe4] sm:$0xf]
    %v1245 = vld [vmem:[%s5 + $0xe8] sm:$0xf]
    %v1246 = vld [vmem:[%s5 + $0xec] sm:$0xf]
    %v1247 = vld [vmem:[%s5 + $0xf0] sm:$0xf]
    %v1248 = vld [vmem:[%s5 + $0xf4] sm:$0xf]
    %v1249 = vld [vmem:[%s5 + $0xf8] sm:$0xf]
    %v1250 = vld [vmem:[%s5 + $0xfc] sm:$0xf]
    %v1251 = vld [vmem:[%s5 + $0x100] sm:$0xf]
    %v1252 = vld [vmem:[%s5 + $0x104] sm:$0xf]
    %v1253 = vld [vmem:[%s5 + $0x108] sm:$0xf]
    %v1254 = vld [vmem:[%s5 + $0x10c] sm:$0xf]
    %v1255 = vld [vmem:[%s5 + $0x110] sm:$0xf]
    %v1256 = vld [vmem:[%s5 + $0x114] sm:$0xf]
    %v1257 = vld [vmem:[%s5 + $0x118] sm:$0xf]
    %v1258 = vld [vmem:[%s5 + $0x11c] sm:$0xf]
    %v1259 = vld [vmem:[%s6] sm:$0x1]
    %v1261 = vlaneseq
    %v1262 = vshrl.u32 %v1261, 7
    %v1263 = vsub.s32 0, %v1262
    %v1264 = vrot.slane %v1259, %v1263
    %v1338 = vunpack.c.l.b16 %v1187
    %v1339 = vunpack.c.l.b16 %v1188
    %v1340 = vunpack.c.l.b16 %v1189
    %v1341 = vunpack.c.l.b16 %v1190
    %v1342 = vunpack.c.l.b16 %v1191
    %v1343 = vunpack.c.l.b16 %v1192
    %v1344 = vunpack.c.l.b16 %v1193
    %v1345 = vunpack.c.l.b16 %v1194
    %v1346 = vunpack.c.l.b16 %v1195
    %v1347 = vunpack.c.l.b16 %v1196
    %v1348 = vunpack.c.l.b16 %v1197
    %v1349 = vunpack.c.l.b16 %v1198
    %v1350 = vunpack.c.l.b16 %v1199
    %v1351 = vunpack.c.l.b16 %v1200
    %v1352 = vunpack.c.l.b16 %v1201
    %v1353 = vunpack.c.l.b16 %v1202
    %v1354 = vunpack.c.l.b16 %v1203
    %v1355 = vunpack.c.l.b16 %v1204
    %v1356 = vunpack.c.l.b16 %v1205
    %v1357 = vunpack.c.l.b16 %v1206
    %v1358 = vunpack.c.l.b16 %v1207
    %v1359 = vunpack.c.l.b16 %v1208
    %v1360 = vunpack.c.l.b16 %v1209
    %v1361 = vunpack.c.l.b16 %v1210
    %v1362 = vunpack.c.l.b16 %v1211
    %v1363 = vunpack.c.l.b16 %v1212
    %v1364 = vunpack.c.l.b16 %v1213
    %v1365 = vunpack.c.l.b16 %v1214
    %v1366 = vunpack.c.l.b16 %v1215
    %v1367 = vunpack.c.l.b16 %v1216
    %v1368 = vunpack.c.l.b16 %v1217
    %v1369 = vunpack.c.l.b16 %v1218
    %v1370 = vunpack.c.l.b16 %v1219
    %v1371 = vunpack.c.l.b16 %v1220
    %v1372 = vunpack.c.l.b16 %v1221
    %v1373 = vunpack.c.l.b16 %v1222
    %v1374 = vunpack.c.l.b16 %v1223
    %v1375 = vunpack.c.l.b16 %v1224
    %v1376 = vunpack.c.l.b16 %v1225
    %v1377 = vunpack.c.l.b16 %v1226
    %v1378 = vunpack.c.l.b16 %v1227
    %v1379 = vunpack.c.l.b16 %v1228
    %v1380 = vunpack.c.l.b16 %v1229
    %v1381 = vunpack.c.l.b16 %v1230
    %v1382 = vunpack.c.l.b16 %v1231
    %v1383 = vunpack.c.l.b16 %v1232
    %v1384 = vunpack.c.l.b16 %v1233
    %v1385 = vunpack.c.l.b16 %v1234
    %v1386 = vunpack.c.l.b16 %v1235
    %v1387 = vunpack.c.l.b16 %v1236
    %v1388 = vunpack.c.l.b16 %v1237
    %v1389 = vunpack.c.l.b16 %v1238
    %v1390 = vunpack.c.l.b16 %v1239
    %v1391 = vunpack.c.l.b16 %v1240
    %v1392 = vunpack.c.l.b16 %v1241
    %v1393 = vunpack.c.l.b16 %v1242
    %v1394 = vunpack.c.l.b16 %v1243
    %v1395 = vunpack.c.l.b16 %v1244
    %v1396 = vunpack.c.l.b16 %v1245
    %v1397 = vunpack.c.l.b16 %v1246
    %v1398 = vunpack.c.l.b16 %v1247
    %v1399 = vunpack.c.l.b16 %v1248
    %v1400 = vunpack.c.l.b16 %v1249
    %v1401 = vunpack.c.l.b16 %v1250
    %v1402 = vunpack.c.l.b16 %v1251
    %v1403 = vunpack.c.l.b16 %v1252
    %v1404 = vunpack.c.l.b16 %v1253
    %v1405 = vunpack.c.l.b16 %v1254
    %v1406 = vunpack.c.l.b16 %v1255
    %v1407 = vunpack.c.l.b16 %v1256
    %v1408 = vunpack.c.l.b16 %v1257
    %v1409 = vunpack.c.l.b16 %v1258
    %v1410 = vpack.c.b16 %v1339, %v1338
    %v1411 = vpack.c.b16 %v1341, %v1340
    %v1412 = vpack.c.b16 %v1343, %v1342
    %v1413 = vpack.c.b16 %v1345, %v1344
    %v1414 = vpack.c.b16 %v1347, %v1346
    %v1415 = vpack.c.b16 %v1349, %v1348
    %v1416 = vpack.c.b16 %v1351, %v1350
    %v1417 = vpack.c.b16 %v1353, %v1352
    %v1418 = vpack.c.b16 %v1355, %v1354
    %v1419 = vpack.c.b16 %v1357, %v1356
    %v1420 = vpack.c.b16 %v1359, %v1358
    %v1421 = vpack.c.b16 %v1361, %v1360
    %v1422 = vpack.c.b16 %v1363, %v1362
    %v1423 = vpack.c.b16 %v1365, %v1364
    %v1424 = vpack.c.b16 %v1367, %v1366
    %v1425 = vpack.c.b16 %v1369, %v1368
    %v1426 = vpack.c.b16 %v1371, %v1370
    %v1427 = vpack.c.b16 %v1373, %v1372
    %v1428 = vpack.c.b16 %v1375, %v1374
    %v1429 = vpack.c.b16 %v1377, %v1376
    %v1430 = vpack.c.b16 %v1379, %v1378
    %v1431 = vpack.c.b16 %v1381, %v1380
    %v1432 = vpack.c.b16 %v1383, %v1382
    %v1433 = vpack.c.b16 %v1385, %v1384
    %v1434 = vpack.c.b16 %v1387, %v1386
    %v1435 = vpack.c.b16 %v1389, %v1388
    %v1436 = vpack.c.b16 %v1391, %v1390
    %v1437 = vpack.c.b16 %v1393, %v1392
    %v1438 = vpack.c.b16 %v1395, %v1394
    %v1439 = vpack.c.b16 %v1397, %v1396
    %v1440 = vpack.c.b16 %v1399, %v1398
    %v1441 = vpack.c.b16 %v1401, %v1400
    %v1442 = vpack.c.b16 %v1403, %v1402
    %v1443 = vpack.c.b16 %v1405, %v1404
    %v1444 = vpack.c.b16 %v1407, %v1406
    %v1445 = vpack.c.b16 %v1409, %v1408
    %v1483 = vsel %vm441, %v1186, 0
    %1485 = vmatprep.subr.bf16.mxu0 0
    %1486 = vmatpush1.bf16.msra.mxu0 %v1417
    %1487 = vmatprep.subr.bf16.mxu0 0
    %1488 = vmatpush1.bf16.msra.mxu0 %v1416
    %1489 = vmatprep.subr.bf16.mxu0 0
    %1490 = vmatpush1.bf16.msra.mxu0 %v1415
    %1491 = vmatprep.subr.bf16.mxu0 0
    %1492 = vmatpush1.bf16.msra.mxu0 %v1414
    %1493 = vmatprep.subr.bf16.mxu0 0
    %1494 = vmatpush1.bf16.msra.mxu0 %v1413
    %1495 = vmatprep.subr.bf16.mxu0 0
    %1496 = vmatpush1.bf16.msra.mxu0 %v1412
    %1497 = vmatprep.subr.bf16.mxu0 0
    %1498 = vmatpush1.bf16.msra.mxu0 %v1411
    %1499 = vmatprep.subr.bf16.mxu0 0
    %1500 = vmatpush1.bf16.msra.mxu0 %v1410
    %1501 = vmatprep.subr.bf16.mxu0 0
    %1502 = vmatpush2.bf16.msra.mxu0 %v1425
    %1503 = vmatprep.subr.bf16.mxu0 0
    %1504 = vmatpush2.bf16.msra.mxu0 %v1424
    %1505 = vmatprep.subr.bf16.mxu0 0
    %1506 = vmatpush2.bf16.msra.mxu0 %v1423
    %1507 = vmatprep.subr.bf16.mxu0 0
    %1508 = vmatpush2.bf16.msra.mxu0 %v1422
    %1509 = vmatprep.subr.bf16.mxu0 0
    %1510 = vmatpush2.bf16.msra.mxu0 %v1421
    %1511 = vmatprep.subr.bf16.mxu0 0
    %1512 = vmatpush2.bf16.msra.mxu0 %v1420
    %1513 = vmatprep.subr.bf16.mxu0 0
    %1514 = vmatpush2.bf16.msra.mxu0 %v1419
    %1515 = vmatprep.subr.bf16.mxu0 0
    %1516 = vmatpush2.bf16.msra.mxu0 %v1418
    %1517 = vmatprep.mubr.bf16.mxu0 %v1183
    %1518 = vmatmul.mubr.bf16.gmra.mxu0 %v1182
    %v1519 = vpop.f32.mrf.mxu0
    %v1520 = vadd.f32 %v1264, %v1519
    %v1521 = vpop.f32.mrf.mxu0
    %v1522 = vpop.f32.mrf.mxu0
    %v1523 = vpop.f32.mrf.mxu0
    %1524 = vdwg.mxu0
    %1525 = vmatprep.subr.bf16.mxu0 0
    %1526 = vmatpush1.bf16.msra.mxu0 %v1433
    %1527 = vmatprep.subr.bf16.mxu0 0
    %1528 = vmatpush1.bf16.msra.mxu0 %v1432
    %1529 = vmatprep.subr.bf16.mxu0 0
    %1530 = vmatpush1.bf16.msra.mxu0 %v1431
    %1531 = vmatprep.subr.bf16.mxu0 0
    %1532 = vmatpush1.bf16.msra.mxu0 %v1430
    %1533 = vmatprep.subr.bf16.mxu0 0
    %1534 = vmatpush1.bf16.msra.mxu0 %v1429
    %1535 = vmatprep.subr.bf16.mxu0 0
    %1536 = vmatpush1.bf16.msra.mxu0 %v1428
    %1537 = vmatprep.subr.bf16.mxu0 0
    %1538 = vmatpush1.bf16.msra.mxu0 %v1427
    %1539 = vmatprep.subr.bf16.mxu0 0
    %1540 = vmatpush1.bf16.msra.mxu0 %v1426
    %1541 = vmatprep.subr.bf16.mxu0 0
    %1542 = vmatpush2.bf16.msra.mxu0 %v1441
    %1543 = vmatprep.subr.bf16.mxu0 0
    %1544 = vmatpush2.bf16.msra.mxu0 %v1440
    %1545 = vmatprep.subr.bf16.mxu0 0
    %1546 = vmatpush2.bf16.msra.mxu0 %v1439
    %1547 = vmatprep.subr.bf16.mxu0 0
    %1548 = vmatpush2.bf16.msra.mxu0 %v1438
    %1549 = vmatprep.subr.bf16.mxu0 0
    %1550 = vmatpush2.bf16.msra.mxu0 %v1437
    %1551 = vmatprep.subr.bf16.mxu0 0
    %1552 = vmatpush2.bf16.msra.mxu0 %v1436
    %1553 = vmatprep.subr.bf16.mxu0 0
    %1554 = vmatpush2.bf16.msra.mxu0 %v1435
    %1555 = vmatprep.subr.bf16.mxu0 0
    %1556 = vmatpush2.bf16.msra.mxu0 %v1434
    %1557 = vmatprep.mubr.bf16.mxu0 %v1185
    %1558 = vmatmul.mubr.bf16.gmra.mxu0 %v1184
    %v1559 = vpop.f32.mrf.mxu0
    %v1560 = vadd.f32 %v1520, %v1559
    %v1561 = vpop.f32.mrf.mxu0
    %v1562 = vpop.f32.mrf.mxu0
    %v1563 = vpop.f32.mrf.mxu0
    %1564 = vdwg.mxu0
    %1565 = vmatprep.subr.bf16.mxu0 0
    %1566 = vmatpush1.bf16.msra.mxu0 0
    %1567 = vmatprep.subr.bf16.mxu0 0
    %1568 = vmatpush1.bf16.msra.mxu0 0
    %1569 = vmatprep.subr.bf16.mxu0 0
    %1570 = vmatpush1.bf16.msra.mxu0 0
    %1571 = vmatprep.subr.bf16.mxu0 0
    %1572 = vmatpush1.bf16.msra.mxu0 0
    %1573 = vmatprep.subr.bf16.mxu0 0
    %1574 = vmatpush1.bf16.msra.mxu0 %v1445
    %1575 = vmatprep.subr.bf16.mxu0 0
    %1576 = vmatpush1.bf16.msra.mxu0 %v1444
    %1577 = vmatprep.subr.bf16.mxu0 0
    %1578 = vmatpush1.bf16.msra.mxu0 %v1443
    %1579 = vmatprep.subr.bf16.mxu0 0
    %1580 = vmatpush1.bf16.msra.mxu0 %v1442
    %1581 = vmatprep.subr.bf16.mxu0 0
    %1582 = vmatpush2.bf16.msra.mxu0 0
    %1583 = vmatprep.subr.bf16.mxu0 0
    %1584 = vmatpush2.bf16.msra.mxu0 0
    %1585 = vmatprep.subr.bf16.mxu0 0
    %1586 = vmatpush2.bf16.msra.mxu0 0
    %1587 = vmatprep.subr.bf16.mxu0 0
    %1588 = vmatpush2.bf16.msra.mxu0 0
    %1589 = vmatprep.subr.bf16.mxu0 0
    %1590 = vmatpush2.bf16.msra.mxu0 0
    %1591 = vmatprep.subr.bf16.mxu0 0
    %1592 = vmatpush2.bf16.msra.mxu0 0
    %1593 = vmatprep.subr.bf16.mxu0 0
    %1594 = vmatpush2.bf16.msra.mxu0 0
    %1595 = vmatprep.subr.bf16.mxu0 0
    %1596 = vmatpush2.bf16.msra.mxu0 0
    %1597 = vmatprep.mubr.bf16.mxu0 0
    %1598 = vmatmul.mubr.bf16.gmra.mxu0 %v1483
    %v1599 = vpop.f32.mrf.mxu0
    %v1600 = vadd.f32 %v1560, %v1599
    %v1601 = vpop.f32.mrf.mxu0
    %v1602 = vpop.f32.mrf.mxu0
    %v1603 = vpop.f32.mrf.mxu0
    %1604 = vdwg.mxu0
    %v1605 = vmax.f32 %v1600, 0.0
    %v1606 = vpack.c.bf16 %v1605, %v1605
    %v1607 = vld [vmem:[%s7] sm:$0xff]
    %v1608 = vld [vmem:[%s7 + $0x8] sm:$0xff]
    %v1609 = vld [vmem:[%s7 + $0x10] sm:$0xff]
    %v1610 = vld [vmem:[%s7 + $0x18] sm:$0xff]
    %v1611 = vld [vmem:[%s7 + $0x20] sm:$0xff]
    %v1612 = vld [vmem:[%s7 + $0x28] sm:$0xff]
    %v1613 = vld [vmem:[%s7 + $0x30] sm:$0xff]
    %v1614 = vld [vmem:[%s7 + $0x38] sm:$0xff]
    %v1615 = vld [vmem:[%s7 + $0x40] sm:$0xff]
    %v1616 = vld [vmem:[%s7 + $0x48] sm:$0xff]
    %v1617 = vld [vmem:[%s7 + $0x50] sm:$0xff]
    %v1618 = vld [vmem:[%s7 + $0x58] sm:$0xff]
    %v1619 = vld [vmem:[%s7 + $0x60] sm:$0xff]
    %v1620 = vld [vmem:[%s7 + $0x68] sm:$0xff]
    %v1621 = vld [vmem:[%s7 + $0x70] sm:$0xff]
    %v1622 = vld [vmem:[%s7 + $0x78] sm:$0xff]
    %v1623 = vld [vmem:[%s8] sm:$0xf]
    %v1625 = vlaneseq
    %v1626 = vshrl.u32 %v1625, 7
    %v1627 = vsub.s32 0, %v1626
    %v1628 = vrot.slane %v1623, %v1627
    %v1629 = vlaneseq
    %v1630 = vshrl.u32 %v1629, 7
    %v1631 = vsub.s32 1, %v1630
    %v1632 = vrot.slane %v1623, %v1631
    %v1633 = vlaneseq
    %v1634 = vshrl.u32 %v1633, 7
    %v1635 = vsub.s32 2, %v1634
    %v1636 = vrot.slane %v1623, %v1635
    %v1637 = vlaneseq
    %v1638 = vshrl.u32 %v1637, 7
    %v1639 = vsub.s32 3, %v1638
    %v1640 = vrot.slane %v1623, %v1639
    %v1661 = vunpack.c.l.b16 %v1607
    %v1662 = vunpack.c.h.b16 %v1607
    %v1663 = vunpack.c.l.b16 %v1608
    %v1664 = vunpack.c.h.b16 %v1608
    %v1665 = vunpack.c.l.b16 %v1609
    %v1666 = vunpack.c.h.b16 %v1609
    %v1667 = vunpack.c.l.b16 %v1610
    %v1668 = vunpack.c.h.b16 %v1610
    %v1669 = vunpack.c.l.b16 %v1611
    %v1670 = vunpack.c.h.b16 %v1611
    %v1671 = vunpack.c.l.b16 %v1612
    %v1672 = vunpack.c.h.b16 %v1612
    %v1673 = vunpack.c.l.b16 %v1613
    %v1674 = vunpack.c.h.b16 %v1613
    %v1675 = vunpack.c.l.b16 %v1614
    %v1676 = vunpack.c.h.b16 %v1614
    %v1677 = vunpack.c.l.b16 %v1615
    %v1678 = vunpack.c.h.b16 %v1615
    %v1679 = vunpack.c.l.b16 %v1616
    %v1680 = vunpack.c.h.b16 %v1616
    %v1681 = vunpack.c.l.b16 %v1617
    %v1682 = vunpack.c.h.b16 %v1617
    %v1683 = vunpack.c.l.b16 %v1618
    %v1684 = vunpack.c.h.b16 %v1618
    %v1685 = vunpack.c.l.b16 %v1619
    %v1686 = vunpack.c.h.b16 %v1619
    %v1687 = vunpack.c.l.b16 %v1620
    %v1688 = vunpack.c.h.b16 %v1620
    %v1689 = vunpack.c.l.b16 %v1621
    %v1690 = vunpack.c.h.b16 %v1621
    %v1691 = vunpack.c.l.b16 %v1622
    %v1692 = vunpack.c.h.b16 %v1622
    %v1693 = vpack.c.b16 %v1665, %v1661
    %v1694 = vpack.c.b16 %v1666, %v1662
    %v1695 = vpack.c.b16 %v1667, %v1663
    %v1696 = vpack.c.b16 %v1668, %v1664
    %v1697 = vpack.c.b16 %v1673, %v1669
    %v1698 = vpack.c.b16 %v1674, %v1670
    %v1699 = vpack.c.b16 %v1675, %v1671
    %v1700 = vpack.c.b16 %v1676, %v1672
    %v1701 = vpack.c.b16 %v1681, %v1677
    %v1702 = vpack.c.b16 %v1682, %v1678
    %v1703 = vpack.c.b16 %v1683, %v1679
    %v1704 = vpack.c.b16 %v1684, %v1680
    %v1705 = vpack.c.b16 %v1689, %v1685
    %v1706 = vpack.c.b16 %v1690, %v1686
    %v1707 = vpack.c.b16 %v1691, %v1687
    %v1708 = vpack.c.b16 %v1692, %v1688
    %v1726 = vsel %vm441, %v1606, 0
    %1728 = vmatprep.subr.bf16.mxu0 0
    %1729 = vmatpush1.bf16.msra.mxu0 0
    %1730 = vmatprep.subr.bf16.mxu0 0
    %1731 = vmatpush1.bf16.msra.mxu0 0
    %1732 = vmatprep.subr.bf16.mxu0 0
    %1733 = vmatpush1.bf16.msra.mxu0 0
    %1734 = vmatprep.subr.bf16.mxu0 0
    %1735 = vmatpush1.bf16.msra.mxu0 0
    %1736 = vmatprep.subr.bf16.mxu0 %v1706
    %1737 = vmatpush1.bf16.msra.mxu0 %v1705
    %1738 = vmatprep.subr.bf16.mxu0 %v1702
    %1739 = vmatpush1.bf16.msra.mxu0 %v1701
    %1740 = vmatprep.subr.bf16.mxu0 %v1698
    %1741 = vmatpush1.bf16.msra.mxu0 %v1697
    %1742 = vmatprep.subr.bf16.mxu0 %v1694
    %1743 = vmatpush1.bf16.msra.mxu0 %v1693
    %1744 = vmatprep.subr.bf16.mxu0 0
    %1745 = vmatpush2.bf16.msra.mxu0 0
    %1746 = vmatprep.subr.bf16.mxu0 0
    %1747 = vmatpush2.bf16.msra.mxu0 0
    %1748 = vmatprep.subr.bf16.mxu0 0
    %1749 = vmatpush2.bf16.msra.mxu0 0
    %1750 = vmatprep.subr.bf16.mxu0 0
    %1751 = vmatpush2.bf16.msra.mxu0 0
    %1752 = vmatprep.subr.bf16.mxu0 0
    %1753 = vmatpush2.bf16.msra.mxu0 0
    %1754 = vmatprep.subr.bf16.mxu0 0
    %1755 = vmatpush2.bf16.msra.mxu0 0
    %1756 = vmatprep.subr.bf16.mxu0 0
    %1757 = vmatpush2.bf16.msra.mxu0 0
    %1758 = vmatprep.subr.bf16.mxu0 0
    %1759 = vmatpush2.bf16.msra.mxu0 0
    %1760 = vmatprep.mubr.bf16.mxu0 0
    %1761 = vmatmul.mubr.bf16.gmra.mxu0 %v1726
    %v1762 = vpop.f32.mrf.mxu0
    %v1763 = vadd.f32 %v1628, %v1762
    %v1764 = vpop.f32.mrf.mxu0
    %v1765 = vadd.f32 %v1632, %v1764
    %v1766 = vpop.f32.mrf.mxu0
    %v1767 = vpop.f32.mrf.mxu0
    %1768 = vdwg.mxu0
    %1769 = vmatprep.subr.bf16.mxu0 0
    %1770 = vmatpush1.bf16.msra.mxu0 0
    %1771 = vmatprep.subr.bf16.mxu0 0
    %1772 = vmatpush1.bf16.msra.mxu0 0
    %1773 = vmatprep.subr.bf16.mxu0 0
    %1774 = vmatpush1.bf16.msra.mxu0 0
    %1775 = vmatprep.subr.bf16.mxu0 0
    %1776 = vmatpush1.bf16.msra.mxu0 0
    %1777 = vmatprep.subr.bf16.mxu0 %v1708
    %1778 = vmatpush1.bf16.msra.mxu0 %v1707
    %1779 = vmatprep.subr.bf16.mxu0 %v1704
    %1780 = vmatpush1.bf16.msra.mxu0 %v1703
    %1781 = vmatprep.subr.bf16.mxu0 %v1700
    %1782 = vmatpush1.bf16.msra.mxu0 %v1699
    %1783 = vmatprep.subr.bf16.mxu0 %v1696
    %1784 = vmatpush1.bf16.msra.mxu0 %v1695
    %1785 = vmatprep.subr.bf16.mxu0 0
    %1786 = vmatpush2.bf16.msra.mxu0 0
    %1787 = vmatprep.subr.bf16.mxu0 0
    %1788 = vmatpush2.bf16.msra.mxu0 0
    %1789 = vmatprep.subr.bf16.mxu0 0
    %1790 = vmatpush2.bf16.msra.mxu0 0
    %1791 = vmatprep.subr.bf16.mxu0 0
    %1792 = vmatpush2.bf16.msra.mxu0 0
    %1793 = vmatprep.subr.bf16.mxu0 0
    %1794 = vmatpush2.bf16.msra.mxu0 0
    %1795 = vmatprep.subr.bf16.mxu0 0
    %1796 = vmatpush2.bf16.msra.mxu0 0
    %1797 = vmatprep.subr.bf16.mxu0 0
    %1798 = vmatpush2.bf16.msra.mxu0 0
    %1799 = vmatprep.subr.bf16.mxu0 0
    %1800 = vmatpush2.bf16.msra.mxu0 0
    %1801 = vmatprep.mubr.bf16.mxu0 0
    %1802 = vmatmul.mubr.bf16.gmra.mxu0 %v1726
    %v1803 = vpop.f32.mrf.mxu0
    %v1804 = vadd.f32 %v1636, %v1803
    %v1805 = vpop.f32.mrf.mxu0
    %v1806 = vadd.f32 %v1640, %v1805
    %v1807 = vpop.f32.mrf.mxu0
    %v1808 = vpop.f32.mrf.mxu0
    %1809 = vdwg.mxu0
    %v1810 = vmax.f32 %v1763, 0.0
    %v1811 = vmax.f32 %v1765, 0.0
    %v1812 = vmax.f32 %v1804, 0.0
    %v1813 = vmax.f32 %v1806, 0.0
    %v1814 = vpack.c.bf16 %v1810, %v1810
    %v1815 = vpack.c.bf16 %v1811, %v1811
    %v1816 = vpack.c.bf16 %v1812, %v1812
    %v1817 = vpack.c.bf16 %v1813, %v1813
    %v1818 = vld [vmem:[%s9] sm:$0xff]
    %v1819 = vld [vmem:[%s9 + $0x8] sm:$0xf]
    %v1820 = vld [vmem:[%s9 + $0xc] sm:$0xff]
    %v1821 = vld [vmem:[%s9 + $0x14] sm:$0xf]
    %v1822 = vld [vmem:[%s9 + $0x18] sm:$0xff]
    %v1823 = vld [vmem:[%s9 + $0x20] sm:$0xf]
    %v1824 = vld [vmem:[%s9 + $0x24] sm:$0xff]
    %v1825 = vld [vmem:[%s9 + $0x2c] sm:$0xf]
    %v1826 = vld [vmem:[%s9 + $0x30] sm:$0xff]
    %v1827 = vld [vmem:[%s9 + $0x38] sm:$0xf]
    %v1828 = vld [vmem:[%s9 + $0x3c] sm:$0xff]
    %v1829 = vld [vmem:[%s9 + $0x44] sm:$0xf]
    %v1830 = vld [vmem:[%s9 + $0x48] sm:$0xff]
    %v1831 = vld [vmem:[%s9 + $0x50] sm:$0xf]
    %v1832 = vld [vmem:[%s9 + $0x54] sm:$0xff]
    %v1833 = vld [vmem:[%s9 + $0x5c] sm:$0xf]
    %v1834 = vld [vmem:[%s9 + $0x60] sm:$0xff]
    %v1835 = vld [vmem:[%s9 + $0x68] sm:$0xf]
    %v1836 = vld [vmem:[%s9 + $0x6c] sm:$0xff]
    %v1837 = vld [vmem:[%s9 + $0x74] sm:$0xf]
    %v1838 = vld [vmem:[%s9 + $0x78] sm:$0xff]
    %v1839 = vld [vmem:[%s9 + $0x80] sm:$0xf]
    %v1840 = vld [vmem:[%s9 + $0x84] sm:$0xff]
    %v1841 = vld [vmem:[%s9 + $0x8c] sm:$0xf]
    %v1842 = vld [vmem:[%s9 + $0x90] sm:$0xff]
    %v1843 = vld [vmem:[%s9 + $0x98] sm:$0xf]
    %v1844 = vld [vmem:[%s9 + $0x9c] sm:$0xff]
    %v1845 = vld [vmem:[%s9 + $0xa4] sm:$0xf]
    %v1846 = vld [vmem:[%s9 + $0xa8] sm:$0xff]
    %v1847 = vld [vmem:[%s9 + $0xb0] sm:$0xf]
    %v1848 = vld [vmem:[%s9 + $0xb4] sm:$0xff]
    %v1849 = vld [vmem:[%s9 + $0xbc] sm:$0xf]
    %v1850 = vld [vmem:[%s9 + $0xc0] sm:$0xff]
    %v1851 = vld [vmem:[%s9 + $0xc8] sm:$0xf]
    %v1852 = vld [vmem:[%s9 + $0xcc] sm:$0xff]
    %v1853 = vld [vmem:[%s9 + $0xd4] sm:$0xf]
    %v1854 = vld [vmem:[%s9 + $0xd8] sm:$0xff]
    %v1855 = vld [vmem:[%s9 + $0xe0] sm:$0xf]
    %v1856 = vld [vmem:[%s9 + $0xe4] sm:$0xff]
    %v1857 = vld [vmem:[%s9 + $0xec] sm:$0xf]
    %v1858 = vld [vmem:[%s9 + $0xf0] sm:$0xff]
    %v1859 = vld [vmem:[%s9 + $0xf8] sm:$0xf]
    %v1860 = vld [vmem:[%s9 + $0xfc] sm:$0xff]
    %v1861 = vld [vmem:[%s9 + $0x104] sm:$0xf]
    %v1862 = vld [vmem:[%s9 + $0x108] sm:$0xff]
    %v1863 = vld [vmem:[%s9 + $0x110] sm:$0xf]
    %v1864 = vld [vmem:[%s9 + $0x114] sm:$0xff]
    %v1865 = vld [vmem:[%s9 + $0x11c] sm:$0xf]
    %v1866 = vld [vmem:[%s9 + $0x120] sm:$0xff]
    %v1867 = vld [vmem:[%s9 + $0x128] sm:$0xf]
    %v1868 = vld [vmem:[%s9 + $0x12c] sm:$0xff]
    %v1869 = vld [vmem:[%s9 + $0x134] sm:$0xf]
    %v1870 = vld [vmem:[%s9 + $0x138] sm:$0xff]
    %v1871 = vld [vmem:[%s9 + $0x140] sm:$0xf]
    %v1872 = vld [vmem:[%s9 + $0x144] sm:$0xff]
    %v1873 = vld [vmem:[%s9 + $0x14c] sm:$0xf]
    %v1874 = vld [vmem:[%s9 + $0x150] sm:$0xff]
    %v1875 = vld [vmem:[%s9 + $0x158] sm:$0xf]
    %v1876 = vld [vmem:[%s9 + $0x15c] sm:$0xff]
    %v1877 = vld [vmem:[%s9 + $0x164] sm:$0xf]
    %v1878 = vld [vmem:[%s9 + $0x168] sm:$0xff]
    %v1879 = vld [vmem:[%s9 + $0x170] sm:$0xf]
    %v1880 = vld [vmem:[%s9 + $0x174] sm:$0xff]
    %v1881 = vld [vmem:[%s9 + $0x17c] sm:$0xf]
    %v1882 = vld [vmem:[%s9 + $0x180] sm:$0xff]
    %v1883 = vld [vmem:[%s9 + $0x188] sm:$0xf]
    %v1884 = vld [vmem:[%s9 + $0x18c] sm:$0xff]
    %v1885 = vld [vmem:[%s9 + $0x194] sm:$0xf]
    %v1886 = vld [vmem:[%s9 + $0x198] sm:$0xff]
    %v1887 = vld [vmem:[%s9 + $0x1a0] sm:$0xf]
    %v1888 = vld [vmem:[%s9 + $0x1a4] sm:$0xff]
    %v1889 = vld [vmem:[%s9 + $0x1ac] sm:$0xf]
    %v1890 = vld [vmem:[%s9 + $0x1b0] sm:$0xff]
    %v1891 = vld [vmem:[%s9 + $0x1b8] sm:$0xf]
    %v1892 = vld [vmem:[%s9 + $0x1bc] sm:$0xff]
    %v1893 = vld [vmem:[%s9 + $0x1c4] sm:$0xf]
    %v1894 = vld [vmem:[%s9 + $0x1c8] sm:$0xff]
    %v1895 = vld [vmem:[%s9 + $0x1d0] sm:$0xf]
    %v1896 = vld [vmem:[%s9 + $0x1d4] sm:$0xff]
    %v1897 = vld [vmem:[%s9 + $0x1dc] sm:$0xf]
    %v1898 = vld [vmem:[%s9 + $0x1e0] sm:$0xff]
    %v1899 = vld [vmem:[%s9 + $0x1e8] sm:$0xf]
    %v1900 = vld [vmem:[%s9 + $0x1ec] sm:$0xff]
    %v1901 = vld [vmem:[%s9 + $0x1f4] sm:$0xf]
    %v1902 = vld [vmem:[%s9 + $0x1f8] sm:$0xff]
    %v1903 = vld [vmem:[%s9 + $0x200] sm:$0xf]
    %v1904 = vld [vmem:[%s9 + $0x204] sm:$0xff]
    %v1905 = vld [vmem:[%s9 + $0x20c] sm:$0xf]
    %v1906 = vld [vmem:[%s9 + $0x210] sm:$0xff]
    %v1907 = vld [vmem:[%s9 + $0x218] sm:$0xf]
    %v1908 = vld [vmem:[%s9 + $0x21c] sm:$0xff]
    %v1909 = vld [vmem:[%s9 + $0x224] sm:$0xf]
    %v1910 = vld [vmem:[%s9 + $0x228] sm:$0xff]
    %v1911 = vld [vmem:[%s9 + $0x230] sm:$0xf]
    %v1912 = vld [vmem:[%s9 + $0x234] sm:$0xff]
    %v1913 = vld [vmem:[%s9 + $0x23c] sm:$0xf]
    %v1914 = vld [vmem:[%s9 + $0x240] sm:$0xff]
    %v1915 = vld [vmem:[%s9 + $0x248] sm:$0xf]
    %v1916 = vld [vmem:[%s9 + $0x24c] sm:$0xff]
    %v1917 = vld [vmem:[%s9 + $0x254] sm:$0xf]
    %v1918 = vld [vmem:[%s9 + $0x258] sm:$0xff]
    %v1919 = vld [vmem:[%s9 + $0x260] sm:$0xf]
    %v1920 = vld [vmem:[%s9 + $0x264] sm:$0xff]
    %v1921 = vld [vmem:[%s9 + $0x26c] sm:$0xf]
    %v1922 = vld [vmem:[%s9 + $0x270] sm:$0xff]
    %v1923 = vld [vmem:[%s9 + $0x278] sm:$0xf]
    %v1924 = vld [vmem:[%s9 + $0x27c] sm:$0xff]
    %v1925 = vld [vmem:[%s9 + $0x284] sm:$0xf]
    %v1926 = vld [vmem:[%s9 + $0x288] sm:$0xff]
    %v1927 = vld [vmem:[%s9 + $0x290] sm:$0xf]
    %v1928 = vld [vmem:[%s9 + $0x294] sm:$0xff]
    %v1929 = vld [vmem:[%s9 + $0x29c] sm:$0xf]
    %v1930 = vld [vmem:[%s9 + $0x2a0] sm:$0xff]
    %v1931 = vld [vmem:[%s9 + $0x2a8] sm:$0xf]
    %v1932 = vld [vmem:[%s9 + $0x2ac] sm:$0xff]
    %v1933 = vld [vmem:[%s9 + $0x2b4] sm:$0xf]
    %v1934 = vld [vmem:[%s9 + $0x2b8] sm:$0xff]
    %v1935 = vld [vmem:[%s9 + $0x2c0] sm:$0xf]
    %v1936 = vld [vmem:[%s9 + $0x2c4] sm:$0xff]
    %v1937 = vld [vmem:[%s9 + $0x2cc] sm:$0xf]
    %v1938 = vld [vmem:[%s9 + $0x2d0] sm:$0xff]
    %v1939 = vld [vmem:[%s9 + $0x2d8] sm:$0xf]
    %v1940 = vld [vmem:[%s9 + $0x2dc] sm:$0xff]
    %v1941 = vld [vmem:[%s9 + $0x2e4] sm:$0xf]
    %v1942 = vld [vmem:[%s9 + $0x2e8] sm:$0xff]
    %v1943 = vld [vmem:[%s9 + $0x2f0] sm:$0xf]
    %v1944 = vld [vmem:[%s9 + $0x2f4] sm:$0xff]
    %v1945 = vld [vmem:[%s9 + $0x2fc] sm:$0xf]
    %v1946 = vld [vmem:[%s10] sm:$0x7]
    %v1948 = vlaneseq
    %v1949 = vshrl.u32 %v1948, 7
    %v1950 = vsub.s32 0, %v1949
    %v1951 = vrot.slane %v1946, %v1950
    %v1952 = vlaneseq
    %v1953 = vshrl.u32 %v1952, 7
    %v1954 = vsub.s32 1, %v1953
    %v1955 = vrot.slane %v1946, %v1954
    %v1956 = vlaneseq
    %v1957 = vshrl.u32 %v1956, 7
    %v1958 = vsub.s32 2, %v1957
    %v1959 = vrot.slane %v1946, %v1958
    %v2091 = vunpack.c.l.b16 %v1818
    %v2092 = vunpack.c.h.b16 %v1818
    %v2093 = vunpack.c.l.b16 %v1819
    %v2094 = vunpack.c.l.b16 %v1820
    %v2095 = vunpack.c.h.b16 %v1820
    %v2096 = vunpack.c.l.b16 %v1821
    %v2097 = vunpack.c.l.b16 %v1822
    %v2098 = vunpack.c.h.b16 %v1822
    %v2099 = vunpack.c.l.b16 %v1823
    %v2100 = vunpack.c.l.b16 %v1824
    %v2101 = vunpack.c.h.b16 %v1824
    %v2102 = vunpack.c.l.b16 %v1825
    %v2103 = vunpack.c.l.b16 %v1826
    %v2104 = vunpack.c.h.b16 %v1826
    %v2105 = vunpack.c.l.b16 %v1827
    %v2106 = vunpack.c.l.b16 %v1828
    %v2107 = vunpack.c.h.b16 %v1828
    %v2108 = vunpack.c.l.b16 %v1829
    %v2109 = vunpack.c.l.b16 %v1830
    %v2110 = vunpack.c.h.b16 %v1830
    %v2111 = vunpack.c.l.b16 %v1831
    %v2112 = vunpack.c.l.b16 %v1832
    %v2113 = vunpack.c.h.b16 %v1832
    %v2114 = vunpack.c.l.b16 %v1833
    %v2115 = vunpack.c.l.b16 %v1834
    %v2116 = vunpack.c.h.b16 %v1834
    %v2117 = vunpack.c.l.b16 %v1835
    %v2118 = vunpack.c.l.b16 %v1836
    %v2119 = vunpack.c.h.b16 %v1836
    %v2120 = vunpack.c.l.b16 %v1837
    %v2121 = vunpack.c.l.b16 %v1838
    %v2122 = vunpack.c.h.b16 %v1838
    %v2123 = vunpack.c.l.b16 %v1839
    %v2124 = vunpack.c.l.b16 %v1840
    %v2125 = vunpack.c.h.b16 %v1840
    %v2126 = vunpack.c.l.b16 %v1841
    %v2127 = vunpack.c.l.b16 %v1842
    %v2128 = vunpack.c.h.b16 %v1842
    %v2129 = vunpack.c.l.b16 %v1843
    %v2130 = vunpack.c.l.b16 %v1844
    %v2131 = vunpack.c.h.b16 %v1844
    %v2132 = vunpack.c.l.b16 %v1845
    %v2133 = vunpack.c.l.b16 %v1846
    %v2134 = vunpack.c.h.b16 %v1846
    %v2135 = vunpack.c.l.b16 %v1847
    %v2136 = vunpack.c.l.b16 %v1848
    %v2137 = vunpack.c.h.b16 %v1848
    %v2138 = vunpack.c.l.b16 %v1849
    %v2139 = vunpack.c.l.b16 %v1850
    %v2140 = vunpack.c.h.b16 %v1850
    %v2141 = vunpack.c.l.b16 %v1851
    %v2142 = vunpack.c.l.b16 %v1852
    %v2143 = vunpack.c.h.b16 %v1852
    %v2144 = vunpack.c.l.b16 %v1853
    %v2145 = vunpack.c.l.b16 %v1854
    %v2146 = vunpack.c.h.b16 %v1854
    %v2147 = vunpack.c.l.b16 %v1855
    %v2148 = vunpack.c.l.b16 %v1856
    %v2149 = vunpack.c.h.b16 %v1856
    %v2150 = vunpack.c.l.b16 %v1857
    %v2151 = vunpack.c.l.b16 %v1858
    %v2152 = vunpack.c.h.b16 %v1858
    %v2153 = vunpack.c.l.b16 %v1859
    %v2154 = vunpack.c.l.b16 %v1860
    %v2155 = vunpack.c.h.b16 %v1860
    %v2156 = vunpack.c.l.b16 %v1861
    %v2157 = vunpack.c.l.b16 %v1862
    %v2158 = vunpack.c.h.b16 %v1862
    %v2159 = vunpack.c.l.b16 %v1863
    %v2160 = vunpack.c.l.b16 %v1864
    %v2161 = vunpack.c.h.b16 %v1864
    %v2162 = vunpack.c.l.b16 %v1865
    %v2163 = vunpack.c.l.b16 %v1866
    %v2164 = vunpack.c.h.b16 %v1866
    %v2165 = vunpack.c.l.b16 %v1867
    %v2166 = vunpack.c.l.b16 %v1868
    %v2167 = vunpack.c.h.b16 %v1868
    %v2168 = vunpack.c.l.b16 %v1869
    %v2169 = vunpack.c.l.b16 %v1870
    %v2170 = vunpack.c.h.b16 %v1870
    %v2171 = vunpack.c.l.b16 %v1871
    %v2172 = vunpack.c.l.b16 %v1872
    %v2173 = vunpack.c.h.b16 %v1872
    %v2174 = vunpack.c.l.b16 %v1873
    %v2175 = vunpack.c.l.b16 %v1874
    %v2176 = vunpack.c.h.b16 %v1874
    %v2177 = vunpack.c.l.b16 %v1875
    %v2178 = vunpack.c.l.b16 %v1876
    %v2179 = vunpack.c.h.b16 %v1876
    %v2180 = vunpack.c.l.b16 %v1877
    %v2181 = vunpack.c.l.b16 %v1878
    %v2182 = vunpack.c.h.b16 %v1878
    %v2183 = vunpack.c.l.b16 %v1879
    %v2184 = vunpack.c.l.b16 %v1880
    %v2185 = vunpack.c.h.b16 %v1880
    %v2186 = vunpack.c.l.b16 %v1881
    %v2187 = vunpack.c.l.b16 %v1882
    %v2188 = vunpack.c.h.b16 %v1882
    %v2189 = vunpack.c.l.b16 %v1883
    %v2190 = vunpack.c.l.b16 %v1884
    %v2191 = vunpack.c.h.b16 %v1884
    %v2192 = vunpack.c.l.b16 %v1885
    %v2193 = vunpack.c.l.b16 %v1886
    %v2194 = vunpack.c.h.b16 %v1886
    %v2195 = vunpack.c.l.b16 %v1887
    %v2196 = vunpack.c.l.b16 %v1888
    %v2197 = vunpack.c.h.b16 %v1888
    %v2198 = vunpack.c.l.b16 %v1889
    %v2199 = vunpack.c.l.b16 %v1890
    %v2200 = vunpack.c.h.b16 %v1890
    %v2201 = vunpack.c.l.b16 %v1891
    %v2202 = vunpack.c.l.b16 %v1892
    %v2203 = vunpack.c.h.b16 %v1892
    %v2204 = vunpack.c.l.b16 %v1893
    %v2205 = vunpack.c.l.b16 %v1894
    %v2206 = vunpack.c.h.b16 %v1894
    %v2207 = vunpack.c.l.b16 %v1895
    %v2208 = vunpack.c.l.b16 %v1896
    %v2209 = vunpack.c.h.b16 %v1896
    %v2210 = vunpack.c.l.b16 %v1897
    %v2211 = vunpack.c.l.b16 %v1898
    %v2212 = vunpack.c.h.b16 %v1898
    %v2213 = vunpack.c.l.b16 %v1899
    %v2214 = vunpack.c.l.b16 %v1900
    %v2215 = vunpack.c.h.b16 %v1900
    %v2216 = vunpack.c.l.b16 %v1901
    %v2217 = vunpack.c.l.b16 %v1902
    %v2218 = vunpack.c.h.b16 %v1902
    %v2219 = vunpack.c.l.b16 %v1903
    %v2220 = vunpack.c.l.b16 %v1904
    %v2221 = vunpack.c.h.b16 %v1904
    %v2222 = vunpack.c.l.b16 %v1905
    %v2223 = vunpack.c.l.b16 %v1906
    %v2224 = vunpack.c.h.b16 %v1906
    %v2225 = vunpack.c.l.b16 %v1907
    %v2226 = vunpack.c.l.b16 %v1908
    %v2227 = vunpack.c.h.b16 %v1908
    %v2228 = vunpack.c.l.b16 %v1909
    %v2229 = vunpack.c.l.b16 %v1910
    %v2230 = vunpack.c.h.b16 %v1910
    %v2231 = vunpack.c.l.b16 %v1911
    %v2232 = vunpack.c.l.b16 %v1912
    %v2233 = vunpack.c.h.b16 %v1912
    %v2234 = vunpack.c.l.b16 %v1913
    %v2235 = vunpack.c.l.b16 %v1914
    %v2236 = vunpack.c.h.b16 %v1914
    %v2237 = vunpack.c.l.b16 %v1915
    %v2238 = vunpack.c.l.b16 %v1916
    %v2239 = vunpack.c.h.b16 %v1916
    %v2240 = vunpack.c.l.b16 %v1917
    %v2241 = vunpack.c.l.b16 %v1918
    %v2242 = vunpack.c.h.b16 %v1918
    %v2243 = vunpack.c.l.b16 %v1919
    %v2244 = vunpack.c.l.b16 %v1920
    %v2245 = vunpack.c.h.b16 %v1920
    %v2246 = vunpack.c.l.b16 %v1921
    %v2247 = vunpack.c.l.b16 %v1922
    %v2248 = vunpack.c.h.b16 %v1922
    %v2249 = vunpack.c.l.b16 %v1923
    %v2250 = vunpack.c.l.b16 %v1924
    %v2251 = vunpack.c.h.b16 %v1924
    %v2252 = vunpack.c.l.b16 %v1925
    %v2253 = vunpack.c.l.b16 %v1926
    %v2254 = vunpack.c.h.b16 %v1926
    %v2255 = vunpack.c.l.b16 %v1927
    %v2256 = vunpack.c.l.b16 %v1928
    %v2257 = vunpack.c.h.b16 %v1928
    %v2258 = vunpack.c.l.b16 %v1929
    %v2259 = vunpack.c.l.b16 %v1930
    %v2260 = vunpack.c.h.b16 %v1930
    %v2261 = vunpack.c.l.b16 %v1931
    %v2262 = vunpack.c.l.b16 %v1932
    %v2263 = vunpack.c.h.b16 %v1932
    %v2264 = vunpack.c.l.b16 %v1933
    %v2265 = vunpack.c.l.b16 %v1934
    %v2266 = vunpack.c.h.b16 %v1934
    %v2267 = vunpack.c.l.b16 %v1935
    %v2268 = vunpack.c.l.b16 %v1936
    %v2269 = vunpack.c.h.b16 %v1936
    %v2270 = vunpack.c.l.b16 %v1937
    %v2271 = vunpack.c.l.b16 %v1938
    %v2272 = vunpack.c.h.b16 %v1938
    %v2273 = vunpack.c.l.b16 %v1939
    %v2274 = vunpack.c.l.b16 %v1940
    %v2275 = vunpack.c.h.b16 %v1940
    %v2276 = vunpack.c.l.b16 %v1941
    %v2277 = vunpack.c.l.b16 %v1942
    %v2278 = vunpack.c.h.b16 %v1942
    %v2279 = vunpack.c.l.b16 %v1943
    %v2280 = vunpack.c.l.b16 %v1944
    %v2281 = vunpack.c.h.b16 %v1944
    %v2282 = vunpack.c.l.b16 %v1945
    %v2283 = vpack.c.b16 %v2094, %v2091
    %v2284 = vpack.c.b16 %v2095, %v2092
    %v2285 = vpack.c.b16 %v2096, %v2093
    %v2286 = vpack.c.b16 %v2100, %v2097
    %v2287 = vpack.c.b16 %v2101, %v2098
    %v2288 = vpack.c.b16 %v2102, %v2099
    %v2289 = vpack.c.b16 %v2106, %v2103
    %v2290 = vpack.c.b16 %v2107, %v2104
    %v2291 = vpack.c.b16 %v2108, %v2105
    %v2292 = vpack.c.b16 %v2112, %v2109
    %v2293 = vpack.c.b16 %v2113, %v2110
    %v2294 = vpack.c.b16 %v2114, %v2111
    %v2295 = vpack.c.b16 %v2118, %v2115
    %v2296 = vpack.c.b16 %v2119, %v2116
    %v2297 = vpack.c.b16 %v2120, %v2117
    %v2298 = vpack.c.b16 %v2124, %v2121
    %v2299 = vpack.c.b16 %v2125, %v2122
    %v2300 = vpack.c.b16 %v2126, %v2123
    %v2301 = vpack.c.b16 %v2130, %v2127
    %v2302 = vpack.c.b16 %v2131, %v2128
    %v2303 = vpack.c.b16 %v2132, %v2129
    %v2304 = vpack.c.b16 %v2136, %v2133
    %v2305 = vpack.c.b16 %v2137, %v2134
    %v2306 = vpack.c.b16 %v2138, %v2135
    %v2307 = vpack.c.b16 %v2142, %v2139
    %v2308 = vpack.c.b16 %v2143, %v2140
    %v2309 = vpack.c.b16 %v2144, %v2141
    %v2310 = vpack.c.b16 %v2148, %v2145
    %v2311 = vpack.c.b16 %v2149, %v2146
    %v2312 = vpack.c.b16 %v2150, %v2147
    %v2313 = vpack.c.b16 %v2154, %v2151
    %v2314 = vpack.c.b16 %v2155, %v2152
    %v2315 = vpack.c.b16 %v2156, %v2153
    %v2316 = vpack.c.b16 %v2160, %v2157
    %v2317 = vpack.c.b16 %v2161, %v2158
    %v2318 = vpack.c.b16 %v2162, %v2159
    %v2319 = vpack.c.b16 %v2166, %v2163
    %v2320 = vpack.c.b16 %v2167, %v2164
    %v2321 = vpack.c.b16 %v2168, %v2165
    %v2322 = vpack.c.b16 %v2172, %v2169
    %v2323 = vpack.c.b16 %v2173, %v2170
    %v2324 = vpack.c.b16 %v2174, %v2171
    %v2325 = vpack.c.b16 %v2178, %v2175
    %v2326 = vpack.c.b16 %v2179, %v2176
    %v2327 = vpack.c.b16 %v2180, %v2177
    %v2328 = vpack.c.b16 %v2184, %v2181
    %v2329 = vpack.c.b16 %v2185, %v2182
    %v2330 = vpack.c.b16 %v2186, %v2183
    %v2331 = vpack.c.b16 %v2190, %v2187
    %v2332 = vpack.c.b16 %v2191, %v2188
    %v2333 = vpack.c.b16 %v2192, %v2189
    %v2334 = vpack.c.b16 %v2196, %v2193
    %v2335 = vpack.c.b16 %v2197, %v2194
    %v2336 = vpack.c.b16 %v2198, %v2195
    %v2337 = vpack.c.b16 %v2202, %v2199
    %v2338 = vpack.c.b16 %v2203, %v2200
    %v2339 = vpack.c.b16 %v2204, %v2201
    %v2340 = vpack.c.b16 %v2208, %v2205
    %v2341 = vpack.c.b16 %v2209, %v2206
    %v2342 = vpack.c.b16 %v2210, %v2207
    %v2343 = vpack.c.b16 %v2214, %v2211
    %v2344 = vpack.c.b16 %v2215, %v2212
    %v2345 = vpack.c.b16 %v2216, %v2213
    %v2346 = vpack.c.b16 %v2220, %v2217
    %v2347 = vpack.c.b16 %v2221, %v2218
    %v2348 = vpack.c.b16 %v2222, %v2219
    %v2349 = vpack.c.b16 %v2226, %v2223
    %v2350 = vpack.c.b16 %v2227, %v2224
    %v2351 = vpack.c.b16 %v2228, %v2225
    %v2352 = vpack.c.b16 %v2232, %v2229
    %v2353 = vpack.c.b16 %v2233, %v2230
    %v2354 = vpack.c.b16 %v2234, %v2231
    %v2355 = vpack.c.b16 %v2238, %v2235
    %v2356 = vpack.c.b16 %v2239, %v2236
    %v2357 = vpack.c.b16 %v2240, %v2237
    %v2358 = vpack.c.b16 %v2244, %v2241
    %v2359 = vpack.c.b16 %v2245, %v2242
    %v2360 = vpack.c.b16 %v2246, %v2243
    %v2361 = vpack.c.b16 %v2250, %v2247
    %v2362 = vpack.c.b16 %v2251, %v2248
    %v2363 = vpack.c.b16 %v2252, %v2249
    %v2364 = vpack.c.b16 %v2256, %v2253
    %v2365 = vpack.c.b16 %v2257, %v2254
    %v2366 = vpack.c.b16 %v2258, %v2255
    %v2367 = vpack.c.b16 %v2262, %v2259
    %v2368 = vpack.c.b16 %v2263, %v2260
    %v2369 = vpack.c.b16 %v2264, %v2261
    %v2370 = vpack.c.b16 %v2268, %v2265
    %v2371 = vpack.c.b16 %v2269, %v2266
    %v2372 = vpack.c.b16 %v2270, %v2267
    %v2373 = vpack.c.b16 %v2274, %v2271
    %v2374 = vpack.c.b16 %v2275, %v2272
    %v2375 = vpack.c.b16 %v2276, %v2273
    %v2376 = vpack.c.b16 %v2280, %v2277
    %v2377 = vpack.c.b16 %v2281, %v2278
    %v2378 = vpack.c.b16 %v2282, %v2279
    %2475 = vmatprep.subr.bf16.mxu0 %v2305
    %2476 = vmatpush1.bf16.msra.mxu0 %v2304
    %2477 = vmatprep.subr.bf16.mxu0 %v2302
    %2478 = vmatpush1.bf16.msra.mxu0 %v2301
    %2479 = vmatprep.subr.bf16.mxu0 %v2299
    %2480 = vmatpush1.bf16.msra.mxu0 %v2298
    %2481 = vmatprep.subr.bf16.mxu0 %v2296
    %2482 = vmatpush1.bf16.msra.mxu0 %v2295
    %2483 = vmatprep.subr.bf16.mxu0 %v2293
    %2484 = vmatpush1.bf16.msra.mxu0 %v2292
    %2485 = vmatprep.subr.bf16.mxu0 %v2290
    %2486 = vmatpush1.bf16.msra.mxu0 %v2289
    %2487 = vmatprep.subr.bf16.mxu0 %v2287
    %2488 = vmatpush1.bf16.msra.mxu0 %v2286
    %2489 = vmatprep.subr.bf16.mxu0 %v2284
    %2490 = vmatpush1.bf16.msra.mxu0 %v2283
    %2491 = vmatprep.subr.bf16.mxu0 %v2329
    %2492 = vmatpush2.bf16.msra.mxu0 %v2328
    %2493 = vmatprep.subr.bf16.mxu0 %v2326
    %2494 = vmatpush2.bf16.msra.mxu0 %v2325
    %2495 = vmatprep.subr.bf16.mxu0 %v2323
    %2496 = vmatpush2.bf16.msra.mxu0 %v2322
    %2497 = vmatprep.subr.bf16.mxu0 %v2320
    %2498 = vmatpush2.bf16.msra.mxu0 %v2319
    %2499 = vmatprep.subr.bf16.mxu0 %v2317
    %2500 = vmatpush2.bf16.msra.mxu0 %v2316
    %2501 = vmatprep.subr.bf16.mxu0 %v2314
    %2502 = vmatpush2.bf16.msra.mxu0 %v2313
    %2503 = vmatprep.subr.bf16.mxu0 %v2311
    %2504 = vmatpush2.bf16.msra.mxu0 %v2310
    %2505 = vmatprep.subr.bf16.mxu0 %v2308
    %2506 = vmatpush2.bf16.msra.mxu0 %v2307
    %2507 = vmatprep.mubr.bf16.mxu0 %v1815
    %2508 = vmatmul.mubr.bf16.gmra.mxu0 %v1814
    %v2509 = vpop.f32.mrf.mxu0
    %v2510 = vadd.f32 %v1951, %v2509
    %v2511 = vpop.f32.mrf.mxu0
    %v2512 = vadd.f32 %v1955, %v2511
    %v2513 = vpop.f32.mrf.mxu0
    %v2514 = vpop.f32.mrf.mxu0
    %2515 = vdwg.mxu0
    %2516 = vmatprep.subr.bf16.mxu0 %v2353
    %2517 = vmatpush1.bf16.msra.mxu0 %v2352
    %2518 = vmatprep.subr.bf16.mxu0 %v2350
    %2519 = vmatpush1.bf16.msra.mxu0 %v2349
    %2520 = vmatprep.subr.bf16.mxu0 %v2347
    %2521 = vmatpush1.bf16.msra.mxu0 %v2346
    %2522 = vmatprep.subr.bf16.mxu0 %v2344
    %2523 = vmatpush1.bf16.msra.mxu0 %v2343
    %2524 = vmatprep.subr.bf16.mxu0 %v2341
    %2525 = vmatpush1.bf16.msra.mxu0 %v2340
    %2526 = vmatprep.subr.bf16.mxu0 %v2338
    %2527 = vmatpush1.bf16.msra.mxu0 %v2337
    %2528 = vmatprep.subr.bf16.mxu0 %v2335
    %2529 = vmatpush1.bf16.msra.mxu0 %v2334
    %2530 = vmatprep.subr.bf16.mxu0 %v2332
    %2531 = vmatpush1.bf16.msra.mxu0 %v2331
    %2532 = vmatprep.subr.bf16.mxu0 %v2377
    %2533 = vmatpush2.bf16.msra.mxu0 %v2376
    %2534 = vmatprep.subr.bf16.mxu0 %v2374
    %2535 = vmatpush2.bf16.msra.mxu0 %v2373
    %2536 = vmatprep.subr.bf16.mxu0 %v2371
    %2537 = vmatpush2.bf16.msra.mxu0 %v2370
    %2538 = vmatprep.subr.bf16.mxu0 %v2368
    %2539 = vmatpush2.bf16.msra.mxu0 %v2367
    %2540 = vmatprep.subr.bf16.mxu0 %v2365
    %2541 = vmatpush2.bf16.msra.mxu0 %v2364
    %2542 = vmatprep.subr.bf16.mxu0 %v2362
    %2543 = vmatpush2.bf16.msra.mxu0 %v2361
    %2544 = vmatprep.subr.bf16.mxu0 %v2359
    %2545 = vmatpush2.bf16.msra.mxu0 %v2358
    %2546 = vmatprep.subr.bf16.mxu0 %v2356
    %2547 = vmatpush2.bf16.msra.mxu0 %v2355
    %2548 = vmatprep.mubr.bf16.mxu0 %v1817
    %2549 = vmatmul.mubr.bf16.gmra.mxu0 %v1816
    %v2550 = vpop.f32.mrf.mxu0
    %v2551 = vadd.f32 %v2510, %v2550
    %v2552 = vpop.f32.mrf.mxu0
    %v2553 = vadd.f32 %v2512, %v2552
    %v2554 = vpop.f32.mrf.mxu0
    %v2555 = vpop.f32.mrf.mxu0
    %2556 = vdwg.mxu0
    %2557 = vmatprep.subr.bf16.mxu0 0
    %2558 = vmatpush1.bf16.msra.mxu0 %v2306
    %2559 = vmatprep.subr.bf16.mxu0 0
    %2560 = vmatpush1.bf16.msra.mxu0 %v2303
    %2561 = vmatprep.subr.bf16.mxu0 0
    %2562 = vmatpush1.bf16.msra.mxu0 %v2300
    %2563 = vmatprep.subr.bf16.mxu0 0
    %2564 = vmatpush1.bf16.msra.mxu0 %v2297
    %2565 = vmatprep.subr.bf16.mxu0 0
    %2566 = vmatpush1.bf16.msra.mxu0 %v2294
    %2567 = vmatprep.subr.bf16.mxu0 0
    %2568 = vmatpush1.bf16.msra.mxu0 %v2291
    %2569 = vmatprep.subr.bf16.mxu0 0
    %2570 = vmatpush1.bf16.msra.mxu0 %v2288
    %2571 = vmatprep.subr.bf16.mxu0 0
    %2572 = vmatpush1.bf16.msra.mxu0 %v2285
    %2573 = vmatprep.subr.bf16.mxu0 0
    %2574 = vmatpush2.bf16.msra.mxu0 %v2330
    %2575 = vmatprep.subr.bf16.mxu0 0
    %2576 = vmatpush2.bf16.msra.mxu0 %v2327
    %2577 = vmatprep.subr.bf16.mxu0 0
    %2578 = vmatpush2.bf16.msra.mxu0 %v2324
    %2579 = vmatprep.subr.bf16.mxu0 0
    %2580 = vmatpush2.bf16.msra.mxu0 %v2321
    %2581 = vmatprep.subr.bf16.mxu0 0
    %2582 = vmatpush2.bf16.msra.mxu0 %v2318
    %2583 = vmatprep.subr.bf16.mxu0 0
    %2584 = vmatpush2.bf16.msra.mxu0 %v2315
    %2585 = vmatprep.subr.bf16.mxu0 0
    %2586 = vmatpush2.bf16.msra.mxu0 %v2312
    %2587 = vmatprep.subr.bf16.mxu0 0
    %2588 = vmatpush2.bf16.msra.mxu0 %v2309
    %2589 = vmatprep.mubr.bf16.mxu0 %v1815
    %2590 = vmatmul.mubr.bf16.gmra.mxu0 %v1814
    %v2591 = vpop.f32.mrf.mxu0
    %v2592 = vadd.f32 %v1959, %v2591
    %v2593 = vpop.f32.mrf.mxu0
    %v2594 = vpop.f32.mrf.mxu0
    %v2595 = vpop.f32.mrf.mxu0
    %2596 = vdwg.mxu0
    %2597 = vmatprep.subr.bf16.mxu0 0
    %2598 = vmatpush1.bf16.msra.mxu0 %v2354
    %2599 = vmatprep.subr.bf16.mxu0 0
    %2600 = vmatpush1.bf16.msra.mxu0 %v2351
    %2601 = vmatprep.subr.bf16.mxu0 0
    %2602 = vmatpush1.bf16.msra.mxu0 %v2348
    %2603 = vmatprep.subr.bf16.mxu0 0
    %2604 = vmatpush1.bf16.msra.mxu0 %v2345
    %2605 = vmatprep.subr.bf16.mxu0 0
    %2606 = vmatpush1.bf16.msra.mxu0 %v2342
    %2607 = vmatprep.subr.bf16.mxu0 0
    %2608 = vmatpush1.bf16.msra.mxu0 %v2339
    %2609 = vmatprep.subr.bf16.mxu0 0
    %2610 = vmatpush1.bf16.msra.mxu0 %v2336
    %2611 = vmatprep.subr.bf16.mxu0 0
    %2612 = vmatpush1.bf16.msra.mxu0 %v2333
    %2613 = vmatprep.subr.bf16.mxu0 0
    %2614 = vmatpush2.bf16.msra.mxu0 %v2378
    %2615 = vmatprep.subr.bf16.mxu0 0
    %2616 = vmatpush2.bf16.msra.mxu0 %v2375
    %2617 = vmatprep.subr.bf16.mxu0 0
    %2618 = vmatpush2.bf16.msra.mxu0 %v2372
    %2619 = vmatprep.subr.bf16.mxu0 0
    %2620 = vmatpush2.bf16.msra.mxu0 %v2369
    %2621 = vmatprep.subr.bf16.mxu0 0
    %2622 = vmatpush2.bf16.msra.mxu0 %v2366
    %2623 = vmatprep.subr.bf16.mxu0 0
    %2624 = vmatpush2.bf16.msra.mxu0 %v2363
    %2625 = vmatprep.subr.bf16.mxu0 0
    %2626 = vmatpush2.bf16.msra.mxu0 %v2360
    %2627 = vmatprep.subr.bf16.mxu0 0
    %2628 = vmatpush2.bf16.msra.mxu0 %v2357
    %2629 = vmatprep.mubr.bf16.mxu0 %v1817
    %2630 = vmatmul.mubr.bf16.gmra.mxu0 %v1816
    %v2631 = vpop.f32.mrf.mxu0
    %v2632 = vadd.f32 %v2592, %v2631
    %v2633 = vpop.f32.mrf.mxu0
    %v2634 = vpop.f32.mrf.mxu0
    %v2635 = vpop.f32.mrf.mxu0
    %2636 = vdwg.mxu0
    %2638 = vrot.lane.b32.xlu0 %v2551, 77
    %v2639 = vpop.permute.xlu0 %2638
    %v2641 = vadd.f32 %v2551, %v2639
    %2643 = vrot.lane.b32.xlu0 %v2551, 26
    %v2644 = vpop.permute.xlu0 %2643
    %2645 = vrot.lane.b32.xlu0 %v2553, 26
    %v2646 = vpop.permute.xlu0 %2645
    %vm2647 = vcmask 211968
    %v2648 = vsel %vm2647, %v2644, %v2646
    %v2650 = vadd.f32 %v2641, %v2648
    %2651 = vrot.lane.b32.xlu0 %v2553, 103
    %v2652 = vpop.permute.xlu0 %2651
    %v2654 = vadd.f32 %v2650, %v2652
    %2655 = vrot.lane.b32.xlu0 %v2553, 52
    %v2656 = vpop.permute.xlu0 %2655
    %v2658 = vadd.f32 %v2654, %v2656
    %v2659 = vmul.f32 %v2658, 0.2
    %v2660 = vld [vmem:[%s11] sm:$0x1]
    %2661 = vrot.lane.b32.xlu0 %v2551, 127
    %v2662 = vpop.permute.xlu0 %2661
    %v2664 = vadd.f32 %v2553, %v2662
    %v2665 = vadd.f32 %v2632, %v2662
    %2667 = vrot.lane.b32.xlu0 %v2659, 127
    %v2668 = vpop.permute.xlu0 %2667
    %v2670 = vsub.f32 %v2664, %v2668
    %v2671 = vsub.f32 %v2665, %v2668
    %vm2672 = vcmask 1042424
    %v2673 = vsel %vm2672, %v2670, -inf
    %vm2674 = vcmask 402432
    %v2675 = vsel %vm2674, %v2671, -inf
    %v2676 = vmax.f32 %v2673, %v2675
    %2677 = vmax.xlane.f32.xlu0 %v2676
    %v2678 = vpop.xlane.xlu0 %2677
    %v2679 = vsub.f32 %v2670, %v2678
    %v2680 = vsub.f32 %v2671, %v2678
    %v2681 = vmul.f32 %v2679, 1.442695
    %v2682 = vpow.pop %v2681
    %v2683 = vmul.f32 %v2680, 1.442695
    %v2684 = vpow.pop %v2683
    %2687 = vrot.lane.b32.xlu0 %v2682, 1
    %v2688 = vpop.permute.xlu0 %2687
    %2689 = vrot.lane.b32.xlu0 %v2684, 1
    %v2690 = vpop.permute.xlu0 %2689
    %vm2691 = vcmask 7168
    %v2692 = vsel %vm2691, %v2688, %v2690
    %vm2694 = vcmask 410624
    %v2695 = vsel %vm2694, %v2692, 0.0
    %2696 = vadd.xlane.f32.xlu0 %v2695
    %v2697 = vpop.xlane.xlu0 %2696
    %v2698 = vrcp.pop %v2697
    %v2699 = vmul.f32 %v2682, %v2698
    %v2700 = vmul.f32 %v2684, %v2698
    %v2701 = vmax.f32 %v2699, 0.001
    %v2702 = vmax.f32 %v2700, 0.001
    %v2704 = vlaneseq
    %v2705 = vshrl.u32 %v2704, 7
    %v2706 = vsub.s32 0, %v2705
    %v2707 = vrot.slane %v2660, %v2706
    %2708 = vrot.lane.b32.xlu0 %v2707, 127
    %v2709 = vpop.permute.xlu0 %2708
    %v2711 = vmul.f32 %v2701, %v2709
    %v2712 = vmul.f32 %v2702, %v2709
    %2715 = vrot.lane.b32.xlu0 %v2711, 1
    %v2716 = vpop.permute.xlu0 %2715
    %2717 = vrot.lane.b32.xlu0 %v2712, 1
    %v2718 = vpop.permute.xlu0 %2717
    %v2719 = vsel %vm2691, %v2716, %v2718
    %v2721 = vsel %vm2694, %v2719, 0.0
    %2722 = vadd.xlane.f32.xlu0 %v2721
    %v2723 = vpop.xlane.xlu0 %2722
    %2724 = vrot.lane.b32.xlu0 %v2551, 76
    %v2725 = vpop.permute.xlu0 %2724
    %v2727 = vadd.f32 %v2553, %v2725
    %v2728 = vadd.f32 %v2632, %v2725
    %v2729 = vsub.f32 %v2727, %v2668
    %v2730 = vsub.f32 %v2728, %v2668
    %v2731 = vsel %vm2672, %v2729, -inf
    %v2732 = vsel %vm2674, %v2730, -inf
    %v2733 = vmax.f32 %v2731, %v2732
    %2734 = vmax.xlane.f32.xlu0 %v2733
    %v2735 = vpop.xlane.xlu0 %2734
    %v2736 = vsub.f32 %v2729, %v2735
    %v2737 = vsub.f32 %v2730, %v2735
    %v2738 = vmul.f32 %v2736, 1.442695
    %v2739 = vpow.pop %v2738
    %v2740 = vmul.f32 %v2737, 1.442695
    %v2741 = vpow.pop %v2740
    %2744 = vrot.lane.b32.xlu0 %v2739, 1
    %v2745 = vpop.permute.xlu0 %2744
    %2746 = vrot.lane.b32.xlu0 %v2741, 1
    %v2747 = vpop.permute.xlu0 %2746
    %v2748 = vsel %vm2691, %v2745, %v2747
    %v2750 = vsel %vm2694, %v2748, 0.0
    %2751 = vadd.xlane.f32.xlu0 %v2750
    %v2752 = vpop.xlane.xlu0 %2751
    %v2753 = vrcp.pop %v2752
    %v2754 = vmul.f32 %v2739, %v2753
    %v2755 = vmul.f32 %v2741, %v2753
    %v2756 = vmax.f32 %v2754, 0.001
    %v2757 = vmax.f32 %v2755, 0.001
    %v2758 = vmul.f32 %v2756, %v2709
    %v2759 = vmul.f32 %v2757, %v2709
    %2762 = vrot.lane.b32.xlu0 %v2758, 1
    %v2763 = vpop.permute.xlu0 %2762
    %2764 = vrot.lane.b32.xlu0 %v2759, 1
    %v2765 = vpop.permute.xlu0 %2764
    %v2766 = vsel %vm2691, %v2763, %v2765
    %v2768 = vsel %vm2694, %v2766, 0.0
    %2769 = vadd.xlane.f32.xlu0 %v2768
    %v2770 = vpop.xlane.xlu0 %2769
    %2771 = vrot.lane.b32.xlu0 %v2551, 25
    %v2772 = vpop.permute.xlu0 %2771
    %2773 = vrot.lane.b32.xlu0 %v2553, 25
    %v2774 = vpop.permute.xlu0 %2773
    %vm2775 = vcmask 203776
    %v2776 = vsel %vm2775, %v2772, %v2774
    %v2779 = vadd.f32 %v2553, %v2772
    %v2780 = vadd.f32 %v2632, %v2776
    %v2781 = vsub.f32 %v2779, %v2668
    %v2782 = vsub.f32 %v2780, %v2668
    %v2783 = vsel %vm2672, %v2781, -inf
    %v2784 = vsel %vm2674, %v2782, -inf
    %v2785 = vmax.f32 %v2783, %v2784
    %2786 = vmax.xlane.f32.xlu0 %v2785
    %v2787 = vpop.xlane.xlu0 %2786
    %v2788 = vsub.f32 %v2781, %v2787
    %v2789 = vsub.f32 %v2782, %v2787
    %v2790 = vmul.f32 %v2788, 1.442695
    %v2791 = vpow.pop %v2790
    %v2792 = vmul.f32 %v2789, 1.442695
    %v2793 = vpow.pop %v2792
    %2796 = vrot.lane.b32.xlu0 %v2791, 1
    %v2797 = vpop.permute.xlu0 %2796
    %2798 = vrot.lane.b32.xlu0 %v2793, 1
    %v2799 = vpop.permute.xlu0 %2798
    %v2800 = vsel %vm2691, %v2797, %v2799
    %v2802 = vsel %vm2694, %v2800, 0.0
    %2803 = vadd.xlane.f32.xlu0 %v2802
    %v2804 = vpop.xlane.xlu0 %2803
    %v2805 = vrcp.pop %v2804
    %v2806 = vmul.f32 %v2791, %v2805
    %v2807 = vmul.f32 %v2793, %v2805
    %v2808 = vmax.f32 %v2806, 0.001
    %v2809 = vmax.f32 %v2807, 0.001
    %v2810 = vmul.f32 %v2808, %v2709
    %v2811 = vmul.f32 %v2809, %v2709
    %2814 = vrot.lane.b32.xlu0 %v2810, 1
    %v2815 = vpop.permute.xlu0 %2814
    %2816 = vrot.lane.b32.xlu0 %v2811, 1
    %v2817 = vpop.permute.xlu0 %2816
    %v2818 = vsel %vm2691, %v2815, %v2817
    %v2820 = vsel %vm2694, %v2818, 0.0
    %2821 = vadd.xlane.f32.xlu0 %v2820
    %v2822 = vpop.xlane.xlu0 %2821
    %2823 = vrot.lane.b32.xlu0 %v2553, 102
    %v2824 = vpop.permute.xlu0 %2823
    %v2826 = vadd.f32 %v2553, %v2824
    %v2827 = vadd.f32 %v2632, %v2824
    %v2828 = vsub.f32 %v2826, %v2668
    %v2829 = vsub.f32 %v2827, %v2668
    %v2830 = vsel %vm2672, %v2828, -inf
    %v2831 = vsel %vm2674, %v2829, -inf
    %v2832 = vmax.f32 %v2830, %v2831
    %2833 = vmax.xlane.f32.xlu0 %v2832
    %v2834 = vpop.xlane.xlu0 %2833
    %v2835 = vsub.f32 %v2828, %v2834
    %v2836 = vsub.f32 %v2829, %v2834
    %v2837 = vmul.f32 %v2835, 1.442695
    %v2838 = vpow.pop %v2837
    %v2839 = vmul.f32 %v2836, 1.442695
    %v2840 = vpow.pop %v2839
    %2843 = vrot.lane.b32.xlu0 %v2838, 1
    %v2844 = vpop.permute.xlu0 %2843
    %2845 = vrot.lane.b32.xlu0 %v2840, 1
    %v2846 = vpop.permute.xlu0 %2845
    %v2847 = vsel %vm2691, %v2844, %v2846
    %v2849 = vsel %vm2694, %v2847, 0.0
    %2850 = vadd.xlane.f32.xlu0 %v2849
    %v2851 = vpop.xlane.xlu0 %2850
    %v2852 = vrcp.pop %v2851
    %v2853 = vmul.f32 %v2838, %v2852
    %v2854 = vmul.f32 %v2840, %v2852
    %v2855 = vmax.f32 %v2853, 0.001
    %v2856 = vmax.f32 %v2854, 0.001
    %v2857 = vmul.f32 %v2855, %v2709
    %v2858 = vmul.f32 %v2856, %v2709
    %2861 = vrot.lane.b32.xlu0 %v2857, 1
    %v2862 = vpop.permute.xlu0 %2861
    %2863 = vrot.lane.b32.xlu0 %v2858, 1
    %v2864 = vpop.permute.xlu0 %2863
    %v2865 = vsel %vm2691, %v2862, %v2864
    %v2867 = vsel %vm2694, %v2865, 0.0
    %2868 = vadd.xlane.f32.xlu0 %v2867
    %v2869 = vpop.xlane.xlu0 %2868
    %2870 = vrot.lane.b32.xlu0 %v2553, 51
    %v2871 = vpop.permute.xlu0 %2870
    %v2873 = vadd.f32 %v2553, %v2871
    %v2874 = vadd.f32 %v2632, %v2871
    %v2875 = vsub.f32 %v2873, %v2668
    %v2876 = vsub.f32 %v2874, %v2668
    %v2877 = vsel %vm2672, %v2875, -inf
    %v2878 = vsel %vm2674, %v2876, -inf
    %v2879 = vmax.f32 %v2877, %v2878
    %2880 = vmax.xlane.f32.xlu0 %v2879
    %v2881 = vpop.xlane.xlu0 %2880
    %v2882 = vsub.f32 %v2875, %v2881
    %v2883 = vsub.f32 %v2876, %v2881
    %v2884 = vmul.f32 %v2882, 1.442695
    %v2885 = vpow.pop %v2884
    %v2886 = vmul.f32 %v2883, 1.442695
    %v2887 = vpow.pop %v2886
    %2890 = vrot.lane.b32.xlu0 %v2885, 1
    %v2891 = vpop.permute.xlu0 %2890
    %2892 = vrot.lane.b32.xlu0 %v2887, 1
    %v2893 = vpop.permute.xlu0 %2892
    %v2894 = vsel %vm2691, %v2891, %v2893
    %v2896 = vsel %vm2694, %v2894, 0.0
    %2897 = vadd.xlane.f32.xlu0 %v2896
    %v2898 = vpop.xlane.xlu0 %2897
    %v2899 = vrcp.pop %v2898
    %v2900 = vmul.f32 %v2885, %v2899
    %v2901 = vmul.f32 %v2887, %v2899
    %v2902 = vmax.f32 %v2900, 0.001
    %v2903 = vmax.f32 %v2901, 0.001
    %v2904 = vmul.f32 %v2902, %v2709
    %v2905 = vmul.f32 %v2903, %v2709
    %2908 = vrot.lane.b32.xlu0 %v2904, 1
    %v2909 = vpop.permute.xlu0 %2908
    %2910 = vrot.lane.b32.xlu0 %v2905, 1
    %v2911 = vpop.permute.xlu0 %2910
    %v2912 = vsel %vm2691, %v2909, %v2911
    %v2914 = vsel %vm2694, %v2912, 0.0
    %2915 = vadd.xlane.f32.xlu0 %v2914
    %v2916 = vpop.xlane.xlu0 %2915
    %v2917 = vsel %vm2691, %v2723, %v2770
    %vm2918 = vcmask 15360
    %v2919 = vsel %vm2918, %v2917, %v2822
    %vm2920 = vcmask 23552
    %v2921 = vsel %vm2920, %v2919, %v2869
    %vm2922 = vcmask 31744
    %v2923 = vsel %vm2922, %v2921, %v2916
    %vm2924 = vcmask 33792
    %2925 = vst.msk [vmem:[#allocation3] sm:$0x3] %vm2924, %v2923
    // Predicated region
    $region50: #{mario_net_forward.1} parent=1 // pred_check
      _
    $region51: #{mario_net_forward.1} parent=1 // pred_check_branch
      %2927 = sbr.rel (0) target = $region53
    $region52: #{mario_net_forward.1} parent=1 // pred_region
      %s2929 = ssub.s32 32, 32
      %2930 = vsyncadd [#allocation4], %s2929
      %s2932 = sshll.u32 [#allocation3], 4
      %s2933 = int_to_ptr.vmem [resolvable:$true] %s2932
      %2935 = dma.vmem_to_hbm [thread:$0]  %s2933, 32, %s12, [#allocation4]
    $region53: #{mario_net_forward.1} parent=1 // pred_fallthru
      _
    // Predicated region
    $region54: #{mario_net_forward.1} parent=1 // pred_check
      _
    $region55: #{mario_net_forward.1} parent=1 // pred_check_branch
      %2937 = sbr.rel (0) target = $region57
    $region56: #{mario_net_forward.1} parent=1 // pred_region
      %2938 = dma.done [#allocation4], 32
    $region57: #{mario_net_forward.1} parent=1 // pred_fallthru
      _
    %2939 = vsyncpa [#allocation4], 1

</llo_original>
